<compile_context>
chip_gen: v7x
topology: tpu7x:2x2x1
jax: 0.10.0
libtpu: 0.0.40
codegen_flags: <defaults>
</compile_context>

<pallas_src>
import functools

import jax
import jax.numpy as jnp
from jax.experimental import pallas as pl
from jax.experimental.pallas import tpu as pltpu

# ----- small BERT-like config (scaled down, structure matches the module) -----
VOCAB = 100
MAX_POS = 64
D_MODEL = 128          # stands in for 768
N_LAYERS = 6           # the module's forward runs exactly 6 student layers
N_HEADS = 4
D_HEAD = D_MODEL // N_HEADS
D_FF = 256             # stands in for d_inner
NUM_CLASS = 3
CLS_PAD = 128          # classifier output padded to one full lane tile
LN_EPS = 1e-12


def _layer_norm(x, g, b):
    mean = jnp.mean(x, axis=-1, keepdims=True)
    var = jnp.mean((x - mean) ** 2, axis=-1, keepdims=True)
    return (x - mean) * jax.lax.rsqrt(var + LN_EPS) * g + b


# --------------------------------------------------------------------------
# One fused kernel: grid axis = encoder layer; hidden state lives in VMEM scratch.
# --------------------------------------------------------------------------
def _fused_forward_kernel(
        emb_ref, mask_ref, eg_ref, eb_ref,
        wqkv_ref, bqkv_ref, wo_ref, bo_ref, g1_ref, b1_ref,
        wf1_ref, bf1_ref, wf2_ref, bf2_ref, g2_ref, b2_ref,
        wp_ref, bp_ref, wc_ref, bc_ref,
        out_ref, state_ref, *, b, s):
    l = pl.program_id(0)

    # --- embedding LayerNorm on the first grid step only (dropout = identity at eval) ---
    @pl.when(l == 0)
    def _():
        state_ref[...] = _layer_norm(emb_ref[...].astype(jnp.float32),
                                     eg_ref[...], eb_ref[...])

    x = state_ref[...]                                         # [B*S, D] f32, VMEM-resident

    # --- fused QKV projection: one MXU pass with N = 3*D ---
    qkv = jnp.dot(x, wqkv_ref[...], preferred_element_type=jnp.float32) + bqkv_ref[...]
    q = qkv[:, 0 * D_MODEL:1 * D_MODEL]
    k = qkv[:, 1 * D_MODEL:2 * D_MODEL]
    v = qkv[:, 2 * D_MODEL:3 * D_MODEL]

    # --- multi-head self-attention, all heads/batches in VMEM, no host transposes ---
    scale = 1.0 / (D_HEAD ** 0.5)
    mask_b = mask_ref[...][:, None, :]                         # [B, 1, S]  (hoisted)
    ctx_heads = []
    for h in range(N_HEADS):                                   # static unroll, H=4
        lo, hi = h * D_HEAD, (h + 1) * D_HEAD
        qh = q[:, lo:hi].reshape(b, s, D_HEAD)
        kh = k[:, lo:hi].reshape(b, s, D_HEAD)
        vh = v[:, lo:hi].reshape(b, s, D_HEAD)
        sc = jnp.einsum('bqd,bkd->bqk', qh, kh,
                        preferred_element_type=jnp.float32) * scale
        sc = sc + mask_b                                       # additive (0 / -10000) mask
        sc = sc - jnp.max(sc, axis=-1, keepdims=True)
        p = jnp.exp(sc)
        p = p * pl.reciprocal(jnp.sum(p, axis=-1, keepdims=True), approx=True)
        ch = jnp.einsum('bqk,bkd->bqd', p, vh,
                        preferred_element_type=jnp.float32)
        ctx_heads.append(ch.reshape(b * s, D_HEAD))
    ctx = jnp.concatenate(ctx_heads, axis=-1)                  # [B*S, D] lane-dense

    attn_out = jnp.dot(ctx, wo_ref[...], preferred_element_type=jnp.float32) + bo_ref[...]
    h1 = _layer_norm(attn_out + x, g1_ref[...], b1_ref[...])   # residual + post-LN

    # --- position-wise feed-forward ---
    f = jnp.dot(h1, wf1_ref[...], preferred_element_type=jnp.float32) + bf1_ref[...]
    # TODO(synk): tensor_layers' PositionwiseFeedForward activation assumed ReLU
    # (classic Transformer); swap to GELU if the reference library uses it.
    f = jnp.maximum(f, 0.0)
    f = jnp.dot(f, wf2_ref[...], preferred_element_type=jnp.float32) + bf2_ref[...]
    h2 = _layer_norm(f + h1, g2_ref[...], b2_ref[...])

    state_ref[...] = h2                                        # carry to next layer

    # --- last layer: fused tanh-pooler + classifier, lane-dense padded output ---
    @pl.when(l == pl.num_programs(0) - 1)
    def _():
        cls = jnp.concatenate([h2[i * s:i * s + 1, :] for i in range(b)], axis=0)  # [B, D]
        pooled = jnp.tanh(jnp.dot(cls, wp_ref[...],
                                  preferred_element_type=jnp.float32) + bp_ref[...])
        # classifier dropout(p=0.2): identity at inference time (eval semantics).
        out_ref[...] = (jnp.dot(pooled, wc_ref[...],
                                preferred_element_type=jnp.float32)
                        + bc_ref[...]).astype(out_ref.dtype)


# --------------------------------------------------------------------------
# Sinusoid positional-encoding table (PositionalEncoding buffer)
# --------------------------------------------------------------------------
def sinusoid_position_table(n_position, d_hid):
    pos = jnp.arange(n_position, dtype=jnp.float32)[:, None]               # [P, 1]
    i = jnp.arange(d_hid)
    angle = pos / jnp.power(10000.0, (2.0 * (i // 2).astype(jnp.float32)) / d_hid)
    return jnp.where((i % 2) == 0, jnp.sin(angle), jnp.cos(angle))         # [P, D]


# --------------------------------------------------------------------------
# Parameters (deterministic synthetic init, per-layer weights stacked on axis 0)
# --------------------------------------------------------------------------
def init_params(key):
    keys = iter(jax.random.split(key, 16))

    def dense(shape):
        return 0.02 * jax.random.normal(next(keys), shape, jnp.float32)

    L = N_LAYERS
    return {
        "word_emb": dense((VOCAB, D_MODEL)),
        "pos_table": sinusoid_position_table(MAX_POS, D_MODEL),
        "type_emb": dense((2, D_MODEL)),
        "emb_ln_g": jnp.ones((1, D_MODEL), jnp.float32),
        "emb_ln_b": jnp.zeros((1, D_MODEL), jnp.float32),
        "wqkv": dense((L, D_MODEL, 3 * D_MODEL)),
        "bqkv": jnp.zeros((L, 1, 3 * D_MODEL), jnp.float32),
        "wo": dense((L, D_MODEL, D_MODEL)),
        "bo": jnp.zeros((L, 1, D_MODEL), jnp.float32),
        "ln1_g": jnp.ones((L, 1, D_MODEL), jnp.float32),
        "ln1_b": jnp.zeros((L, 1, D_MODEL), jnp.float32),
        "wf1": dense((L, D_MODEL, D_FF)),
        "bf1": jnp.zeros((L, 1, D_FF), jnp.float32),
        "wf2": dense((L, D_FF, D_MODEL)),
        "bf2": jnp.zeros((L, 1, D_MODEL), jnp.float32),
        "ln2_g": jnp.ones((L, 1, D_MODEL), jnp.float32),
        "ln2_b": jnp.zeros((L, 1, D_MODEL), jnp.float32),
        "pool_w": dense((D_MODEL, D_MODEL)),
        "pool_b": jnp.zeros((1, D_MODEL), jnp.float32),
        "cls_w": dense((D_MODEL, NUM_CLASS)),
        "cls_b": jnp.zeros((1, NUM_CLASS), jnp.float32),
    }


# --------------------------------------------------------------------------
# Forward pass: embedding gathers in JAX, everything else in one pallas_call.
# --------------------------------------------------------------------------
@jax.jit
def transformer_sentence_forward(params, w1, attn, seg):
    B, S = w1.shape
    BS = B * S

    # word emb + sinusoid positional enc + token-type emb (seg defaults handled by caller)
    emb = (params["word_emb"][w1]
           + params["pos_table"][:S][None, :, :]
           + params["type_emb"][seg]).reshape(BS, D_MODEL)
    add_mask = (1.0 - attn.astype(jnp.float32)) * -10000.0          # [B, S] additive

    # pad classifier to a full 128-lane tile (unmasked store); slice afterward.
    wc_pad = jnp.zeros((D_MODEL, CLS_PAD), jnp.float32).at[:, :NUM_CLASS].set(params["cls_w"])
    bc_pad = jnp.zeros((1, CLS_PAD), jnp.float32).at[:, :NUM_CLASS].set(params["cls_b"])

    def const_spec(shape):
        return pl.BlockSpec(shape, lambda l: (0, 0))

    def layer_spec(shape):
        return pl.BlockSpec((None,) + shape, lambda l: (l, 0, 0))

    logits_pad = pl.pallas_call(
        functools.partial(_fused_forward_kernel, b=B, s=S),
        out_shape=jax.ShapeDtypeStruct((B, CLS_PAD), jnp.float32),
        grid=(N_LAYERS,),
        in_specs=[
            const_spec((BS, D_MODEL)),            # emb
            const_spec((B, S)),                   # additive mask
            const_spec((1, D_MODEL)),             # emb_ln_g
            const_spec((1, D_MODEL)),             # emb_ln_b
            layer_spec((D_MODEL, 3 * D_MODEL)),   # wqkv
            layer_spec((1, 3 * D_MODEL)),         # bqkv
            layer_spec((D_MODEL, D_MODEL)),       # wo
            layer_spec((1, D_MODEL)),             # bo
            layer_spec((1, D_MODEL)),             # ln1_g
            layer_spec((1, D_MODEL)),             # ln1_b
            layer_spec((D_MODEL, D_FF)),          # wf1
            layer_spec((1, D_FF)),                # bf1
            layer_spec((D_FF, D_MODEL)),          # wf2
            layer_spec((1, D_MODEL)),             # bf2
            layer_spec((1, D_MODEL)),             # ln2_g
            layer_spec((1, D_MODEL)),             # ln2_b
            const_spec((D_MODEL, D_MODEL)),       # pool_w
            const_spec((1, D_MODEL)),             # pool_b
            const_spec((D_MODEL, CLS_PAD)),       # cls_w (padded)
            const_spec((1, CLS_PAD)),             # cls_b (padded)
        ],
        out_specs=pl.BlockSpec((B, CLS_PAD), lambda l: (0, 0)),
        scratch_shapes=[pltpu.VMEM((BS, D_MODEL), jnp.float32)],
        compiler_params=pltpu.CompilerParams(
            dimension_semantics=("arbitrary",)),   # layer axis carries state
    )(emb, add_mask, params["emb_ln_g"], params["emb_ln_b"],
      params["wqkv"], params["bqkv"], params["wo"], params["bo"],
      params["ln1_g"], params["ln1_b"],
      params["wf1"], params["bf1"], params["wf2"], params["bf2"],
      params["ln2_g"], params["ln2_b"],
      params["pool_w"], params["pool_b"], wc_pad, bc_pad)

    return logits_pad[:, :NUM_CLASS]


# --------------------------------------------------------------------------
if __name__ == "__main__":
    B, S = 2, 8
    key = jax.random.PRNGKey(0)
    k_param, k_tok, k_seg = jax.random.split(key, 3)

    params = init_params(k_param)

    w1 = jax.random.randint(k_tok, (B, S), 0, VOCAB, dtype=jnp.int32)
    attn = jnp.ones((B, S), jnp.float32).at[1, S - 1].set(0.0)      # one padded slot
    seg = jax.random.randint(k_seg, (B, S), 0, 2, dtype=jnp.int32)  # seg=None -> zeros upstream

    logits = transformer_sentence_forward(params, w1, attn, seg)
    logits = jax.block_until_ready(logits)
    assert logits.shape == (B, NUM_CLASS)
    print("KERNEL_OK")
</pallas_src>

<mosaic_0001>
module attributes {stable_mosaic.version = 11 : i64} {
  func.func @_fused_forward_kernel(%arg0: i32, %arg1: memref<16x128xf32, #tpu.memory_space<vmem>>, %arg2: memref<2x8xf32, #tpu.memory_space<vmem>>, %arg3: memref<1x128xf32, #tpu.memory_space<vmem>>, %arg4: memref<1x128xf32, #tpu.memory_space<vmem>>, %arg5: memref<1x128x384xf32, #tpu.memory_space<vmem>>, %arg6: memref<1x1x384xf32, #tpu.memory_space<vmem>>, %arg7: memref<1x128x128xf32, #tpu.memory_space<vmem>>, %arg8: memref<1x1x128xf32, #tpu.memory_space<vmem>>, %arg9: memref<1x1x128xf32, #tpu.memory_space<vmem>>, %arg10: memref<1x1x128xf32, #tpu.memory_space<vmem>>, %arg11: memref<1x128x256xf32, #tpu.memory_space<vmem>>, %arg12: memref<1x1x256xf32, #tpu.memory_space<vmem>>, %arg13: memref<1x256x128xf32, #tpu.memory_space<vmem>>, %arg14: memref<1x1x128xf32, #tpu.memory_space<vmem>>, %arg15: memref<1x1x128xf32, #tpu.memory_space<vmem>>, %arg16: memref<1x1x128xf32, #tpu.memory_space<vmem>>, %arg17: memref<128x128xf32, #tpu.memory_space<vmem>>, %arg18: memref<1x128xf32, #tpu.memory_space<vmem>>, %arg19: memref<128x128xf32, #tpu.memory_space<vmem>>, %arg20: memref<1x128xf32, #tpu.memory_space<vmem>>, %arg21: memref<2x128xf32, #tpu.memory_space<vmem>>, %arg22: memref<16x128xf32, #tpu.memory_space<vmem>>) attributes {dimension_semantics = [#tpu.dimension_semantics<arbitrary>], iteration_bounds = array<i64: 6>, scalar_prefetch = 0 : i64, scratch_operands = 1 : i64, tpu.core_type = #tpu.core_type<tc>, window_params = [{pipeline_mode = #tpu.pipeline_mode<synchronous>, transform_indices = @transform_0, window_bounds = array<i64: 16, 128>}, {pipeline_mode = #tpu.pipeline_mode<synchronous>, transform_indices = @transform_1, window_bounds = array<i64: 2, 8>}, {pipeline_mode = #tpu.pipeline_mode<synchronous>, transform_indices = @transform_2, window_bounds = array<i64: 1, 128>}, {pipeline_mode = #tpu.pipeline_mode<synchronous>, transform_indices = @transform_3, window_bounds = array<i64: 1, 128>}, {transform_indices = @transform_4, window_bounds = array<i64: 1, 128, 384>}, {transform_indices = @transform_5, window_bounds = array<i64: 1, 1, 384>}, {transform_indices = @transform_6, window_bounds = array<i64: 1, 128, 128>}, {transform_indices = @transform_7, window_bounds = array<i64: 1, 1, 128>}, {transform_indices = @transform_8, window_bounds = array<i64: 1, 1, 128>}, {transform_indices = @transform_9, window_bounds = array<i64: 1, 1, 128>}, {transform_indices = @transform_10, window_bounds = array<i64: 1, 128, 256>}, {transform_indices = @transform_11, window_bounds = array<i64: 1, 1, 256>}, {transform_indices = @transform_12, window_bounds = array<i64: 1, 256, 128>}, {transform_indices = @transform_13, window_bounds = array<i64: 1, 1, 128>}, {transform_indices = @transform_14, window_bounds = array<i64: 1, 1, 128>}, {transform_indices = @transform_15, window_bounds = array<i64: 1, 1, 128>}, {pipeline_mode = #tpu.pipeline_mode<synchronous>, transform_indices = @transform_16, window_bounds = array<i64: 128, 128>}, {pipeline_mode = #tpu.pipeline_mode<synchronous>, transform_indices = @transform_17, window_bounds = array<i64: 1, 128>}, {pipeline_mode = #tpu.pipeline_mode<synchronous>, transform_indices = @transform_18, window_bounds = array<i64: 128, 128>}, {pipeline_mode = #tpu.pipeline_mode<synchronous>, transform_indices = @transform_19, window_bounds = array<i64: 1, 128>}, {pipeline_mode = #tpu.pipeline_mode<synchronous>, transform_indices = @transform_20, window_bounds = array<i64: 2, 128>}]} {
    %c0_i32 = arith.constant 0 : i32
    %0 = arith.cmpi eq, %arg0, %c0_i32 : i32
    %1 = arith.extui %0 : i1 to i32
    %c0_i32_0 = arith.constant 0 : i32
    %2 = arith.cmpi ne, %1, %c0_i32_0 : i32
    scf.if %2 {
      %c0_77 = arith.constant 0 : index
      %c0_78 = arith.constant 0 : index
      %190 = vector.load %arg1[%c0_77, %c0_78] : memref<16x128xf32, #tpu.memory_space<vmem>>, vector<16x128xf32>
      %c0_79 = arith.constant 0 : index
      %c0_80 = arith.constant 0 : index
      %191 = vector.load %arg3[%c0_79, %c0_80] : memref<1x128xf32, #tpu.memory_space<vmem>>, vector<1x128xf32>
      %c0_81 = arith.constant 0 : index
      %c0_82 = arith.constant 0 : index
      %192 = vector.load %arg4[%c0_81, %c0_82] : memref<1x128xf32, #tpu.memory_space<vmem>>, vector<1x128xf32>
      %cst_83 = arith.constant dense<0.000000e+00> : vector<16xf32>
      %193 = vector.multi_reduction <add>, %190, %cst_83 [1] : vector<16x128xf32> to vector<16xf32>
      %194 = vector.shape_cast %193 : vector<16xf32> to vector<16x1xf32>
      %cst_84 = arith.constant 1.280000e+02 : f32
      %195 = vector.broadcast %cst_84 : f32 to vector<16x1xf32>
      %196 = arith.divf %194, %195 : vector<16x1xf32>
      %197 = vector.broadcast %196 : vector<16x1xf32> to vector<16x128xf32>
      %198 = arith.subf %190, %197 : vector<16x128xf32>
      %199 = arith.mulf %198, %198 : vector<16x128xf32>
      %cst_85 = arith.constant dense<0.000000e+00> : vector<16xf32>
      %200 = vector.multi_reduction <add>, %199, %cst_85 [1] : vector<16x128xf32> to vector<16xf32>
      %201 = vector.shape_cast %200 : vector<16xf32> to vector<16x1xf32>
      %cst_86 = arith.constant 1.280000e+02 : f32
      %202 = vector.broadcast %cst_86 : f32 to vector<16x1xf32>
      %203 = arith.divf %201, %202 : vector<16x1xf32>
      %204 = vector.broadcast %196 : vector<16x1xf32> to vector<16x128xf32>
      %205 = arith.subf %190, %204 : vector<16x128xf32>
      %cst_87 = arith.constant 9.99999996E-13 : f32
      %206 = vector.broadcast %cst_87 : f32 to vector<16x1xf32>
      %207 = arith.addf %203, %206 : vector<16x1xf32>
      %208 = math.rsqrt %207 : vector<16x1xf32>
      %209 = vector.broadcast %208 : vector<16x1xf32> to vector<16x128xf32>
      %210 = arith.mulf %205, %209 : vector<16x128xf32>
      %211 = vector.broadcast %191 : vector<1x128xf32> to vector<16x128xf32>
      %212 = arith.mulf %210, %211 : vector<16x128xf32>
      %213 = vector.broadcast %192 : vector<1x128xf32> to vector<16x128xf32>
      %214 = arith.addf %212, %213 : vector<16x128xf32>
      %c0_88 = arith.constant 0 : index
      %c0_89 = arith.constant 0 : index
      %215 = vector.load %arg22[%c0_88, %c0_89] : memref<16x128xf32, #tpu.memory_space<vmem>>, vector<16x128xf32>
      tpu.vector_store %arg22[%c0_88, %c0_89], %214 {strides = array<i32>} : memref<16x128xf32, #tpu.memory_space<vmem>>, vector<16x128xf32>,
    } else {
    }
    %c0 = arith.constant 0 : index
    %c0_1 = arith.constant 0 : index
    %3 = vector.load %arg22[%c0, %c0_1] : memref<16x128xf32, #tpu.memory_space<vmem>>, vector<16x128xf32>
    %c0_2 = arith.constant 0 : index
    %c0_3 = arith.constant 0 : index
    %c0_4 = arith.constant 0 : index
    %4 = vector.load %arg5[%c0_2, %c0_3, %c0_4] : memref<1x128x384xf32, #tpu.memory_space<vmem>>, vector<1x128x384xf32>
    %5 = vector.shape_cast %4 : vector<1x128x384xf32> to vector<128x384xf32>
    %cst = arith.constant dense<0.000000e+00> : vector<16x384xf32>
    %6 = tpu.matmul %3, %5, %cst {dimension_numbers = #tpu.dot_dimension_numbers<[1], [0], [0], [1], [0, 0, 1, 1], [], []>} : vector<16x128xf32>, vector<128x384xf32>, vector<16x384xf32> -> vector<16x384xf32>
    %c0_5 = arith.constant 0 : index
    %c0_6 = arith.constant 0 : index
    %c0_7 = arith.constant 0 : index
    %7 = vector.load %arg6[%c0_5, %c0_6, %c0_7] : memref<1x1x384xf32, #tpu.memory_space<vmem>>, vector<1x1x384xf32>
    %8 = vector.shape_cast %7 : vector<1x1x384xf32> to vector<1x384xf32>
    %9 = vector.broadcast %8 : vector<1x384xf32> to vector<16x384xf32>
    %10 = arith.addf %6, %9 : vector<16x384xf32>
    %11 = vector.extract_strided_slice %10 {offsets = [0, 0], sizes = [16, 128], strides = [1, 1]} : vector<16x384xf32> to vector<16x128xf32>
    %12 = vector.extract_strided_slice %10 {offsets = [0, 128], sizes = [16, 128], strides = [1, 1]} : vector<16x384xf32> to vector<16x128xf32>
    %13 = vector.extract_strided_slice %10 {offsets = [0, 256], sizes = [16, 128], strides = [1, 1]} : vector<16x384xf32> to vector<16x128xf32>
    %c0_8 = arith.constant 0 : index
    %c0_9 = arith.constant 0 : index
    %14 = vector.load %arg2[%c0_8, %c0_9] : memref<2x8xf32, #tpu.memory_space<vmem>>, vector<2x8xf32>
    %15 = vector.shape_cast %14 : vector<2x8xf32> to vector<2x1x8xf32>
    %16 = vector.extract_strided_slice %11 {offsets = [0, 0], sizes = [16, 32], strides = [1, 1]} : vector<16x128xf32> to vector<16x32xf32>
    %17 = vector.shape_cast %16 : vector<16x32xf32> to vector<2x8x32xf32>
    %18 = vector.extract_strided_slice %12 {offsets = [0, 0], sizes = [16, 32], strides = [1, 1]} : vector<16x128xf32> to vector<16x32xf32>
    %19 = vector.shape_cast %18 : vector<16x32xf32> to vector<2x8x32xf32>
    %20 = vector.extract_strided_slice %13 {offsets = [0, 0], sizes = [16, 32], strides = [1, 1]} : vector<16x128xf32> to vector<16x32xf32>
    %21 = vector.shape_cast %20 : vector<16x32xf32> to vector<2x8x32xf32>
    "tpu.trace_start"() <{level = 10 : i32, message = "bqd,bkd->bqk"}> : () -> ()
    %cst_10 = arith.constant dense<0.000000e+00> : vector<2x8x8xf32>
    %22 = tpu.matmul %17, %19, %cst_10 {dimension_numbers = #tpu.dot_dimension_numbers<[2], [2], [1], [1], [0, 0, 0, 1, 1, 1], [0], [0]>} : vector<2x8x32xf32>, vector<2x8x32xf32>, vector<2x8x8xf32> -> vector<2x8x8xf32>
    "tpu.trace_stop"() : () -> ()
    %cst_11 = arith.constant 0.176776692 : f32
    %23 = vector.broadcast %cst_11 : f32 to vector<2x8x8xf32>
    %24 = arith.mulf %22, %23 : vector<2x8x8xf32>
    %25 = vector.broadcast %15 : vector<2x1x8xf32> to vector<2x8x8xf32>
    %26 = arith.addf %24, %25 : vector<2x8x8xf32>
    %cst_12 = arith.constant dense<0xFF800000> : vector<2x8xf32>
    %27 = vector.multi_reduction <maximumf>, %26, %cst_12 [2] : vector<2x8x8xf32> to vector<2x8xf32>
    %28 = vector.shape_cast %27 : vector<2x8xf32> to vector<2x8x1xf32>
    %29 = vector.broadcast %28 : vector<2x8x1xf32> to vector<2x8x8xf32>
    %30 = arith.subf %26, %29 : vector<2x8x8xf32>
    %31 = math.exp %30 : vector<2x8x8xf32>
    %cst_13 = arith.constant dense<0.000000e+00> : vector<2x8xf32>
    %32 = vector.multi_reduction <add>, %31, %cst_13 [2] : vector<2x8x8xf32> to vector<2x8xf32>
    %33 = vector.shape_cast %32 : vector<2x8xf32> to vector<2x8x1xf32>
    %34 = tpu.reciprocal %33 {approx = true} : vector<2x8x1xf32> -> vector<2x8x1xf32>
    %35 = vector.broadcast %34 : vector<2x8x1xf32> to vector<2x8x8xf32>
    %36 = arith.mulf %31, %35 : vector<2x8x8xf32>
    "tpu.trace_start"() <{level = 10 : i32, message = "bqk,bkd->bqd"}> : () -> ()
    %cst_14 = arith.constant dense<0.000000e+00> : vector<2x8x32xf32>
    %37 = tpu.matmul %36, %21, %cst_14 {dimension_numbers = #tpu.dot_dimension_numbers<[2], [1], [1], [2], [0, 0, 0, 1, 1, 2], [0], [0]>} : vector<2x8x8xf32>, vector<2x8x32xf32>, vector<2x8x32xf32> -> vector<2x8x32xf32>
    "tpu.trace_stop"() : () -> ()
    %38 = vector.shape_cast %37 : vector<2x8x32xf32> to vector<16x32xf32>
    %39 = vector.extract_strided_slice %11 {offsets = [0, 32], sizes = [16, 32], strides = [1, 1]} : vector<16x128xf32> to vector<16x32xf32>
    %40 = vector.shape_cast %39 : vector<16x32xf32> to vector<2x8x32xf32>
    %41 = vector.extract_strided_slice %12 {offsets = [0, 32], sizes = [16, 32], strides = [1, 1]} : vector<16x128xf32> to vector<16x32xf32>
    %42 = vector.shape_cast %41 : vector<16x32xf32> to vector<2x8x32xf32>
    %43 = vector.extract_strided_slice %13 {offsets = [0, 32], sizes = [16, 32], strides = [1, 1]} : vector<16x128xf32> to vector<16x32xf32>
    %44 = vector.shape_cast %43 : vector<16x32xf32> to vector<2x8x32xf32>
    "tpu.trace_start"() <{level = 10 : i32, message = "bqd,bkd->bqk"}> : () -> ()
    %cst_15 = arith.constant dense<0.000000e+00> : vector<2x8x8xf32>
    %45 = tpu.matmul %40, %42, %cst_15 {dimension_numbers = #tpu.dot_dimension_numbers<[2], [2], [1], [1], [0, 0, 0, 1, 1, 1], [0], [0]>} : vector<2x8x32xf32>, vector<2x8x32xf32>, vector<2x8x8xf32> -> vector<2x8x8xf32>
    "tpu.trace_stop"() : () -> ()
    %cst_16 = arith.constant 0.176776692 : f32
    %46 = vector.broadcast %cst_16 : f32 to vector<2x8x8xf32>
    %47 = arith.mulf %45, %46 : vector<2x8x8xf32>
    %48 = vector.broadcast %15 : vector<2x1x8xf32> to vector<2x8x8xf32>
    %49 = arith.addf %47, %48 : vector<2x8x8xf32>
    %cst_17 = arith.constant dense<0xFF800000> : vector<2x8xf32>
    %50 = vector.multi_reduction <maximumf>, %49, %cst_17 [2] : vector<2x8x8xf32> to vector<2x8xf32>
    %51 = vector.shape_cast %50 : vector<2x8xf32> to vector<2x8x1xf32>
    %52 = vector.broadcast %51 : vector<2x8x1xf32> to vector<2x8x8xf32>
    %53 = arith.subf %49, %52 : vector<2x8x8xf32>
    %54 = math.exp %53 : vector<2x8x8xf32>
    %cst_18 = arith.constant dense<0.000000e+00> : vector<2x8xf32>
    %55 = vector.multi_reduction <add>, %54, %cst_18 [2] : vector<2x8x8xf32> to vector<2x8xf32>
    %56 = vector.shape_cast %55 : vector<2x8xf32> to vector<2x8x1xf32>
    %57 = tpu.reciprocal %56 {approx = true} : vector<2x8x1xf32> -> vector<2x8x1xf32>
    %58 = vector.broadcast %57 : vector<2x8x1xf32> to vector<2x8x8xf32>
    %59 = arith.mulf %54, %58 : vector<2x8x8xf32>
    "tpu.trace_start"() <{level = 10 : i32, message = "bqk,bkd->bqd"}> : () -> ()
    %cst_19 = arith.constant dense<0.000000e+00> : vector<2x8x32xf32>
    %60 = tpu.matmul %59, %44, %cst_19 {dimension_numbers = #tpu.dot_dimension_numbers<[2], [1], [1], [2], [0, 0, 0, 1, 1, 2], [0], [0]>} : vector<2x8x8xf32>, vector<2x8x32xf32>, vector<2x8x32xf32> -> vector<2x8x32xf32>
    "tpu.trace_stop"() : () -> ()
    %61 = vector.shape_cast %60 : vector<2x8x32xf32> to vector<16x32xf32>
    %62 = vector.extract_strided_slice %11 {offsets = [0, 64], sizes = [16, 32], strides = [1, 1]} : vector<16x128xf32> to vector<16x32xf32>
    %63 = vector.shape_cast %62 : vector<16x32xf32> to vector<2x8x32xf32>
    %64 = vector.extract_strided_slice %12 {offsets = [0, 64], sizes = [16, 32], strides = [1, 1]} : vector<16x128xf32> to vector<16x32xf32>
    %65 = vector.shape_cast %64 : vector<16x32xf32> to vector<2x8x32xf32>
    %66 = vector.extract_strided_slice %13 {offsets = [0, 64], sizes = [16, 32], strides = [1, 1]} : vector<16x128xf32> to vector<16x32xf32>
    %67 = vector.shape_cast %66 : vector<16x32xf32> to vector<2x8x32xf32>
    "tpu.trace_start"() <{level = 10 : i32, message = "bqd,bkd->bqk"}> : () -> ()
    %cst_20 = arith.constant dense<0.000000e+00> : vector<2x8x8xf32>
    %68 = tpu.matmul %63, %65, %cst_20 {dimension_numbers = #tpu.dot_dimension_numbers<[2], [2], [1], [1], [0, 0, 0, 1, 1, 1], [0], [0]>} : vector<2x8x32xf32>, vector<2x8x32xf32>, vector<2x8x8xf32> -> vector<2x8x8xf32>
    "tpu.trace_stop"() : () -> ()
    %cst_21 = arith.constant 0.176776692 : f32
    %69 = vector.broadcast %cst_21 : f32 to vector<2x8x8xf32>
    %70 = arith.mulf %68, %69 : vector<2x8x8xf32>
    %71 = vector.broadcast %15 : vector<2x1x8xf32> to vector<2x8x8xf32>
    %72 = arith.addf %70, %71 : vector<2x8x8xf32>
    %cst_22 = arith.constant dense<0xFF800000> : vector<2x8xf32>
    %73 = vector.multi_reduction <maximumf>, %72, %cst_22 [2] : vector<2x8x8xf32> to vector<2x8xf32>
    %74 = vector.shape_cast %73 : vector<2x8xf32> to vector<2x8x1xf32>
    %75 = vector.broadcast %74 : vector<2x8x1xf32> to vector<2x8x8xf32>
    %76 = arith.subf %72, %75 : vector<2x8x8xf32>
    %77 = math.exp %76 : vector<2x8x8xf32>
    %cst_23 = arith.constant dense<0.000000e+00> : vector<2x8xf32>
    %78 = vector.multi_reduction <add>, %77, %cst_23 [2] : vector<2x8x8xf32> to vector<2x8xf32>
    %79 = vector.shape_cast %78 : vector<2x8xf32> to vector<2x8x1xf32>
    %80 = tpu.reciprocal %79 {approx = true} : vector<2x8x1xf32> -> vector<2x8x1xf32>
    %81 = vector.broadcast %80 : vector<2x8x1xf32> to vector<2x8x8xf32>
    %82 = arith.mulf %77, %81 : vector<2x8x8xf32>
    "tpu.trace_start"() <{level = 10 : i32, message = "bqk,bkd->bqd"}> : () -> ()
    %cst_24 = arith.constant dense<0.000000e+00> : vector<2x8x32xf32>
    %83 = tpu.matmul %82, %67, %cst_24 {dimension_numbers = #tpu.dot_dimension_numbers<[2], [1], [1], [2], [0, 0, 0, 1, 1, 2], [0], [0]>} : vector<2x8x8xf32>, vector<2x8x32xf32>, vector<2x8x32xf32> -> vector<2x8x32xf32>
    "tpu.trace_stop"() : () -> ()
    %84 = vector.shape_cast %83 : vector<2x8x32xf32> to vector<16x32xf32>
    %85 = vector.extract_strided_slice %11 {offsets = [0, 96], sizes = [16, 32], strides = [1, 1]} : vector<16x128xf32> to vector<16x32xf32>
    %86 = vector.shape_cast %85 : vector<16x32xf32> to vector<2x8x32xf32>
    %87 = vector.extract_strided_slice %12 {offsets = [0, 96], sizes = [16, 32], strides = [1, 1]} : vector<16x128xf32> to vector<16x32xf32>
    %88 = vector.shape_cast %87 : vector<16x32xf32> to vector<2x8x32xf32>
    %89 = vector.extract_strided_slice %13 {offsets = [0, 96], sizes = [16, 32], strides = [1, 1]} : vector<16x128xf32> to vector<16x32xf32>
    %90 = vector.shape_cast %89 : vector<16x32xf32> to vector<2x8x32xf32>
    "tpu.trace_start"() <{level = 10 : i32, message = "bqd,bkd->bqk"}> : () -> ()
    %cst_25 = arith.constant dense<0.000000e+00> : vector<2x8x8xf32>
    %91 = tpu.matmul %86, %88, %cst_25 {dimension_numbers = #tpu.dot_dimension_numbers<[2], [2], [1], [1], [0, 0, 0, 1, 1, 1], [0], [0]>} : vector<2x8x32xf32>, vector<2x8x32xf32>, vector<2x8x8xf32> -> vector<2x8x8xf32>
    "tpu.trace_stop"() : () -> ()
    %cst_26 = arith.constant 0.176776692 : f32
    %92 = vector.broadcast %cst_26 : f32 to vector<2x8x8xf32>
    %93 = arith.mulf %91, %92 : vector<2x8x8xf32>
    %94 = vector.broadcast %15 : vector<2x1x8xf32> to vector<2x8x8xf32>
    %95 = arith.addf %93, %94 : vector<2x8x8xf32>
    %cst_27 = arith.constant dense<0xFF800000> : vector<2x8xf32>
    %96 = vector.multi_reduction <maximumf>, %95, %cst_27 [2] : vector<2x8x8xf32> to vector<2x8xf32>
    %97 = vector.shape_cast %96 : vector<2x8xf32> to vector<2x8x1xf32>
    %98 = vector.broadcast %97 : vector<2x8x1xf32> to vector<2x8x8xf32>
    %99 = arith.subf %95, %98 : vector<2x8x8xf32>
    %100 = math.exp %99 : vector<2x8x8xf32>
    %cst_28 = arith.constant dense<0.000000e+00> : vector<2x8xf32>
    %101 = vector.multi_reduction <add>, %100, %cst_28 [2] : vector<2x8x8xf32> to vector<2x8xf32>
    %102 = vector.shape_cast %101 : vector<2x8xf32> to vector<2x8x1xf32>
    %103 = tpu.reciprocal %102 {approx = true} : vector<2x8x1xf32> -> vector<2x8x1xf32>
    %104 = vector.broadcast %103 : vector<2x8x1xf32> to vector<2x8x8xf32>
    %105 = arith.mulf %100, %104 : vector<2x8x8xf32>
    "tpu.trace_start"() <{level = 10 : i32, message = "bqk,bkd->bqd"}> : () -> ()
    %cst_29 = arith.constant dense<0.000000e+00> : vector<2x8x32xf32>
    %106 = tpu.matmul %105, %90, %cst_29 {dimension_numbers = #tpu.dot_dimension_numbers<[2], [1], [1], [2], [0, 0, 0, 1, 1, 2], [0], [0]>} : vector<2x8x8xf32>, vector<2x8x32xf32>, vector<2x8x32xf32> -> vector<2x8x32xf32>
    "tpu.trace_stop"() : () -> ()
    %107 = vector.shape_cast %106 : vector<2x8x32xf32> to vector<16x32xf32>
    %108 = tpu.concatenate %38, %61, %84, %107 in 1 : vector<16x32xf32>, vector<16x32xf32>, vector<16x32xf32>, vector<16x32xf32> -> vector<16x128xf32>
    %c0_30 = arith.constant 0 : index
    %c0_31 = arith.constant 0 : index
    %c0_32 = arith.constant 0 : index
    %109 = vector.load %arg7[%c0_30, %c0_31, %c0_32] : memref<1x128x128xf32, #tpu.memory_space<vmem>>, vector<1x128x128xf32>
    %110 = vector.shape_cast %109 : vector<1x128x128xf32> to vector<128x128xf32>
    %cst_33 = arith.constant dense<0.000000e+00> : vector<16x128xf32>
    %111 = tpu.matmul %108, %110, %cst_33 {dimension_numbers = #tpu.dot_dimension_numbers<[1], [0], [0], [1], [0, 0, 1, 1], [], []>} : vector<16x128xf32>, vector<128x128xf32>, vector<16x128xf32> -> vector<16x128xf32>
    %c0_34 = arith.constant 0 : index
    %c0_35 = arith.constant 0 : index
    %c0_36 = arith.constant 0 : index
    %112 = vector.load %arg8[%c0_34, %c0_35, %c0_36] : memref<1x1x128xf32, #tpu.memory_space<vmem>>, vector<1x1x128xf32>
    %113 = vector.shape_cast %112 : vector<1x1x128xf32> to vector<1x128xf32>
    %114 = vector.broadcast %113 : vector<1x128xf32> to vector<16x128xf32>
    %115 = arith.addf %111, %114 : vector<16x128xf32>
    %116 = arith.addf %115, %3 : vector<16x128xf32>
    %c0_37 = arith.constant 0 : index
    %c0_38 = arith.constant 0 : index
    %c0_39 = arith.constant 0 : index
    %117 = vector.load %arg9[%c0_37, %c0_38, %c0_39] : memref<1x1x128xf32, #tpu.memory_space<vmem>>, vector<1x1x128xf32>
    %118 = vector.shape_cast %117 : vector<1x1x128xf32> to vector<1x128xf32>
    %c0_40 = arith.constant 0 : index
    %c0_41 = arith.constant 0 : index
    %c0_42 = arith.constant 0 : index
    %119 = vector.load %arg10[%c0_40, %c0_41, %c0_42] : memref<1x1x128xf32, #tpu.memory_space<vmem>>, vector<1x1x128xf32>
    %120 = vector.shape_cast %119 : vector<1x1x128xf32> to vector<1x128xf32>
    %cst_43 = arith.constant dense<0.000000e+00> : vector<16xf32>
    %121 = vector.multi_reduction <add>, %116, %cst_43 [1] : vector<16x128xf32> to vector<16xf32>
    %122 = vector.shape_cast %121 : vector<16xf32> to vector<16x1xf32>
    %cst_44 = arith.constant 1.280000e+02 : f32
    %123 = vector.broadcast %cst_44 : f32 to vector<16x1xf32>
    %124 = arith.divf %122, %123 : vector<16x1xf32>
    %125 = vector.broadcast %124 : vector<16x1xf32> to vector<16x128xf32>
    %126 = arith.subf %116, %125 : vector<16x128xf32>
    %127 = arith.mulf %126, %126 : vector<16x128xf32>
    %cst_45 = arith.constant dense<0.000000e+00> : vector<16xf32>
    %128 = vector.multi_reduction <add>, %127, %cst_45 [1] : vector<16x128xf32> to vector<16xf32>
    %129 = vector.shape_cast %128 : vector<16xf32> to vector<16x1xf32>
    %cst_46 = arith.constant 1.280000e+02 : f32
    %130 = vector.broadcast %cst_46 : f32 to vector<16x1xf32>
    %131 = arith.divf %129, %130 : vector<16x1xf32>
    %132 = vector.broadcast %124 : vector<16x1xf32> to vector<16x128xf32>
    %133 = arith.subf %116, %132 : vector<16x128xf32>
    %cst_47 = arith.constant 9.99999996E-13 : f32
    %134 = vector.broadcast %cst_47 : f32 to vector<16x1xf32>
    %135 = arith.addf %131, %134 : vector<16x1xf32>
    %136 = math.rsqrt %135 : vector<16x1xf32>
    %137 = vector.broadcast %136 : vector<16x1xf32> to vector<16x128xf32>
    %138 = arith.mulf %133, %137 : vector<16x128xf32>
    %139 = vector.broadcast %118 : vector<1x128xf32> to vector<16x128xf32>
    %140 = arith.mulf %138, %139 : vector<16x128xf32>
    %141 = vector.broadcast %120 : vector<1x128xf32> to vector<16x128xf32>
    %142 = arith.addf %140, %141 : vector<16x128xf32>
    %c0_48 = arith.constant 0 : index
    %c0_49 = arith.constant 0 : index
    %c0_50 = arith.constant 0 : index
    %143 = vector.load %arg11[%c0_48, %c0_49, %c0_50] : memref<1x128x256xf32, #tpu.memory_space<vmem>>, vector<1x128x256xf32>
    %144 = vector.shape_cast %143 : vector<1x128x256xf32> to vector<128x256xf32>
    %cst_51 = arith.constant dense<0.000000e+00> : vector<16x256xf32>
    %145 = tpu.matmul %142, %144, %cst_51 {dimension_numbers = #tpu.dot_dimension_numbers<[1], [0], [0], [1], [0, 0, 1, 1], [], []>} : vector<16x128xf32>, vector<128x256xf32>, vector<16x256xf32> -> vector<16x256xf32>
    %c0_52 = arith.constant 0 : index
    %c0_53 = arith.constant 0 : index
    %c0_54 = arith.constant 0 : index
    %146 = vector.load %arg12[%c0_52, %c0_53, %c0_54] : memref<1x1x256xf32, #tpu.memory_space<vmem>>, vector<1x1x256xf32>
    %147 = vector.shape_cast %146 : vector<1x1x256xf32> to vector<1x256xf32>
    %148 = vector.broadcast %147 : vector<1x256xf32> to vector<16x256xf32>
    %149 = arith.addf %145, %148 : vector<16x256xf32>
    %cst_55 = arith.constant 0.000000e+00 : f32
    %150 = vector.broadcast %cst_55 : f32 to vector<16x256xf32>
    %151 = arith.maximumf %149, %150 : vector<16x256xf32>
    %c0_56 = arith.constant 0 : index
    %c0_57 = arith.constant 0 : index
    %c0_58 = arith.constant 0 : index
    %152 = vector.load %arg13[%c0_56, %c0_57, %c0_58] : memref<1x256x128xf32, #tpu.memory_space<vmem>>, vector<1x256x128xf32>
    %153 = vector.shape_cast %152 : vector<1x256x128xf32> to vector<256x128xf32>
    %cst_59 = arith.constant dense<0.000000e+00> : vector<16x128xf32>
    %154 = tpu.matmul %151, %153, %cst_59 {dimension_numbers = #tpu.dot_dimension_numbers<[1], [0], [0], [1], [0, 0, 1, 1], [], []>} : vector<16x256xf32>, vector<256x128xf32>, vector<16x128xf32> -> vector<16x128xf32>
    %c0_60 = arith.constant 0 : index
    %c0_61 = arith.constant 0 : index
    %c0_62 = arith.constant 0 : index
    %155 = vector.load %arg14[%c0_60, %c0_61, %c0_62] : memref<1x1x128xf32, #tpu.memory_space<vmem>>, vector<1x1x128xf32>
    %156 = vector.shape_cast %155 : vector<1x1x128xf32> to vector<1x128xf32>
    %157 = vector.broadcast %156 : vector<1x128xf32> to vector<16x128xf32>
    %158 = arith.addf %154, %157 : vector<16x128xf32>
    %159 = arith.addf %158, %142 : vector<16x128xf32>
    %c0_63 = arith.constant 0 : index
    %c0_64 = arith.constant 0 : index
    %c0_65 = arith.constant 0 : index
    %160 = vector.load %arg15[%c0_63, %c0_64, %c0_65] : memref<1x1x128xf32, #tpu.memory_space<vmem>>, vector<1x1x128xf32>
    %161 = vector.shape_cast %160 : vector<1x1x128xf32> to vector<1x128xf32>
    %c0_66 = arith.constant 0 : index
    %c0_67 = arith.constant 0 : index
    %c0_68 = arith.constant 0 : index
    %162 = vector.load %arg16[%c0_66, %c0_67, %c0_68] : memref<1x1x128xf32, #tpu.memory_space<vmem>>, vector<1x1x128xf32>
    %163 = vector.shape_cast %162 : vector<1x1x128xf32> to vector<1x128xf32>
    %cst_69 = arith.constant dense<0.000000e+00> : vector<16xf32>
    %164 = vector.multi_reduction <add>, %159, %cst_69 [1] : vector<16x128xf32> to vector<16xf32>
    %165 = vector.shape_cast %164 : vector<16xf32> to vector<16x1xf32>
    %cst_70 = arith.constant 1.280000e+02 : f32
    %166 = vector.broadcast %cst_70 : f32 to vector<16x1xf32>
    %167 = arith.divf %165, %166 : vector<16x1xf32>
    %168 = vector.broadcast %167 : vector<16x1xf32> to vector<16x128xf32>
    %169 = arith.subf %159, %168 : vector<16x128xf32>
    %170 = arith.mulf %169, %169 : vector<16x128xf32>
    %cst_71 = arith.constant dense<0.000000e+00> : vector<16xf32>
    %171 = vector.multi_reduction <add>, %170, %cst_71 [1] : vector<16x128xf32> to vector<16xf32>
    %172 = vector.shape_cast %171 : vector<16xf32> to vector<16x1xf32>
    %cst_72 = arith.constant 1.280000e+02 : f32
    %173 = vector.broadcast %cst_72 : f32 to vector<16x1xf32>
    %174 = arith.divf %172, %173 : vector<16x1xf32>
    %175 = vector.broadcast %167 : vector<16x1xf32> to vector<16x128xf32>
    %176 = arith.subf %159, %175 : vector<16x128xf32>
    %cst_73 = arith.constant 9.99999996E-13 : f32
    %177 = vector.broadcast %cst_73 : f32 to vector<16x1xf32>
    %178 = arith.addf %174, %177 : vector<16x1xf32>
    %179 = math.rsqrt %178 : vector<16x1xf32>
    %180 = vector.broadcast %179 : vector<16x1xf32> to vector<16x128xf32>
    %181 = arith.mulf %176, %180 : vector<16x128xf32>
    %182 = vector.broadcast %161 : vector<1x128xf32> to vector<16x128xf32>
    %183 = arith.mulf %181, %182 : vector<16x128xf32>
    %184 = vector.broadcast %163 : vector<1x128xf32> to vector<16x128xf32>
    %185 = arith.addf %183, %184 : vector<16x128xf32>
    %c0_74 = arith.constant 0 : index
    %c0_75 = arith.constant 0 : index
    %186 = vector.load %arg22[%c0_74, %c0_75] : memref<16x128xf32, #tpu.memory_space<vmem>>, vector<16x128xf32>
    tpu.vector_store %arg22[%c0_74, %c0_75], %185 {strides = array<i32>} : memref<16x128xf32, #tpu.memory_space<vmem>>, vector<16x128xf32>,
    %c5_i32 = arith.constant 5 : i32
    %187 = arith.cmpi eq, %arg0, %c5_i32 : i32
    %188 = arith.extui %187 : i1 to i32
    %c0_i32_76 = arith.constant 0 : i32
    %189 = arith.cmpi ne, %188, %c0_i32_76 : i32
    scf.if %189 {
      %190 = vector.extract_strided_slice %185 {offsets = [0, 0], sizes = [1, 128], strides = [1, 1]} : vector<16x128xf32> to vector<1x128xf32>
      %191 = vector.extract_strided_slice %185 {offsets = [8, 0], sizes = [1, 128], strides = [1, 1]} : vector<16x128xf32> to vector<1x128xf32>
      %192 = tpu.concatenate %190, %191 in 0 : vector<1x128xf32>, vector<1x128xf32> -> vector<2x128xf32>
      %c0_77 = arith.constant 0 : index
      %c0_78 = arith.constant 0 : index
      %193 = vector.load %arg17[%c0_77, %c0_78] : memref<128x128xf32, #tpu.memory_space<vmem>>, vector<128x128xf32>
      %cst_79 = arith.constant dense<0.000000e+00> : vector<2x128xf32>
      %194 = tpu.matmul %192, %193, %cst_79 {dimension_numbers = #tpu.dot_dimension_numbers<[1], [0], [0], [1], [0, 0, 1, 1], [], []>} : vector<2x128xf32>, vector<128x128xf32>, vector<2x128xf32> -> vector<2x128xf32>
      %c0_80 = arith.constant 0 : index
      %c0_81 = arith.constant 0 : index
      %195 = vector.load %arg18[%c0_80, %c0_81] : memref<1x128xf32, #tpu.memory_space<vmem>>, vector<1x128xf32>
      %196 = vector.broadcast %195 : vector<1x128xf32> to vector<2x128xf32>
      %197 = arith.addf %194, %196 : vector<2x128xf32>
      %198 = math.tanh %197 : vector<2x128xf32>
      %c0_82 = arith.constant 0 : index
      %c0_83 = arith.constant 0 : index
      %199 = vector.load %arg19[%c0_82, %c0_83] : memref<128x128xf32, #tpu.memory_space<vmem>>, vector<128x128xf32>
      %cst_84 = arith.constant dense<0.000000e+00> : vector<2x128xf32>
      %200 = tpu.matmul %198, %199, %cst_84 {dimension_numbers = #tpu.dot_dimension_numbers<[1], [0], [0], [1], [0, 0, 1, 1], [], []>} : vector<2x128xf32>, vector<128x128xf32>, vector<2x128xf32> -> vector<2x128xf32>
      %c0_85 = arith.constant 0 : index
      %c0_86 = arith.constant 0 : index
      %201 = vector.load %arg20[%c0_85, %c0_86] : memref<1x128xf32, #tpu.memory_space<vmem>>, vector<1x128xf32>
      %202 = vector.broadcast %201 : vector<1x128xf32> to vector<2x128xf32>
      %203 = arith.addf %200, %202 : vector<2x128xf32>
      %c0_87 = arith.constant 0 : index
      %c0_88 = arith.constant 0 : index
      %204 = vector.load %arg21[%c0_87, %c0_88] : memref<2x128xf32, #tpu.memory_space<vmem>>, vector<2x128xf32>
      tpu.vector_store %arg21[%c0_87, %c0_88], %203 {strides = array<i32>} : memref<2x128xf32, #tpu.memory_space<vmem>>, vector<2x128xf32>,
    } else {
    }
    return
  }
  func.func @transform_0(%arg0: i32) -> (i32, i32) {
    %c0_i32 = arith.constant 0 : i32
    %c0_i32_0 = arith.constant 0 : i32
    %c0_i32_1 = arith.constant 0 : i32
    return %c0_i32, %c0_i32_0 : i32, i32
  }
  func.func @transform_1(%arg0: i32) -> (i32, i32) {
    %c0_i32 = arith.constant 0 : i32
    %c0_i32_0 = arith.constant 0 : i32
    %c0_i32_1 = arith.constant 0 : i32
    return %c0_i32, %c0_i32_0 : i32, i32
  }
  func.func @transform_2(%arg0: i32) -> (i32, i32) {
    %c0_i32 = arith.constant 0 : i32
    %c0_i32_0 = arith.constant 0 : i32
    %c0_i32_1 = arith.constant 0 : i32
    return %c0_i32, %c0_i32_0 : i32, i32
  }
  func.func @transform_3(%arg0: i32) -> (i32, i32) {
    %c0_i32 = arith.constant 0 : i32
    %c0_i32_0 = arith.constant 0 : i32
    %c0_i32_1 = arith.constant 0 : i32
    return %c0_i32, %c0_i32_0 : i32, i32
  }
  func.func @transform_4(%arg0: i32) -> (i32, i32, i32) {
    %c0_i32 = arith.constant 0 : i32
    %c0_i32_0 = arith.constant 0 : i32
    %c0_i32_1 = arith.constant 0 : i32
    return %arg0, %c0_i32, %c0_i32_0 : i32, i32, i32
  }
  func.func @transform_5(%arg0: i32) -> (i32, i32, i32) {
    %c0_i32 = arith.constant 0 : i32
    %c0_i32_0 = arith.constant 0 : i32
    %c0_i32_1 = arith.constant 0 : i32
    return %arg0, %c0_i32, %c0_i32_0 : i32, i32, i32
  }
  func.func @transform_6(%arg0: i32) -> (i32, i32, i32) {
    %c0_i32 = arith.constant 0 : i32
    %c0_i32_0 = arith.constant 0 : i32
    %c0_i32_1 = arith.constant 0 : i32
    return %arg0, %c0_i32, %c0_i32_0 : i32, i32, i32
  }
  func.func @transform_7(%arg0: i32) -> (i32, i32, i32) {
    %c0_i32 = arith.constant 0 : i32
    %c0_i32_0 = arith.constant 0 : i32
    %c0_i32_1 = arith.constant 0 : i32
    return %arg0, %c0_i32, %c0_i32_0 : i32, i32, i32
  }
  func.func @transform_8(%arg0: i32) -> (i32, i32, i32) {
    %c0_i32 = arith.constant 0 : i32
    %c0_i32_0 = arith.constant 0 : i32
    %c0_i32_1 = arith.constant 0 : i32
    return %arg0, %c0_i32, %c0_i32_0 : i32, i32, i32
  }
  func.func @transform_9(%arg0: i32) -> (i32, i32, i32) {
    %c0_i32 = arith.constant 0 : i32
    %c0_i32_0 = arith.constant 0 : i32
    %c0_i32_1 = arith.constant 0 : i32
    return %arg0, %c0_i32, %c0_i32_0 : i32, i32, i32
  }
  func.func @transform_10(%arg0: i32) -> (i32, i32, i32) {
    %c0_i32 = arith.constant 0 : i32
    %c0_i32_0 = arith.constant 0 : i32
    %c0_i32_1 = arith.constant 0 : i32
    return %arg0, %c0_i32, %c0_i32_0 : i32, i32, i32
  }
  func.func @transform_11(%arg0: i32) -> (i32, i32, i32) {
    %c0_i32 = arith.constant 0 : i32
    %c0_i32_0 = arith.constant 0 : i32
    %c0_i32_1 = arith.constant 0 : i32
    return %arg0, %c0_i32, %c0_i32_0 : i32, i32, i32
  }
  func.func @transform_12(%arg0: i32) -> (i32, i32, i32) {
    %c0_i32 = arith.constant 0 : i32
    %c0_i32_0 = arith.constant 0 : i32
    %c0_i32_1 = arith.constant 0 : i32
    return %arg0, %c0_i32, %c0_i32_0 : i32, i32, i32
  }
  func.func @transform_13(%arg0: i32) -> (i32, i32, i32) {
    %c0_i32 = arith.constant 0 : i32
    %c0_i32_0 = arith.constant 0 : i32
    %c0_i32_1 = arith.constant 0 : i32
    return %arg0, %c0_i32, %c0_i32_0 : i32, i32, i32
  }
  func.func @transform_14(%arg0: i32) -> (i32, i32, i32) {
    %c0_i32 = arith.constant 0 : i32
    %c0_i32_0 = arith.constant 0 : i32
    %c0_i32_1 = arith.constant 0 : i32
    return %arg0, %c0_i32, %c0_i32_0 : i32, i32, i32
  }
  func.func @transform_15(%arg0: i32) -> (i32, i32, i32) {
    %c0_i32 = arith.constant 0 : i32
    %c0_i32_0 = arith.constant 0 : i32
    %c0_i32_1 = arith.constant 0 : i32
    return %arg0, %c0_i32, %c0_i32_0 : i32, i32, i32
  }
  func.func @transform_16(%arg0: i32) -> (i32, i32) {
    %c0_i32 = arith.constant 0 : i32
    %c0_i32_0 = arith.constant 0 : i32
    %c0_i32_1 = arith.constant 0 : i32
    return %c0_i32, %c0_i32_0 : i32, i32
  }
  func.func @transform_17(%arg0: i32) -> (i32, i32) {
    %c0_i32 = arith.constant 0 : i32
    %c0_i32_0 = arith.constant 0 : i32
    %c0_i32_1 = arith.constant 0 : i32
    return %c0_i32, %c0_i32_0 : i32, i32
  }
  func.func @transform_18(%arg0: i32) -> (i32, i32) {
    %c0_i32 = arith.constant 0 : i32
    %c0_i32_0 = arith.constant 0 : i32
    %c0_i32_1 = arith.constant 0 : i32
    return %c0_i32, %c0_i32_0 : i32, i32
  }
  func.func @transform_19(%arg0: i32) -> (i32, i32) {
    %c0_i32 = arith.constant 0 : i32
    %c0_i32_0 = arith.constant 0 : i32
    %c0_i32_1 = arith.constant 0 : i32
    return %c0_i32, %c0_i32_0 : i32, i32
  }
  func.func @transform_20(%arg0: i32) -> (i32, i32) {
    %c0_i32 = arith.constant 0 : i32
    %c0_i32_0 = arith.constant 0 : i32
    %c0_i32_1 = arith.constant 0 : i32
    return %c0_i32, %c0_i32_0 : i32, i32
  }
}

</mosaic_0001>

<llo_original>
// kernel: transformer_sentence_forward.1
$region0: #{transformer_sentence_forward.1}
  #allocation0 [shape = 'u32[]', space=smem, size = 0x4, offset = 0x4, fixed_abs, tag = 'smem constant byte address 0x4 - core index']
  #allocation1 [shape = 'u32[144,128]{1,0:T(1,128)}', space=vmem, size = 0x12000, scoped, tag = 'internal scratch']
  #allocation2 [shape = 'f32[16,128]{1,0:T(8,128)}', space=vmem, size = 0x2000, scoped, tag = 'scratch operand']
  %s0 = inlined_call_operand.vmem [shape: f32[16,128], index: 0, kind: input, shape index: {}]
  %s1 = inlined_call_operand.vmem [shape: f32[2,8], index: 1, kind: input, shape index: {}]
  %s2 = inlined_call_operand.hbm [shape: f32[1,128], index: 2, kind: input, shape index: {}]
  %s3 = inlined_call_operand.hbm [shape: f32[1,128], index: 3, kind: input, shape index: {}]
  %s4 = inlined_call_operand.hbm [shape: f32[6,128,384], index: 4, kind: input, shape index: {}]
  %s5 = inlined_call_operand.hbm [shape: f32[6,1,384], index: 5, kind: input, shape index: {}]
  %s6 = inlined_call_operand.hbm [shape: f32[6,128,128], index: 6, kind: input, shape index: {}]
  %s7 = inlined_call_operand.hbm [shape: f32[6,1,128], index: 7, kind: input, shape index: {}]
  %s8 = inlined_call_operand.hbm [shape: f32[6,1,128], index: 8, kind: input, shape index: {}]
  %s9 = inlined_call_operand.hbm [shape: f32[6,1,128], index: 9, kind: input, shape index: {}]
  %s10 = inlined_call_operand.hbm [shape: f32[6,128,256], index: 10, kind: input, shape index: {}]
  %s11 = inlined_call_operand.hbm [shape: f32[6,1,256], index: 11, kind: input, shape index: {}]
  %s12 = inlined_call_operand.hbm [shape: f32[6,256,128], index: 12, kind: input, shape index: {}]
  %s13 = inlined_call_operand.hbm [shape: f32[6,1,128], index: 13, kind: input, shape index: {}]
  %s14 = inlined_call_operand.hbm [shape: f32[6,1,128], index: 14, kind: input, shape index: {}]
  %s15 = inlined_call_operand.hbm [shape: f32[6,1,128], index: 15, kind: input, shape index: {}]
  %s16 = inlined_call_operand.hbm [shape: f32[128,128], index: 16, kind: input, shape index: {}]
  %s17 = inlined_call_operand.hbm [shape: f32[1,128], index: 17, kind: input, shape index: {}]
  %s18 = inlined_call_operand.vmem [shape: f32[128,128], index: 18, kind: input, shape index: {}]
  %s19 = inlined_call_operand.vmem [shape: f32[1,128], index: 19, kind: input, shape index: {}]
  %s20 = inlined_call_operand.hbm [shape: f32[2,128], index: 20, kind: output, shape index: {}]
  %s21 = sld [smem:[#allocation0]]
  $region185: #{transformer_sentence_forward.1} parent=0
    _
  %s23 = ssub.s32 1, %s21
  %s24 = scalar_select 0, %s23, %s21
  $region1: #{transformer_sentence_forward.1} parent=0
    #allocation3 [shape = 'u8[512]{0}', space=vmem, size = 0x400, scoped, tag = 'input window, operand 2, single buffered']
    #allocation4 [shape = 's32[2]{0}', space=sflag, size = 0x8, scoped, tag = 'scoped memory for transformer_sentence_forward.1']
    #allocation5 [shape = 's32[2]{0}', space=sflag, size = 0x8, scoped, tag = 'scoped memory for transformer_sentence_forward.1']
    #allocation6 [shape = 'u8[512]{0}', space=vmem, size = 0x400, scoped, tag = 'input window, operand 3, single buffered']
    #allocation7 [shape = 's32[1]{0}', space=sflag, size = 0x4, scoped, tag = 'scoped memory for transformer_sentence_forward.1']
    #allocation8 [shape = 'u8[393216]{0}', space=vmem, size = 0x60000, scoped, tag = 'input window, operand 4']
    #allocation9 [shape = 'u8[3072]{0}', space=vmem, size = 0xc00, scoped, tag = 'input window, operand 5']
    #allocation10 [shape = 'u8[131072]{0}', space=vmem, size = 0x20000, scoped, tag = 'input window, operand 6']
    #allocation11 [shape = 'u8[1024]{0}', space=vmem, size = 0x400, scoped, tag = 'input window, operand 7']
    #allocation12 [shape = 'u8[1024]{0}', space=vmem, size = 0x400, scoped, tag = 'input window, operand 8']
    #allocation13 [shape = 'u8[1024]{0}', space=vmem, size = 0x400, scoped, tag = 'input window, operand 9']
    #allocation14 [shape = 'u8[262144]{0}', space=vmem, size = 0x40000, scoped, tag = 'input window, operand 10']
    #allocation15 [shape = 'u8[2048]{0}', space=vmem, size = 0x800, scoped, tag = 'input window, operand 11']
    #allocation16 [shape = 'u8[262144]{0}', space=vmem, size = 0x40000, scoped, tag = 'input window, operand 12']
    #allocation17 [shape = 'u8[1024]{0}', space=vmem, size = 0x400, scoped, tag = 'input window, operand 13']
    #allocation18 [shape = 'u8[1024]{0}', space=vmem, size = 0x400, scoped, tag = 'input window, operand 14']
    #allocation19 [shape = 'u8[1024]{0}', space=vmem, size = 0x400, scoped, tag = 'input window, operand 15']
    #allocation20 [shape = 'u8[65536]{0}', space=vmem, size = 0x10000, scoped, tag = 'input window, operand 16, single buffered']
    #allocation21 [shape = 'u8[512]{0}', space=vmem, size = 0x400, scoped, tag = 'input window, operand 17, single buffered']
    #allocation22 [shape = 's32[1]{0}', space=sflag, size = 0x4, scoped, tag = 'scoped memory for transformer_sentence_forward.1']
    #allocation23 [shape = 'u8[1024]{0}', space=vmem, size = 0x400, scoped, tag = 'output window, operand 0, single buffered']
    %25 = vsyncpa [#allocation4], 0
    %26 = vsyncpa [#allocation7], 0
    %27 = vsyncpa [#allocation22], 0
    %28 = vsyncpa [#allocation5], 0
    loop: start=0, step=1, limit=8
    $region2: #{transformer_sentence_forward.1} parent=1 // loop_pre_header
      _
    $region3: #{transformer_sentence_forward.1} parent=1 // loop_header
      %s30 = sphi 0, %s34
      %p31 = scmp.ge.s32.totalorder %s30, 8
      %s38 = sphi 0, %s38
      %s40 = sphi 0, %s38
      %s41 = sphi 0, %s40
      %s55 = sphi 0, %s41
      %s59 = sphi 0, %s59
      %s61 = sphi 0, %s59
      %s62 = sphi 0, %s61
      %s76 = sphi 0, %s62
      %s80 = sphi 0, %s80
      %s82 = sphi 0, %s80
      %s83 = sphi 0, %s82
      %s97 = sphi 0, %s83
      %s101 = sphi 0, %s101
      %s103 = sphi 0, %s101
      %s104 = sphi 0, %s103
      %s118 = sphi 0, %s104
      %s124 = sphi 0, %s126
      %s127 = sphi 0, %s124
      %s128 = sphi 0, %s127
      %s144 = sphi 0, %s128
      %s150 = sphi 0, %s152
      %s153 = sphi 0, %s150
      %s154 = sphi 0, %s153
      %s170 = sphi 0, %s154
      %s176 = sphi 0, %s178
      %s179 = sphi 0, %s176
      %s180 = sphi 0, %s179
      %s196 = sphi 0, %s180
      %s202 = sphi 0, %s204
      %s205 = sphi 0, %s202
      %s206 = sphi 0, %s205
      %s222 = sphi 0, %s206
      %s228 = sphi 0, %s230
      %s231 = sphi 0, %s228
      %s232 = sphi 0, %s231
      %s248 = sphi 0, %s232
      %s254 = sphi 0, %s256
      %s257 = sphi 0, %s254
      %s258 = sphi 0, %s257
      %s274 = sphi 0, %s258
      %s280 = sphi 0, %s282
      %s283 = sphi 0, %s280
      %s284 = sphi 0, %s283
      %s300 = sphi 0, %s284
      %s306 = sphi 0, %s308
      %s309 = sphi 0, %s306
      %s310 = sphi 0, %s309
      %s326 = sphi 0, %s310
      %s332 = sphi 0, %s334
      %s335 = sphi 0, %s332
      %s336 = sphi 0, %s335
      %s352 = sphi 0, %s336
      %s358 = sphi 0, %s360
      %s361 = sphi 0, %s358
      %s362 = sphi 0, %s361
      %s378 = sphi 0, %s362
      %s384 = sphi 0, %s386
      %s387 = sphi 0, %s384
      %s388 = sphi 0, %s387
      %s404 = sphi 0, %s388
      %s410 = sphi 0, %s412
      %s413 = sphi 0, %s410
      %s414 = sphi 0, %s413
      %s430 = sphi 0, %s414
      %s434 = sphi 0, %s434
      %s436 = sphi 0, %s434
      %s437 = sphi 0, %s436
      %s451 = sphi 0, %s437
      %s455 = sphi 0, %s455
      %s457 = sphi 0, %s455
      %s458 = sphi 0, %s457
      %s472 = sphi 0, %s458
      %s476 = sphi 0, %s476
      %s478 = sphi 0, %s476
      %s479 = sphi 0, %s478
      %s493 = sphi 0, %s479
      %s497 = sphi 0, %s497
      %s499 = sphi 0, %s497
      %s500 = sphi 0, %s499
      %s514 = sphi 0, %s500
      %s518 = sphi 0, %s518
      %s520 = sphi 0, %s518
      %s521 = sphi 0, %s520
      %s535 = sphi 0, %s521
    $region4: #{transformer_sentence_forward.1} parent=1 // loop_header_branch
      %33 = sbr.rel (%p31) target = $region8
    $region5: #{transformer_sentence_forward.1} parent=1 // loop_body
      %s35 = ssub.s32 %s30, 1
      %s36 = ssub.s32 %s30, 2
      %s37 = sadd.s32 %s30, 1
      %s39 = sadd.s32 %s38, 1
      %p42 = scmp.eq.s32.totalorder %s30, 5
      %p43 = scmp.ne.s32.totalorder %s38, %s40
      %p44 = scmp.eq.s32.totalorder %s30, 0
      %p45 = por %p43, %p44
      %p46 = scmp.ne.s32.totalorder %s38, %s40
      %p47 = scmp.eq.s32.totalorder %s35, 5
      %p48 = por %p46, %p47
      %p49 = scmp.ne.s32.totalorder %s40, %s41
      %p50 = scmp.eq.s32.totalorder %s35, 0
      %p51 = por %p49, %p50
      %p52 = scmp.ne.s32.totalorder %s40, %s41
      %p53 = scmp.eq.s32.totalorder %s36, 5
      %p54 = por %p52, %p53
      %p56 = scmp.ne.s32.totalorder %s41, %s55
      %p57 = scmp.eq.s32.totalorder %s36, 0
      %p58 = por %p56, %p57
      %s60 = sadd.s32 %s59, 1
      %p63 = scmp.eq.s32.totalorder %s30, 5
      %p64 = scmp.ne.s32.totalorder %s59, %s61
      %p65 = scmp.eq.s32.totalorder %s30, 0
      %p66 = por %p64, %p65
      %p67 = scmp.ne.s32.totalorder %s59, %s61
      %p68 = scmp.eq.s32.totalorder %s35, 5
      %p69 = por %p67, %p68
      %p70 = scmp.ne.s32.totalorder %s61, %s62
      %p71 = scmp.eq.s32.totalorder %s35, 0
      %p72 = por %p70, %p71
      %p73 = scmp.ne.s32.totalorder %s61, %s62
      %p74 = scmp.eq.s32.totalorder %s36, 5
      %p75 = por %p73, %p74
      %p77 = scmp.ne.s32.totalorder %s62, %s76
      %p78 = scmp.eq.s32.totalorder %s36, 0
      %p79 = por %p77, %p78
      %s81 = sadd.s32 %s80, 1
      %p84 = scmp.eq.s32.totalorder %s30, 5
      %p85 = scmp.ne.s32.totalorder %s80, %s82
      %p86 = scmp.eq.s32.totalorder %s30, 0
      %p87 = por %p85, %p86
      %p88 = scmp.ne.s32.totalorder %s80, %s82
      %p89 = scmp.eq.s32.totalorder %s35, 5
      %p90 = por %p88, %p89
      %p91 = scmp.ne.s32.totalorder %s82, %s83
      %p92 = scmp.eq.s32.totalorder %s35, 0
      %p93 = por %p91, %p92
      %p94 = scmp.ne.s32.totalorder %s82, %s83
      %p95 = scmp.eq.s32.totalorder %s36, 5
      %p96 = por %p94, %p95
      %p98 = scmp.ne.s32.totalorder %s83, %s97
      %p99 = scmp.eq.s32.totalorder %s36, 0
      %p100 = por %p98, %p99
      %s102 = sadd.s32 %s101, 1
      %p105 = scmp.eq.s32.totalorder %s30, 5
      %p106 = scmp.ne.s32.totalorder %s101, %s103
      %p107 = scmp.eq.s32.totalorder %s30, 0
      %p108 = por %p106, %p107
      %p109 = scmp.ne.s32.totalorder %s101, %s103
      %p110 = scmp.eq.s32.totalorder %s35, 5
      %p111 = por %p109, %p110
      %p112 = scmp.ne.s32.totalorder %s103, %s104
      %p113 = scmp.eq.s32.totalorder %s35, 0
      %p114 = por %p112, %p113
      %p115 = scmp.ne.s32.totalorder %s103, %s104
      %p116 = scmp.eq.s32.totalorder %s36, 5
      %p117 = por %p115, %p116
      %p119 = scmp.ne.s32.totalorder %s104, %s118
      %p120 = scmp.eq.s32.totalorder %s36, 0
      %p121 = por %p119, %p120
      %s122 = ssub.s32 %s30, %s37
      %p123 = scmp.eq.s32.totalorder %s122, 0
      %s125 = sadd.s32 %s124, 1
      %s126 = scalar_select %p123, %s124, %s125
      %p129 = pneg %p123
      %p130 = scmp.eq.s32.totalorder %s30, 5
      %p131 = por %p129, %p130
      %p132 = scmp.ne.s32.totalorder %s124, %s127
      %p133 = scmp.eq.s32.totalorder %s30, 0
      %p134 = por %p132, %p133
      %p135 = scmp.ne.s32.totalorder %s124, %s127
      %p136 = scmp.eq.s32.totalorder %s35, 5
      %p137 = por %p135, %p136
      %p138 = scmp.ne.s32.totalorder %s127, %s128
      %p139 = scmp.eq.s32.totalorder %s35, 0
      %p140 = por %p138, %p139
      %p141 = scmp.ne.s32.totalorder %s127, %s128
      %p142 = scmp.eq.s32.totalorder %s36, 5
      %p143 = por %p141, %p142
      %p145 = scmp.ne.s32.totalorder %s128, %s144
      %p146 = scmp.eq.s32.totalorder %s36, 0
      %p147 = por %p145, %p146
      %s148 = ssub.s32 %s30, %s37
      %p149 = scmp.eq.s32.totalorder %s148, 0
      %s151 = sadd.s32 %s150, 1
      %s152 = scalar_select %p149, %s150, %s151
      %p155 = pneg %p149
      %p156 = scmp.eq.s32.totalorder %s30, 5
      %p157 = por %p155, %p156
      %p158 = scmp.ne.s32.totalorder %s150, %s153
      %p159 = scmp.eq.s32.totalorder %s30, 0
      %p160 = por %p158, %p159
      %p161 = scmp.ne.s32.totalorder %s150, %s153
      %p162 = scmp.eq.s32.totalorder %s35, 5
      %p163 = por %p161, %p162
      %p164 = scmp.ne.s32.totalorder %s153, %s154
      %p165 = scmp.eq.s32.totalorder %s35, 0
      %p166 = por %p164, %p165
      %p167 = scmp.ne.s32.totalorder %s153, %s154
      %p168 = scmp.eq.s32.totalorder %s36, 5
      %p169 = por %p167, %p168
      %p171 = scmp.ne.s32.totalorder %s154, %s170
      %p172 = scmp.eq.s32.totalorder %s36, 0
      %p173 = por %p171, %p172
      %s174 = ssub.s32 %s30, %s37
      %p175 = scmp.eq.s32.totalorder %s174, 0
      %s177 = sadd.s32 %s176, 1
      %s178 = scalar_select %p175, %s176, %s177
      %p181 = pneg %p175
      %p182 = scmp.eq.s32.totalorder %s30, 5
      %p183 = por %p181, %p182
      %p184 = scmp.ne.s32.totalorder %s176, %s179
      %p185 = scmp.eq.s32.totalorder %s30, 0
      %p186 = por %p184, %p185
      %p187 = scmp.ne.s32.totalorder %s176, %s179
      %p188 = scmp.eq.s32.totalorder %s35, 5
      %p189 = por %p187, %p188
      %p190 = scmp.ne.s32.totalorder %s179, %s180
      %p191 = scmp.eq.s32.totalorder %s35, 0
      %p192 = por %p190, %p191
      %p193 = scmp.ne.s32.totalorder %s179, %s180
      %p194 = scmp.eq.s32.totalorder %s36, 5
      %p195 = por %p193, %p194
      %p197 = scmp.ne.s32.totalorder %s180, %s196
      %p198 = scmp.eq.s32.totalorder %s36, 0
      %p199 = por %p197, %p198
      %s200 = ssub.s32 %s30, %s37
      %p201 = scmp.eq.s32.totalorder %s200, 0
      %s203 = sadd.s32 %s202, 1
      %s204 = scalar_select %p201, %s202, %s203
      %p207 = pneg %p201
      %p208 = scmp.eq.s32.totalorder %s30, 5
      %p209 = por %p207, %p208
      %p210 = scmp.ne.s32.totalorder %s202, %s205
      %p211 = scmp.eq.s32.totalorder %s30, 0
      %p212 = por %p210, %p211
      %p213 = scmp.ne.s32.totalorder %s202, %s205
      %p214 = scmp.eq.s32.totalorder %s35, 5
      %p215 = por %p213, %p214
      %p216 = scmp.ne.s32.totalorder %s205, %s206
      %p217 = scmp.eq.s32.totalorder %s35, 0
      %p218 = por %p216, %p217
      %p219 = scmp.ne.s32.totalorder %s205, %s206
      %p220 = scmp.eq.s32.totalorder %s36, 5
      %p221 = por %p219, %p220
      %p223 = scmp.ne.s32.totalorder %s206, %s222
      %p224 = scmp.eq.s32.totalorder %s36, 0
      %p225 = por %p223, %p224
      %s226 = ssub.s32 %s30, %s37
      %p227 = scmp.eq.s32.totalorder %s226, 0
      %s229 = sadd.s32 %s228, 1
      %s230 = scalar_select %p227, %s228, %s229
      %p233 = pneg %p227
      %p234 = scmp.eq.s32.totalorder %s30, 5
      %p235 = por %p233, %p234
      %p236 = scmp.ne.s32.totalorder %s228, %s231
      %p237 = scmp.eq.s32.totalorder %s30, 0
      %p238 = por %p236, %p237
      %p239 = scmp.ne.s32.totalorder %s228, %s231
      %p240 = scmp.eq.s32.totalorder %s35, 5
      %p241 = por %p239, %p240
      %p242 = scmp.ne.s32.totalorder %s231, %s232
      %p243 = scmp.eq.s32.totalorder %s35, 0
      %p244 = por %p242, %p243
      %p245 = scmp.ne.s32.totalorder %s231, %s232
      %p246 = scmp.eq.s32.totalorder %s36, 5
      %p247 = por %p245, %p246
      %p249 = scmp.ne.s32.totalorder %s232, %s248
      %p250 = scmp.eq.s32.totalorder %s36, 0
      %p251 = por %p249, %p250
      %s252 = ssub.s32 %s30, %s37
      %p253 = scmp.eq.s32.totalorder %s252, 0
      %s255 = sadd.s32 %s254, 1
      %s256 = scalar_select %p253, %s254, %s255
      %p259 = pneg %p253
      %p260 = scmp.eq.s32.totalorder %s30, 5
      %p261 = por %p259, %p260
      %p262 = scmp.ne.s32.totalorder %s254, %s257
      %p263 = scmp.eq.s32.totalorder %s30, 0
      %p264 = por %p262, %p263
      %p265 = scmp.ne.s32.totalorder %s254, %s257
      %p266 = scmp.eq.s32.totalorder %s35, 5
      %p267 = por %p265, %p266
      %p268 = scmp.ne.s32.totalorder %s257, %s258
      %p269 = scmp.eq.s32.totalorder %s35, 0
      %p270 = por %p268, %p269
      %p271 = scmp.ne.s32.totalorder %s257, %s258
      %p272 = scmp.eq.s32.totalorder %s36, 5
      %p273 = por %p271, %p272
      %p275 = scmp.ne.s32.totalorder %s258, %s274
      %p276 = scmp.eq.s32.totalorder %s36, 0
      %p277 = por %p275, %p276
      %s278 = ssub.s32 %s30, %s37
      %p279 = scmp.eq.s32.totalorder %s278, 0
      %s281 = sadd.s32 %s280, 1
      %s282 = scalar_select %p279, %s280, %s281
      %p285 = pneg %p279
      %p286 = scmp.eq.s32.totalorder %s30, 5
      %p287 = por %p285, %p286
      %p288 = scmp.ne.s32.totalorder %s280, %s283
      %p289 = scmp.eq.s32.totalorder %s30, 0
      %p290 = por %p288, %p289
      %p291 = scmp.ne.s32.totalorder %s280, %s283
      %p292 = scmp.eq.s32.totalorder %s35, 5
      %p293 = por %p291, %p292
      %p294 = scmp.ne.s32.totalorder %s283, %s284
      %p295 = scmp.eq.s32.totalorder %s35, 0
      %p296 = por %p294, %p295
      %p297 = scmp.ne.s32.totalorder %s283, %s284
      %p298 = scmp.eq.s32.totalorder %s36, 5
      %p299 = por %p297, %p298
      %p301 = scmp.ne.s32.totalorder %s284, %s300
      %p302 = scmp.eq.s32.totalorder %s36, 0
      %p303 = por %p301, %p302
      %s304 = ssub.s32 %s30, %s37
      %p305 = scmp.eq.s32.totalorder %s304, 0
      %s307 = sadd.s32 %s306, 1
      %s308 = scalar_select %p305, %s306, %s307
      %p311 = pneg %p305
      %p312 = scmp.eq.s32.totalorder %s30, 5
      %p313 = por %p311, %p312
      %p314 = scmp.ne.s32.totalorder %s306, %s309
      %p315 = scmp.eq.s32.totalorder %s30, 0
      %p316 = por %p314, %p315
      %p317 = scmp.ne.s32.totalorder %s306, %s309
      %p318 = scmp.eq.s32.totalorder %s35, 5
      %p319 = por %p317, %p318
      %p320 = scmp.ne.s32.totalorder %s309, %s310
      %p321 = scmp.eq.s32.totalorder %s35, 0
      %p322 = por %p320, %p321
      %p323 = scmp.ne.s32.totalorder %s309, %s310
      %p324 = scmp.eq.s32.totalorder %s36, 5
      %p325 = por %p323, %p324
      %p327 = scmp.ne.s32.totalorder %s310, %s326
      %p328 = scmp.eq.s32.totalorder %s36, 0
      %p329 = por %p327, %p328
      %s330 = ssub.s32 %s30, %s37
      %p331 = scmp.eq.s32.totalorder %s330, 0
      %s333 = sadd.s32 %s332, 1
      %s334 = scalar_select %p331, %s332, %s333
      %p337 = pneg %p331
      %p338 = scmp.eq.s32.totalorder %s30, 5
      %p339 = por %p337, %p338
      %p340 = scmp.ne.s32.totalorder %s332, %s335
      %p341 = scmp.eq.s32.totalorder %s30, 0
      %p342 = por %p340, %p341
      %p343 = scmp.ne.s32.totalorder %s332, %s335
      %p344 = scmp.eq.s32.totalorder %s35, 5
      %p345 = por %p343, %p344
      %p346 = scmp.ne.s32.totalorder %s335, %s336
      %p347 = scmp.eq.s32.totalorder %s35, 0
      %p348 = por %p346, %p347
      %p349 = scmp.ne.s32.totalorder %s335, %s336
      %p350 = scmp.eq.s32.totalorder %s36, 5
      %p351 = por %p349, %p350
      %p353 = scmp.ne.s32.totalorder %s336, %s352
      %p354 = scmp.eq.s32.totalorder %s36, 0
      %p355 = por %p353, %p354
      %s356 = ssub.s32 %s30, %s37
      %p357 = scmp.eq.s32.totalorder %s356, 0
      %s359 = sadd.s32 %s358, 1
      %s360 = scalar_select %p357, %s358, %s359
      %p363 = pneg %p357
      %p364 = scmp.eq.s32.totalorder %s30, 5
      %p365 = por %p363, %p364
      %p366 = scmp.ne.s32.totalorder %s358, %s361
      %p367 = scmp.eq.s32.totalorder %s30, 0
      %p368 = por %p366, %p367
      %p369 = scmp.ne.s32.totalorder %s358, %s361
      %p370 = scmp.eq.s32.totalorder %s35, 5
      %p371 = por %p369, %p370
      %p372 = scmp.ne.s32.totalorder %s361, %s362
      %p373 = scmp.eq.s32.totalorder %s35, 0
      %p374 = por %p372, %p373
      %p375 = scmp.ne.s32.totalorder %s361, %s362
      %p376 = scmp.eq.s32.totalorder %s36, 5
      %p377 = por %p375, %p376
      %p379 = scmp.ne.s32.totalorder %s362, %s378
      %p380 = scmp.eq.s32.totalorder %s36, 0
      %p381 = por %p379, %p380
      %s382 = ssub.s32 %s30, %s37
      %p383 = scmp.eq.s32.totalorder %s382, 0
      %s385 = sadd.s32 %s384, 1
      %s386 = scalar_select %p383, %s384, %s385
      %p389 = pneg %p383
      %p390 = scmp.eq.s32.totalorder %s30, 5
      %p391 = por %p389, %p390
      %p392 = scmp.ne.s32.totalorder %s384, %s387
      %p393 = scmp.eq.s32.totalorder %s30, 0
      %p394 = por %p392, %p393
      %p395 = scmp.ne.s32.totalorder %s384, %s387
      %p396 = scmp.eq.s32.totalorder %s35, 5
      %p397 = por %p395, %p396
      %p398 = scmp.ne.s32.totalorder %s387, %s388
      %p399 = scmp.eq.s32.totalorder %s35, 0
      %p400 = por %p398, %p399
      %p401 = scmp.ne.s32.totalorder %s387, %s388
      %p402 = scmp.eq.s32.totalorder %s36, 5
      %p403 = por %p401, %p402
      %p405 = scmp.ne.s32.totalorder %s388, %s404
      %p406 = scmp.eq.s32.totalorder %s36, 0
      %p407 = por %p405, %p406
      %s408 = ssub.s32 %s30, %s37
      %p409 = scmp.eq.s32.totalorder %s408, 0
      %s411 = sadd.s32 %s410, 1
      %s412 = scalar_select %p409, %s410, %s411
      %p415 = pneg %p409
      %p416 = scmp.eq.s32.totalorder %s30, 5
      %p417 = por %p415, %p416
      %p418 = scmp.ne.s32.totalorder %s410, %s413
      %p419 = scmp.eq.s32.totalorder %s30, 0
      %p420 = por %p418, %p419
      %p421 = scmp.ne.s32.totalorder %s410, %s413
      %p422 = scmp.eq.s32.totalorder %s35, 5
      %p423 = por %p421, %p422
      %p424 = scmp.ne.s32.totalorder %s413, %s414
      %p425 = scmp.eq.s32.totalorder %s35, 0
      %p426 = por %p424, %p425
      %p427 = scmp.ne.s32.totalorder %s413, %s414
      %p428 = scmp.eq.s32.totalorder %s36, 5
      %p429 = por %p427, %p428
      %p431 = scmp.ne.s32.totalorder %s414, %s430
      %p432 = scmp.eq.s32.totalorder %s36, 0
      %p433 = por %p431, %p432
      %s435 = sadd.s32 %s434, 1
      %p438 = scmp.eq.s32.totalorder %s30, 5
      %p439 = scmp.ne.s32.totalorder %s434, %s436
      %p440 = scmp.eq.s32.totalorder %s30, 0
      %p441 = por %p439, %p440
      %p442 = scmp.ne.s32.totalorder %s434, %s436
      %p443 = scmp.eq.s32.totalorder %s35, 5
      %p444 = por %p442, %p443
      %p445 = scmp.ne.s32.totalorder %s436, %s437
      %p446 = scmp.eq.s32.totalorder %s35, 0
      %p447 = por %p445, %p446
      %p448 = scmp.ne.s32.totalorder %s436, %s437
      %p449 = scmp.eq.s32.totalorder %s36, 5
      %p450 = por %p448, %p449
      %p452 = scmp.ne.s32.totalorder %s437, %s451
      %p453 = scmp.eq.s32.totalorder %s36, 0
      %p454 = por %p452, %p453
      %s456 = sadd.s32 %s455, 1
      %p459 = scmp.eq.s32.totalorder %s30, 5
      %p460 = scmp.ne.s32.totalorder %s455, %s457
      %p461 = scmp.eq.s32.totalorder %s30, 0
      %p462 = por %p460, %p461
      %p463 = scmp.ne.s32.totalorder %s455, %s457
      %p464 = scmp.eq.s32.totalorder %s35, 5
      %p465 = por %p463, %p464
      %p466 = scmp.ne.s32.totalorder %s457, %s458
      %p467 = scmp.eq.s32.totalorder %s35, 0
      %p468 = por %p466, %p467
      %p469 = scmp.ne.s32.totalorder %s457, %s458
      %p470 = scmp.eq.s32.totalorder %s36, 5
      %p471 = por %p469, %p470
      %p473 = scmp.ne.s32.totalorder %s458, %s472
      %p474 = scmp.eq.s32.totalorder %s36, 0
      %p475 = por %p473, %p474
      %s477 = sadd.s32 %s476, 1
      %p480 = scmp.eq.s32.totalorder %s30, 5
      %p481 = scmp.ne.s32.totalorder %s476, %s478
      %p482 = scmp.eq.s32.totalorder %s30, 0
      %p483 = por %p481, %p482
      %p484 = scmp.ne.s32.totalorder %s476, %s478
      %p485 = scmp.eq.s32.totalorder %s35, 5
      %p486 = por %p484, %p485
      %p487 = scmp.ne.s32.totalorder %s478, %s479
      %p488 = scmp.eq.s32.totalorder %s35, 0
      %p489 = por %p487, %p488
      %p490 = scmp.ne.s32.totalorder %s478, %s479
      %p491 = scmp.eq.s32.totalorder %s36, 5
      %p492 = por %p490, %p491
      %p494 = scmp.ne.s32.totalorder %s479, %s493
      %p495 = scmp.eq.s32.totalorder %s36, 0
      %p496 = por %p494, %p495
      %s498 = sadd.s32 %s497, 1
      %p501 = scmp.eq.s32.totalorder %s30, 5
      %p502 = scmp.ne.s32.totalorder %s497, %s499
      %p503 = scmp.eq.s32.totalorder %s30, 0
      %p504 = por %p502, %p503
      %p505 = scmp.ne.s32.totalorder %s497, %s499
      %p506 = scmp.eq.s32.totalorder %s35, 5
      %p507 = por %p505, %p506
      %p508 = scmp.ne.s32.totalorder %s499, %s500
      %p509 = scmp.eq.s32.totalorder %s35, 0
      %p510 = por %p508, %p509
      %p511 = scmp.ne.s32.totalorder %s499, %s500
      %p512 = scmp.eq.s32.totalorder %s36, 5
      %p513 = por %p511, %p512
      %p515 = scmp.ne.s32.totalorder %s500, %s514
      %p516 = scmp.eq.s32.totalorder %s36, 0
      %p517 = por %p515, %p516
      %s519 = sadd.s32 %s518, 1
      %p522 = scmp.eq.s32.totalorder %s30, 5
      %p523 = scmp.ne.s32.totalorder %s518, %s520
      %p524 = scmp.eq.s32.totalorder %s30, 0
      %p525 = por %p523, %p524
      %p526 = scmp.ne.s32.totalorder %s518, %s520
      %p527 = scmp.eq.s32.totalorder %s35, 5
      %p528 = por %p526, %p527
      %p529 = scmp.ne.s32.totalorder %s520, %s521
      %p530 = scmp.eq.s32.totalorder %s35, 0
      %p531 = por %p529, %p530
      %p532 = scmp.ne.s32.totalorder %s520, %s521
      %p533 = scmp.eq.s32.totalorder %s36, 5
      %p534 = por %p532, %p533
      %p536 = scmp.ne.s32.totalorder %s521, %s535
      %p537 = scmp.eq.s32.totalorder %s36, 0
      %p538 = por %p536, %p537
      %p539 = scmp.le.s32.totalorder 1, %s30
      %p540 = scmp.lt.s32.totalorder %s30, 7
      %p541 = pnand %p539, %p540
      %p542 = pneg %p541
      // Predicated region
      $region9: #{transformer_sentence_forward.1} parent=5 // pred_check
        _
      $region10: #{transformer_sentence_forward.1} parent=5 // pred_check_branch
        %544 = sbr.rel (%p541) target = $region12
      $region11: #{transformer_sentence_forward.1} parent=5 // pred_region
        %s545 = ssub.s32 %s30, 1
        // Predicated region
        $region13: #{transformer_sentence_forward.1} parent=11 // pred_check
          %p546 = pneg %p51
        $region14: #{transformer_sentence_forward.1} parent=11 // pred_check_branch
          %548 = sbr.rel (%p546) target = $region16
        $region15: #{transformer_sentence_forward.1} parent=11 // pred_region
          _
        $region16: #{transformer_sentence_forward.1} parent=11 // pred_fallthru
          _
        // Predicated region
        $region17: #{transformer_sentence_forward.1} parent=11 // pred_check
          %p549 = pneg %p72
        $region18: #{transformer_sentence_forward.1} parent=11 // pred_check_branch
          %551 = sbr.rel (%p549) target = $region20
        $region19: #{transformer_sentence_forward.1} parent=11 // pred_region
          _
        $region20: #{transformer_sentence_forward.1} parent=11 // pred_fallthru
          _
        // Predicated region
        $region21: #{transformer_sentence_forward.1} parent=11 // pred_check
          %p552 = pneg %p93
        $region22: #{transformer_sentence_forward.1} parent=11 // pred_check_branch
          %554 = sbr.rel (%p552) target = $region24
        $region23: #{transformer_sentence_forward.1} parent=11 // pred_region
          %s556 = ssub.s32 16, 16
          %557 = vsyncadd [#allocation4], %s556
          %s559 = sshll.u32 [#allocation3], 4
          %s560 = int_to_ptr.vmem [resolvable:$true] %s559
          %562 = dma.hbm_to_vmem [thread:$0]  %s2, 16, %s560, [#allocation4]
        $region24: #{transformer_sentence_forward.1} parent=11 // pred_fallthru
          _
        // Predicated region
        $region25: #{transformer_sentence_forward.1} parent=11 // pred_check
          %p563 = pneg %p114
        $region26: #{transformer_sentence_forward.1} parent=11 // pred_check_branch
          %565 = sbr.rel (%p563) target = $region28
        $region27: #{transformer_sentence_forward.1} parent=11 // pred_region
          %s567 = ssub.s32 16, 16
          %568 = vsyncadd [#allocation7], %s567
          %s570 = sshll.u32 [#allocation6], 4
          %s571 = int_to_ptr.vmem [resolvable:$true] %s570
          %573 = dma.hbm_to_vmem [thread:$0]  %s3, 16, %s571, [#allocation7]
        $region28: #{transformer_sentence_forward.1} parent=11 // pred_fallthru
          _
        // Predicated region
        $region29: #{transformer_sentence_forward.1} parent=11 // pred_check
          %p574 = pneg %p447
        $region30: #{transformer_sentence_forward.1} parent=11 // pred_check_branch
          %576 = sbr.rel (%p574) target = $region32
        $region31: #{transformer_sentence_forward.1} parent=11 // pred_region
          %s578 = ssub.s32 2048, 2048
          %579 = vsyncadd [#allocation7], %s578
          %s580 = sshll.u32 [#allocation20], 4
          %s581 = int_to_ptr.vmem [resolvable:$true] %s580
          %586 = dma.hbm_to_vmem [thread:$0]  %s16, 2048, %s581, [#allocation7], 128, 128, 8
        $region32: #{transformer_sentence_forward.1} parent=11 // pred_fallthru
          _
        // Predicated region
        $region33: #{transformer_sentence_forward.1} parent=11 // pred_check
          %p587 = pneg %p468
        $region34: #{transformer_sentence_forward.1} parent=11 // pred_check_branch
          %589 = sbr.rel (%p587) target = $region36
        $region35: #{transformer_sentence_forward.1} parent=11 // pred_region
          %s591 = ssub.s32 16, 16
          %592 = vsyncadd [#allocation22], %s591
          %s594 = sshll.u32 [#allocation21], 4
          %s595 = int_to_ptr.vmem [resolvable:$true] %s594
          %597 = dma.hbm_to_vmem [thread:$0]  %s17, 16, %s595, [#allocation22]
        $region36: #{transformer_sentence_forward.1} parent=11 // pred_fallthru
          _
        // Predicated region
        $region37: #{transformer_sentence_forward.1} parent=11 // pred_check
          %p598 = pneg %p489
        $region38: #{transformer_sentence_forward.1} parent=11 // pred_check_branch
          %600 = sbr.rel (%p598) target = $region40
        $region39: #{transformer_sentence_forward.1} parent=11 // pred_region
          _
        $region40: #{transformer_sentence_forward.1} parent=11 // pred_fallthru
          _
        // Predicated region
        $region41: #{transformer_sentence_forward.1} parent=11 // pred_check
          %p601 = pneg %p510
        $region42: #{transformer_sentence_forward.1} parent=11 // pred_check_branch
          %603 = sbr.rel (%p601) target = $region44
        $region43: #{transformer_sentence_forward.1} parent=11 // pred_region
          _
        $region44: #{transformer_sentence_forward.1} parent=11 // pred_fallthru
          _
      $region12: #{transformer_sentence_forward.1} parent=5 // pred_fallthru
        _
      %p604 = scmp.lt.s32.totalorder %s30, 6
      // Predicated region
      $region45: #{transformer_sentence_forward.1} parent=5 // pred_check
        %p605 = pneg %p604
      $region46: #{transformer_sentence_forward.1} parent=5 // pred_check_branch
        %607 = sbr.rel (%p605) target = $region48
      $region47: #{transformer_sentence_forward.1} parent=5 // pred_region
        // Predicated region
        $region49: #{transformer_sentence_forward.1} parent=47 // pred_check
          %p608 = pneg %p134
        $region50: #{transformer_sentence_forward.1} parent=47 // pred_check_branch
          %610 = sbr.rel (%p608) target = $region52
        $region51: #{transformer_sentence_forward.1} parent=47 // pred_region
          %s611 = sand.u32 %s30, 1
          %s612 = scalar_lea.sflag [#allocation4], %s611
          %s613 = sand.u32 %s124, 1
          %s614 = smul.addr %s613, 384
          %s615 = scalar_lea.vmem [#allocation8], %s614
          %s617 = ssub.s32 6144, 6144
          %618 = vsyncadd %s612, %s617
          %s619 = smul.addr %s30, 48
          %s620 = smul.addr %s619, 128
          %s621 = scalar_lea.hbm %s4, %s620
          %s622 = sshll.u32 %s615, 4
          %s623 = int_to_ptr.vmem [resolvable:$true] %s622
          %628 = dma.hbm_to_vmem [thread:$0]  %s621, 6144, %s623, %s612, 384, 384, 24
        $region52: #{transformer_sentence_forward.1} parent=47 // pred_fallthru
          _
        // Predicated region
        $region53: #{transformer_sentence_forward.1} parent=47 // pred_check
          %p629 = pneg %p160
        $region54: #{transformer_sentence_forward.1} parent=47 // pred_check_branch
          %631 = sbr.rel (%p629) target = $region56
        $region55: #{transformer_sentence_forward.1} parent=47 // pred_region
          %s632 = sand.u32 %s30, 1
          %s633 = scalar_lea.sflag [#allocation4], %s632
          %s634 = sand.u32 %s150, 1
          %s635 = smul.addr %s634, 3
          %s636 = scalar_lea.vmem [#allocation9], %s635
          %s638 = ssub.s32 48, 48
          %639 = vsyncadd %s633, %s638
          %s640 = smul.addr %s30, 3
          %s641 = smul.addr %s640, 16
          %s642 = scalar_lea.hbm %s5, %s641
          %s644 = sshll.u32 %s636, 4
          %s645 = int_to_ptr.vmem [resolvable:$true] %s644
          %647 = dma.hbm_to_vmem [thread:$0]  %s642, 48, %s645, %s633
        $region56: #{transformer_sentence_forward.1} parent=47 // pred_fallthru
          _
        // Predicated region
        $region57: #{transformer_sentence_forward.1} parent=47 // pred_check
          %p648 = pneg %p186
        $region58: #{transformer_sentence_forward.1} parent=47 // pred_check_branch
          %650 = sbr.rel (%p648) target = $region60
        $region59: #{transformer_sentence_forward.1} parent=47 // pred_region
          %s651 = sand.u32 %s30, 1
          %s652 = scalar_lea.sflag [#allocation4], %s651
          %s653 = sand.u32 %s176, 1
          %s654 = smul.addr %s653, 128
          %s655 = scalar_lea.vmem [#allocation10], %s654
          %s657 = ssub.s32 2048, 2048
          %658 = vsyncadd %s652, %s657
          %s659 = smul.addr %s30, 16
          %s660 = smul.addr %s659, 128
          %s661 = scalar_lea.hbm %s6, %s660
          %s662 = sshll.u32 %s655, 4
          %s663 = int_to_ptr.vmem [resolvable:$true] %s662
          %668 = dma.hbm_to_vmem [thread:$0]  %s661, 2048, %s663, %s652, 128, 128, 8
        $region60: #{transformer_sentence_forward.1} parent=47 // pred_fallthru
          _
        // Predicated region
        $region61: #{transformer_sentence_forward.1} parent=47 // pred_check
          %p669 = pneg %p212
        $region62: #{transformer_sentence_forward.1} parent=47 // pred_check_branch
          %671 = sbr.rel (%p669) target = $region64
        $region63: #{transformer_sentence_forward.1} parent=47 // pred_region
          %s672 = sand.u32 %s30, 1
          %s673 = scalar_lea.sflag [#allocation4], %s672
          %s674 = sand.u32 %s202, 1
          %s675 = scalar_lea.vmem [#allocation11], %s674
          %s677 = ssub.s32 16, 16
          %678 = vsyncadd %s673, %s677
          %s679 = smul.addr %s30, 16
          %s680 = scalar_lea.hbm %s7, %s679
          %s682 = sshll.u32 %s675, 4
          %s683 = int_to_ptr.vmem [resolvable:$true] %s682
          %685 = dma.hbm_to_vmem [thread:$0]  %s680, 16, %s683, %s673
        $region64: #{transformer_sentence_forward.1} parent=47 // pred_fallthru
          _
        // Predicated region
        $region65: #{transformer_sentence_forward.1} parent=47 // pred_check
          %p686 = pneg %p238
        $region66: #{transformer_sentence_forward.1} parent=47 // pred_check_branch
          %688 = sbr.rel (%p686) target = $region68
        $region67: #{transformer_sentence_forward.1} parent=47 // pred_region
          %s689 = sand.u32 %s30, 1
          %s690 = scalar_lea.sflag [#allocation4], %s689
          %s691 = sand.u32 %s228, 1
          %s692 = scalar_lea.vmem [#allocation12], %s691
          %s694 = ssub.s32 16, 16
          %695 = vsyncadd %s690, %s694
          %s696 = smul.addr %s30, 16
          %s697 = scalar_lea.hbm %s8, %s696
          %s699 = sshll.u32 %s692, 4
          %s700 = int_to_ptr.vmem [resolvable:$true] %s699
          %702 = dma.hbm_to_vmem [thread:$0]  %s697, 16, %s700, %s690
        $region68: #{transformer_sentence_forward.1} parent=47 // pred_fallthru
          _
        // Predicated region
        $region69: #{transformer_sentence_forward.1} parent=47 // pred_check
          %p703 = pneg %p264
        $region70: #{transformer_sentence_forward.1} parent=47 // pred_check_branch
          %705 = sbr.rel (%p703) target = $region72
        $region71: #{transformer_sentence_forward.1} parent=47 // pred_region
          %s706 = sand.u32 %s30, 1
          %s707 = scalar_lea.sflag [#allocation4], %s706
          %s708 = sand.u32 %s254, 1
          %s709 = scalar_lea.vmem [#allocation13], %s708
          %s711 = ssub.s32 16, 16
          %712 = vsyncadd %s707, %s711
          %s713 = smul.addr %s30, 16
          %s714 = scalar_lea.hbm %s9, %s713
          %s716 = sshll.u32 %s709, 4
          %s717 = int_to_ptr.vmem [resolvable:$true] %s716
          %719 = dma.hbm_to_vmem [thread:$0]  %s714, 16, %s717, %s707
        $region72: #{transformer_sentence_forward.1} parent=47 // pred_fallthru
          _
        // Predicated region
        $region73: #{transformer_sentence_forward.1} parent=47 // pred_check
          %p720 = pneg %p290
        $region74: #{transformer_sentence_forward.1} parent=47 // pred_check_branch
          %722 = sbr.rel (%p720) target = $region76
        $region75: #{transformer_sentence_forward.1} parent=47 // pred_region
          %s723 = sand.u32 %s30, 1
          %s724 = scalar_lea.sflag [#allocation4], %s723
          %s725 = sand.u32 %s280, 1
          %s726 = smul.addr %s725, 256
          %s727 = scalar_lea.vmem [#allocation14], %s726
          %s729 = ssub.s32 4096, 4096
          %730 = vsyncadd %s724, %s729
          %s731 = smul.addr %s30, 32
          %s732 = smul.addr %s731, 128
          %s733 = scalar_lea.hbm %s10, %s732
          %s734 = sshll.u32 %s727, 4
          %s735 = int_to_ptr.vmem [resolvable:$true] %s734
          %740 = dma.hbm_to_vmem [thread:$0]  %s733, 4096, %s735, %s724, 256, 256, 16
        $region76: #{transformer_sentence_forward.1} parent=47 // pred_fallthru
          _
        // Predicated region
        $region77: #{transformer_sentence_forward.1} parent=47 // pred_check
          %p741 = pneg %p316
        $region78: #{transformer_sentence_forward.1} parent=47 // pred_check_branch
          %743 = sbr.rel (%p741) target = $region80
        $region79: #{transformer_sentence_forward.1} parent=47 // pred_region
          %s744 = sand.u32 %s30, 1
          %s745 = scalar_lea.sflag [#allocation4], %s744
          %s746 = sand.u32 %s306, 1
          %s747 = smul.addr %s746, 2
          %s748 = scalar_lea.vmem [#allocation15], %s747
          %s750 = ssub.s32 32, 32
          %751 = vsyncadd %s745, %s750
          %s752 = smul.addr %s30, 2
          %s753 = smul.addr %s752, 16
          %s754 = scalar_lea.hbm %s11, %s753
          %s756 = sshll.u32 %s748, 4
          %s757 = int_to_ptr.vmem [resolvable:$true] %s756
          %759 = dma.hbm_to_vmem [thread:$0]  %s754, 32, %s757, %s745
        $region80: #{transformer_sentence_forward.1} parent=47 // pred_fallthru
          _
        // Predicated region
        $region81: #{transformer_sentence_forward.1} parent=47 // pred_check
          %p760 = pneg %p342
        $region82: #{transformer_sentence_forward.1} parent=47 // pred_check_branch
          %762 = sbr.rel (%p760) target = $region84
        $region83: #{transformer_sentence_forward.1} parent=47 // pred_region
          %s763 = sand.u32 %s30, 1
          %s764 = scalar_lea.sflag [#allocation4], %s763
          %s765 = sand.u32 %s332, 1
          %s766 = smul.addr %s765, 256
          %s767 = scalar_lea.vmem [#allocation16], %s766
          %s769 = ssub.s32 4096, 4096
          %770 = vsyncadd %s764, %s769
          %s771 = smul.addr %s30, 32
          %s772 = smul.addr %s771, 128
          %s773 = scalar_lea.hbm %s12, %s772
          %s774 = sshll.u32 %s767, 4
          %s775 = int_to_ptr.vmem [resolvable:$true] %s774
          %780 = dma.hbm_to_vmem [thread:$0]  %s773, 4096, %s775, %s764, 128, 128, 8
        $region84: #{transformer_sentence_forward.1} parent=47 // pred_fallthru
          _
        // Predicated region
        $region85: #{transformer_sentence_forward.1} parent=47 // pred_check
          %p781 = pneg %p368
        $region86: #{transformer_sentence_forward.1} parent=47 // pred_check_branch
          %783 = sbr.rel (%p781) target = $region88
        $region87: #{transformer_sentence_forward.1} parent=47 // pred_region
          %s784 = sand.u32 %s30, 1
          %s785 = scalar_lea.sflag [#allocation4], %s784
          %s786 = sand.u32 %s358, 1
          %s787 = scalar_lea.vmem [#allocation17], %s786
          %s789 = ssub.s32 16, 16
          %790 = vsyncadd %s785, %s789
          %s791 = smul.addr %s30, 16
          %s792 = scalar_lea.hbm %s13, %s791
          %s794 = sshll.u32 %s787, 4
          %s795 = int_to_ptr.vmem [resolvable:$true] %s794
          %797 = dma.hbm_to_vmem [thread:$0]  %s792, 16, %s795, %s785
        $region88: #{transformer_sentence_forward.1} parent=47 // pred_fallthru
          _
        // Predicated region
        $region89: #{transformer_sentence_forward.1} parent=47 // pred_check
          %p798 = pneg %p394
        $region90: #{transformer_sentence_forward.1} parent=47 // pred_check_branch
          %800 = sbr.rel (%p798) target = $region92
        $region91: #{transformer_sentence_forward.1} parent=47 // pred_region
          %s801 = sand.u32 %s30, 1
          %s802 = scalar_lea.sflag [#allocation4], %s801
          %s803 = sand.u32 %s384, 1
          %s804 = scalar_lea.vmem [#allocation18], %s803
          %s806 = ssub.s32 16, 16
          %807 = vsyncadd %s802, %s806
          %s808 = smul.addr %s30, 16
          %s809 = scalar_lea.hbm %s14, %s808
          %s811 = sshll.u32 %s804, 4
          %s812 = int_to_ptr.vmem [resolvable:$true] %s811
          %814 = dma.hbm_to_vmem [thread:$0]  %s809, 16, %s812, %s802
        $region92: #{transformer_sentence_forward.1} parent=47 // pred_fallthru
          _
        // Predicated region
        $region93: #{transformer_sentence_forward.1} parent=47 // pred_check
          %p815 = pneg %p420
        $region94: #{transformer_sentence_forward.1} parent=47 // pred_check_branch
          %817 = sbr.rel (%p815) target = $region96
        $region95: #{transformer_sentence_forward.1} parent=47 // pred_region
          %s818 = sand.u32 %s30, 1
          %s819 = scalar_lea.sflag [#allocation4], %s818
          %s820 = sand.u32 %s410, 1
          %s821 = scalar_lea.vmem [#allocation19], %s820
          %s823 = ssub.s32 16, 16
          %824 = vsyncadd %s819, %s823
          %s825 = smul.addr %s30, 16
          %s826 = scalar_lea.hbm %s15, %s825
          %s828 = sshll.u32 %s821, 4
          %s829 = int_to_ptr.vmem [resolvable:$true] %s828
          %831 = dma.hbm_to_vmem [thread:$0]  %s826, 16, %s829, %s819
        $region96: #{transformer_sentence_forward.1} parent=47 // pred_fallthru
          _
      $region48: #{transformer_sentence_forward.1} parent=5 // pred_fallthru
        _
      %p832 = scmp.le.s32.totalorder 1, %s30
      %p833 = scmp.lt.s32.totalorder %s30, 7
      %p834 = pnand %p832, %p833
      %p835 = pneg %p834
      // Predicated region
      $region97: #{transformer_sentence_forward.1} parent=5 // pred_check
        _
      $region98: #{transformer_sentence_forward.1} parent=5 // pred_check_branch
        %837 = sbr.rel (%p834) target = $region100
      $region99: #{transformer_sentence_forward.1} parent=5 // pred_region
        %s838 = ssub.s32 %s30, 1
        // Predicated region
        $region101: #{transformer_sentence_forward.1} parent=99 // pred_check
          %p839 = pneg %p93
        $region102: #{transformer_sentence_forward.1} parent=99 // pred_check_branch
          %841 = sbr.rel (%p839) target = $region104
        $region103: #{transformer_sentence_forward.1} parent=99 // pred_region
          %842 = dma.done [#allocation4], 16
        $region104: #{transformer_sentence_forward.1} parent=99 // pred_fallthru
          _
        // Predicated region
        $region105: #{transformer_sentence_forward.1} parent=99 // pred_check
          %p843 = pneg %p114
        $region106: #{transformer_sentence_forward.1} parent=99 // pred_check_branch
          %845 = sbr.rel (%p843) target = $region108
        $region107: #{transformer_sentence_forward.1} parent=99 // pred_region
          %846 = dma.done [#allocation7], 16
        $region108: #{transformer_sentence_forward.1} parent=99 // pred_fallthru
          _
        %s847 = sand.u32 %s35, 1
        %s848 = scalar_lea.sflag [#allocation4], %s847
        %s849 = sand.u32 %s127, 1
        %s850 = smul.addr %s849, 384
        %s851 = scalar_lea.vmem [#allocation8], %s850
        // Predicated region
        $region109: #{transformer_sentence_forward.1} parent=99 // pred_check
          %p852 = pneg %p140
        $region110: #{transformer_sentence_forward.1} parent=99 // pred_check_branch
          %854 = sbr.rel (%p852) target = $region112
        $region111: #{transformer_sentence_forward.1} parent=99 // pred_region
          %855 = dma.done %s848, 6144
        $region112: #{transformer_sentence_forward.1} parent=99 // pred_fallthru
          _
        %s856 = sand.u32 %s35, 1
        %s857 = scalar_lea.sflag [#allocation4], %s856
        %s858 = sand.u32 %s153, 1
        %s859 = smul.addr %s858, 3
        %s860 = scalar_lea.vmem [#allocation9], %s859
        // Predicated region
        $region113: #{transformer_sentence_forward.1} parent=99 // pred_check
          %p861 = pneg %p166
        $region114: #{transformer_sentence_forward.1} parent=99 // pred_check_branch
          %863 = sbr.rel (%p861) target = $region116
        $region115: #{transformer_sentence_forward.1} parent=99 // pred_region
          %864 = dma.done %s857, 48
        $region116: #{transformer_sentence_forward.1} parent=99 // pred_fallthru
          _
        %s865 = sand.u32 %s35, 1
        %s866 = scalar_lea.sflag [#allocation4], %s865
        %s867 = sand.u32 %s179, 1
        %s868 = smul.addr %s867, 128
        %s869 = scalar_lea.vmem [#allocation10], %s868
        // Predicated region
        $region117: #{transformer_sentence_forward.1} parent=99 // pred_check
          %p870 = pneg %p192
        $region118: #{transformer_sentence_forward.1} parent=99 // pred_check_branch
          %872 = sbr.rel (%p870) target = $region120
        $region119: #{transformer_sentence_forward.1} parent=99 // pred_region
          %873 = dma.done %s866, 2048
        $region120: #{transformer_sentence_forward.1} parent=99 // pred_fallthru
          _
        %s874 = sand.u32 %s35, 1
        %s875 = scalar_lea.sflag [#allocation4], %s874
        %s876 = sand.u32 %s205, 1
        %s877 = scalar_lea.vmem [#allocation11], %s876
        // Predicated region
        $region121: #{transformer_sentence_forward.1} parent=99 // pred_check
          %p878 = pneg %p218
        $region122: #{transformer_sentence_forward.1} parent=99 // pred_check_branch
          %880 = sbr.rel (%p878) target = $region124
        $region123: #{transformer_sentence_forward.1} parent=99 // pred_region
          %881 = dma.done %s875, 16
        $region124: #{transformer_sentence_forward.1} parent=99 // pred_fallthru
          _
        %s882 = sand.u32 %s35, 1
        %s883 = scalar_lea.sflag [#allocation4], %s882
        %s884 = sand.u32 %s231, 1
        %s885 = scalar_lea.vmem [#allocation12], %s884
        // Predicated region
        $region125: #{transformer_sentence_forward.1} parent=99 // pred_check
          %p886 = pneg %p244
        $region126: #{transformer_sentence_forward.1} parent=99 // pred_check_branch
          %888 = sbr.rel (%p886) target = $region128
        $region127: #{transformer_sentence_forward.1} parent=99 // pred_region
          %889 = dma.done %s883, 16
        $region128: #{transformer_sentence_forward.1} parent=99 // pred_fallthru
          _
        %s890 = sand.u32 %s35, 1
        %s891 = scalar_lea.sflag [#allocation4], %s890
        %s892 = sand.u32 %s257, 1
        %s893 = scalar_lea.vmem [#allocation13], %s892
        // Predicated region
        $region129: #{transformer_sentence_forward.1} parent=99 // pred_check
          %p894 = pneg %p270
        $region130: #{transformer_sentence_forward.1} parent=99 // pred_check_branch
          %896 = sbr.rel (%p894) target = $region132
        $region131: #{transformer_sentence_forward.1} parent=99 // pred_region
          %897 = dma.done %s891, 16
        $region132: #{transformer_sentence_forward.1} parent=99 // pred_fallthru
          _
        %s898 = sand.u32 %s35, 1
        %s899 = scalar_lea.sflag [#allocation4], %s898
        %s900 = sand.u32 %s283, 1
        %s901 = smul.addr %s900, 256
        %s902 = scalar_lea.vmem [#allocation14], %s901
        // Predicated region
        $region133: #{transformer_sentence_forward.1} parent=99 // pred_check
          %p903 = pneg %p296
        $region134: #{transformer_sentence_forward.1} parent=99 // pred_check_branch
          %905 = sbr.rel (%p903) target = $region136
        $region135: #{transformer_sentence_forward.1} parent=99 // pred_region
          %906 = dma.done %s899, 4096
        $region136: #{transformer_sentence_forward.1} parent=99 // pred_fallthru
          _
        %s907 = sand.u32 %s35, 1
        %s908 = scalar_lea.sflag [#allocation4], %s907
        %s909 = sand.u32 %s309, 1
        %s910 = smul.addr %s909, 2
        %s911 = scalar_lea.vmem [#allocation15], %s910
        // Predicated region
        $region137: #{transformer_sentence_forward.1} parent=99 // pred_check
          %p912 = pneg %p322
        $region138: #{transformer_sentence_forward.1} parent=99 // pred_check_branch
          %914 = sbr.rel (%p912) target = $region140
        $region139: #{transformer_sentence_forward.1} parent=99 // pred_region
          %915 = dma.done %s908, 32
        $region140: #{transformer_sentence_forward.1} parent=99 // pred_fallthru
          _
        %s916 = sand.u32 %s35, 1
        %s917 = scalar_lea.sflag [#allocation4], %s916
        %s918 = sand.u32 %s335, 1
        %s919 = smul.addr %s918, 256
        %s920 = scalar_lea.vmem [#allocation16], %s919
        // Predicated region
        $region141: #{transformer_sentence_forward.1} parent=99 // pred_check
          %p921 = pneg %p348
        $region142: #{transformer_sentence_forward.1} parent=99 // pred_check_branch
          %923 = sbr.rel (%p921) target = $region144
        $region143: #{transformer_sentence_forward.1} parent=99 // pred_region
          %924 = dma.done %s917, 4096
        $region144: #{transformer_sentence_forward.1} parent=99 // pred_fallthru
          _
        %s925 = sand.u32 %s35, 1
        %s926 = scalar_lea.sflag [#allocation4], %s925
        %s927 = sand.u32 %s361, 1
        %s928 = scalar_lea.vmem [#allocation17], %s927
        // Predicated region
        $region145: #{transformer_sentence_forward.1} parent=99 // pred_check
          %p929 = pneg %p374
        $region146: #{transformer_sentence_forward.1} parent=99 // pred_check_branch
          %931 = sbr.rel (%p929) target = $region148
        $region147: #{transformer_sentence_forward.1} parent=99 // pred_region
          %932 = dma.done %s926, 16
        $region148: #{transformer_sentence_forward.1} parent=99 // pred_fallthru
          _
        %s933 = sand.u32 %s35, 1
        %s934 = scalar_lea.sflag [#allocation4], %s933
        %s935 = sand.u32 %s387, 1
        %s936 = scalar_lea.vmem [#allocation18], %s935
        // Predicated region
        $region149: #{transformer_sentence_forward.1} parent=99 // pred_check
          %p937 = pneg %p400
        $region150: #{transformer_sentence_forward.1} parent=99 // pred_check_branch
          %939 = sbr.rel (%p937) target = $region152
        $region151: #{transformer_sentence_forward.1} parent=99 // pred_region
          %940 = dma.done %s934, 16
        $region152: #{transformer_sentence_forward.1} parent=99 // pred_fallthru
          _
        %s941 = sand.u32 %s35, 1
        %s942 = scalar_lea.sflag [#allocation4], %s941
        %s943 = sand.u32 %s413, 1
        %s944 = scalar_lea.vmem [#allocation19], %s943
        // Predicated region
        $region153: #{transformer_sentence_forward.1} parent=99 // pred_check
          %p945 = pneg %p426
        $region154: #{transformer_sentence_forward.1} parent=99 // pred_check_branch
          %947 = sbr.rel (%p945) target = $region156
        $region155: #{transformer_sentence_forward.1} parent=99 // pred_region
          %948 = dma.done %s942, 16
        $region156: #{transformer_sentence_forward.1} parent=99 // pred_fallthru
          _
        // Predicated region
        $region157: #{transformer_sentence_forward.1} parent=99 // pred_check
          %p949 = pneg %p447
        $region158: #{transformer_sentence_forward.1} parent=99 // pred_check_branch
          %951 = sbr.rel (%p949) target = $region160
        $region159: #{transformer_sentence_forward.1} parent=99 // pred_region
          %952 = dma.done [#allocation7], 2048
        $region160: #{transformer_sentence_forward.1} parent=99 // pred_fallthru
          _
        // Predicated region
        $region161: #{transformer_sentence_forward.1} parent=99 // pred_check
          %p953 = pneg %p468
        $region162: #{transformer_sentence_forward.1} parent=99 // pred_check_branch
          %955 = sbr.rel (%p953) target = $region164
        $region163: #{transformer_sentence_forward.1} parent=99 // pred_region
          %956 = dma.done [#allocation22], 16
        $region164: #{transformer_sentence_forward.1} parent=99 // pred_fallthru
          _
        %p957 = pneg %p51
        %p958 = pneg %p48
        %p959 = pneg %p72
        %p960 = pneg %p69
        %p961 = pneg %p93
        %p962 = pneg %p90
        %p963 = pneg %p114
        %p964 = pneg %p111
        %s965 = sand.u32 %s35, 1
        %s966 = scalar_lea.sflag [#allocation4], %s965
        %s967 = sand.u32 %s127, 1
        %s968 = smul.addr %s967, 384
        %s969 = scalar_lea.vmem [#allocation8], %s968
        %p970 = pneg %p140
        %p971 = pneg %p137
        %s972 = sand.u32 %s35, 1
        %s973 = scalar_lea.sflag [#allocation4], %s972
        %s974 = sand.u32 %s153, 1
        %s975 = smul.addr %s974, 3
        %s976 = scalar_lea.vmem [#allocation9], %s975
        %p977 = pneg %p166
        %p978 = pneg %p163
        %s979 = sand.u32 %s35, 1
        %s980 = scalar_lea.sflag [#allocation4], %s979
        %s981 = sand.u32 %s179, 1
        %s982 = smul.addr %s981, 128
        %s983 = scalar_lea.vmem [#allocation10], %s982
        %p984 = pneg %p192
        %p985 = pneg %p189
        %s986 = sand.u32 %s35, 1
        %s987 = scalar_lea.sflag [#allocation4], %s986
        %s988 = sand.u32 %s205, 1
        %s989 = scalar_lea.vmem [#allocation11], %s988
        %p990 = pneg %p218
        %p991 = pneg %p215
        %s992 = sand.u32 %s35, 1
        %s993 = scalar_lea.sflag [#allocation4], %s992
        %s994 = sand.u32 %s231, 1
        %s995 = scalar_lea.vmem [#allocation12], %s994
        %p996 = pneg %p244
        %p997 = pneg %p241
        %s998 = sand.u32 %s35, 1
        %s999 = scalar_lea.sflag [#allocation4], %s998
        %s1000 = sand.u32 %s257, 1
        %s1001 = scalar_lea.vmem [#allocation13], %s1000
        %p1002 = pneg %p270
        %p1003 = pneg %p267
        %s1004 = sand.u32 %s35, 1
        %s1005 = scalar_lea.sflag [#allocation4], %s1004
        %s1006 = sand.u32 %s283, 1
        %s1007 = smul.addr %s1006, 256
        %s1008 = scalar_lea.vmem [#allocation14], %s1007
        %p1009 = pneg %p296
        %p1010 = pneg %p293
        %s1011 = sand.u32 %s35, 1
        %s1012 = scalar_lea.sflag [#allocation4], %s1011
        %s1013 = sand.u32 %s309, 1
        %s1014 = smul.addr %s1013, 2
        %s1015 = scalar_lea.vmem [#allocation15], %s1014
        %p1016 = pneg %p322
        %p1017 = pneg %p319
        %s1018 = sand.u32 %s35, 1
        %s1019 = scalar_lea.sflag [#allocation4], %s1018
        %s1020 = sand.u32 %s335, 1
        %s1021 = smul.addr %s1020, 256
        %s1022 = scalar_lea.vmem [#allocation16], %s1021
        %p1023 = pneg %p348
        %p1024 = pneg %p345
        %s1025 = sand.u32 %s35, 1
        %s1026 = scalar_lea.sflag [#allocation4], %s1025
        %s1027 = sand.u32 %s361, 1
        %s1028 = scalar_lea.vmem [#allocation17], %s1027
        %p1029 = pneg %p374
        %p1030 = pneg %p371
        %s1031 = sand.u32 %s35, 1
        %s1032 = scalar_lea.sflag [#allocation4], %s1031
        %s1033 = sand.u32 %s387, 1
        %s1034 = scalar_lea.vmem [#allocation18], %s1033
        %p1035 = pneg %p400
        %p1036 = pneg %p397
        %s1037 = sand.u32 %s35, 1
        %s1038 = scalar_lea.sflag [#allocation4], %s1037
        %s1039 = sand.u32 %s413, 1
        %s1040 = scalar_lea.vmem [#allocation19], %s1039
        %p1041 = pneg %p426
        %p1042 = pneg %p423
        %p1043 = pneg %p447
        %p1044 = pneg %p444
        %p1045 = pneg %p468
        %p1046 = pneg %p465
        %p1047 = pneg %p489
        %p1048 = pneg %p486
        %p1049 = pneg %p510
        %p1050 = pneg %p507
        %p1051 = pneg %p531
        %p1052 = pneg %p528
        %p1053 = scmp.eq.s32.totalorder %s35, 0
        // Predicated region
        $region165: #{transformer_sentence_forward.1} parent=99 // pred_check
          %p1054 = pneg %p1053
        $region166: #{transformer_sentence_forward.1} parent=99 // pred_check_branch
          %1056 = sbr.rel (%p1054) target = $region168
        $region167: #{transformer_sentence_forward.1} parent=99 // pred_region
          %v1057 = vld [vmem:[%s0] sm:$0xff]
          %v1058 = vld [vmem:[%s0 + $0x8] sm:$0xff]
          %v1059 = vld [vmem:[#allocation3] sm:$0x1]
          %v1060 = vld [vmem:[#allocation6] sm:$0x1]
          %1061 = vadd.xlane.f32.xlu0 %v1057
          %v1062 = vpop.xlane.xlu0 %1061
          %1063 = vadd.xlane.f32.xlu0 %v1058
          %v1064 = vpop.xlane.xlu0 %1063
          %v1065 = vrcp.pop 128.0
          %v1066 = vmul.f32 %v1062, %v1065
          %v1067 = vmul.f32 %v1064, %v1065
          %v1068 = vsub.f32 %v1057, %v1066
          %v1069 = vsub.f32 %v1058, %v1067
          %v1070 = vmul.f32 %v1068, %v1068
          %v1071 = vmul.f32 %v1069, %v1069
          %1072 = vadd.xlane.f32.xlu0 %v1070
          %v1073 = vpop.xlane.xlu0 %1072
          %1074 = vadd.xlane.f32.xlu0 %v1071
          %v1075 = vpop.xlane.xlu0 %1074
          %v1076 = vmul.f32 %v1073, %v1065
          %v1077 = vmul.f32 %v1075, %v1065
          %v1078 = vadd.f32 %v1076, 1e-12
          %v1079 = vadd.f32 %v1077, 1e-12
          %v1080 = vrsqrt.pop %v1078
          %v1081 = vrsqrt.pop %v1079
          %v1082 = vmul.f32 %v1068, %v1080
          %v1083 = vmul.f32 %v1069, %v1081
          %v1085 = vlaneseq
          %v1086 = vshrl.u32 %v1085, 7
          %v1087 = vsub.s32 0, %v1086
          %v1088 = vrot.slane %v1059, %v1087
          %v1090 = vmul.f32 %v1082, %v1088
          %v1091 = vmul.f32 %v1083, %v1088
          %v1093 = vlaneseq
          %v1094 = vshrl.u32 %v1093, 7
          %v1095 = vsub.s32 0, %v1094
          %v1096 = vrot.slane %v1060, %v1095
          %v1098 = vadd.f32 %v1090, %v1096
          %v1099 = vadd.f32 %v1091, %v1096
          %1100 = vst [vmem:[#allocation2] sm:$0xff] %v1098
          %1101 = vst [vmem:[#allocation2 + $0x8] sm:$0xff] %v1099
        $region168: #{transformer_sentence_forward.1} parent=99 // pred_fallthru
          _
        %v1102 = vld [vmem:[#allocation2] sm:$0xff]
        %v1103 = vld [vmem:[#allocation2 + $0x8] sm:$0xff]
        %v1104 = vld [vmem:[%s851] sm:$0xff]
        %v1105 = vld [vmem:[%s851 + $0x8] sm:$0xff]
        %v1106 = vld [vmem:[%s851 + $0x10] sm:$0xff]
        %v1107 = vld [vmem:[%s851 + $0x18] sm:$0xff]
        %v1108 = vld [vmem:[%s851 + $0x20] sm:$0xff]
        %v1109 = vld [vmem:[%s851 + $0x28] sm:$0xff]
        %v1110 = vld [vmem:[%s851 + $0x30] sm:$0xff]
        %v1111 = vld [vmem:[%s851 + $0x38] sm:$0xff]
        %v1112 = vld [vmem:[%s851 + $0x40] sm:$0xff]
        %v1113 = vld [vmem:[%s851 + $0x48] sm:$0xff]
        %v1114 = vld [vmem:[%s851 + $0x50] sm:$0xff]
        %v1115 = vld [vmem:[%s851 + $0x58] sm:$0xff]
        %v1116 = vld [vmem:[%s851 + $0x60] sm:$0xff]
        %v1117 = vld [vmem:[%s851 + $0x68] sm:$0xff]
        %v1118 = vld [vmem:[%s851 + $0x70] sm:$0xff]
        %v1119 = vld [vmem:[%s851 + $0x78] sm:$0xff]
        %v1120 = vld [vmem:[%s851 + $0x80] sm:$0xff]
        %v1121 = vld [vmem:[%s851 + $0x88] sm:$0xff]
        %v1122 = vld [vmem:[%s851 + $0x90] sm:$0xff]
        %v1123 = vld [vmem:[%s851 + $0x98] sm:$0xff]
        %v1124 = vld [vmem:[%s851 + $0xa0] sm:$0xff]
        %v1125 = vld [vmem:[%s851 + $0xa8] sm:$0xff]
        %v1126 = vld [vmem:[%s851 + $0xb0] sm:$0xff]
        %v1127 = vld [vmem:[%s851 + $0xb8] sm:$0xff]
        %v1128 = vld [vmem:[%s851 + $0xc0] sm:$0xff]
        %v1129 = vld [vmem:[%s851 + $0xc8] sm:$0xff]
        %v1130 = vld [vmem:[%s851 + $0xd0] sm:$0xff]
        %v1131 = vld [vmem:[%s851 + $0xd8] sm:$0xff]
        %v1132 = vld [vmem:[%s851 + $0xe0] sm:$0xff]
        %v1133 = vld [vmem:[%s851 + $0xe8] sm:$0xff]
        %v1134 = vld [vmem:[%s851 + $0xf0] sm:$0xff]
        %v1135 = vld [vmem:[%s851 + $0xf8] sm:$0xff]
        %v1136 = vld [vmem:[%s851 + $0x100] sm:$0xff]
        %v1137 = vld [vmem:[%s851 + $0x108] sm:$0xff]
        %v1138 = vld [vmem:[%s851 + $0x110] sm:$0xff]
        %v1139 = vld [vmem:[%s851 + $0x118] sm:$0xff]
        %v1140 = vld [vmem:[%s851 + $0x120] sm:$0xff]
        %v1141 = vld [vmem:[%s851 + $0x128] sm:$0xff]
        %v1142 = vld [vmem:[%s851 + $0x130] sm:$0xff]
        %v1143 = vld [vmem:[%s851 + $0x138] sm:$0xff]
        %v1144 = vld [vmem:[%s851 + $0x140] sm:$0xff]
        %v1145 = vld [vmem:[%s851 + $0x148] sm:$0xff]
        %v1146 = vld [vmem:[%s851 + $0x150] sm:$0xff]
        %v1147 = vld [vmem:[%s851 + $0x158] sm:$0xff]
        %v1148 = vld [vmem:[%s851 + $0x160] sm:$0xff]
        %v1149 = vld [vmem:[%s851 + $0x168] sm:$0xff]
        %v1150 = vld [vmem:[%s851 + $0x170] sm:$0xff]
        %v1151 = vld [vmem:[%s851 + $0x178] sm:$0xff]
        %v1152 = vld [vmem:[%s860] sm:$0x7]
        %v1154 = vlaneseq
        %v1155 = vshrl.u32 %v1154, 7
        %v1156 = vsub.s32 0, %v1155
        %v1157 = vrot.slane %v1152, %v1156
        %v1158 = vlaneseq
        %v1159 = vshrl.u32 %v1158, 7
        %v1160 = vsub.s32 1, %v1159
        %v1161 = vrot.slane %v1152, %v1160
        %v1162 = vlaneseq
        %v1163 = vshrl.u32 %v1162, 7
        %v1164 = vsub.s32 2, %v1163
        %v1165 = vrot.slane %v1152, %v1164
        %1169 = vmatprep.subr.mxu0 %v1105
        %1170 = vmatpush1.msra.mxu0 %v1104
        %1171 = vmatprep.subr.mxu0 %v1108
        %1172 = vmatpush1.msra.mxu0 %v1107
        %1173 = vmatprep.subr.mxu0 %v1111
        %1174 = vmatpush1.msra.mxu0 %v1110
        %1175 = vmatprep.subr.mxu0 %v1114
        %1176 = vmatpush1.msra.mxu0 %v1113
        %1177 = vmatprep.subr.mxu0 %v1117
        %1178 = vmatpush1.msra.mxu0 %v1116
        %1179 = vmatprep.subr.mxu0 %v1120
        %1180 = vmatpush1.msra.mxu0 %v1119
        %1181 = vmatprep.subr.mxu0 %v1123
        %1182 = vmatpush1.msra.mxu0 %v1122
        %1183 = vmatprep.subr.mxu0 %v1126
        %1184 = vmatpush1.msra.mxu0 %v1125
        %1185 = vmatprep.subr.mxu0 %v1129
        %1186 = vmatpush1.msra.mxu0 %v1128
        %1187 = vmatprep.subr.mxu0 %v1132
        %1188 = vmatpush1.msra.mxu0 %v1131
        %1189 = vmatprep.subr.mxu0 %v1135
        %1190 = vmatpush1.msra.mxu0 %v1134
        %1191 = vmatprep.subr.mxu0 %v1138
        %1192 = vmatpush1.msra.mxu0 %v1137
        %1193 = vmatprep.subr.mxu0 %v1141
        %1194 = vmatpush1.msra.mxu0 %v1140
        %1195 = vmatprep.subr.mxu0 %v1144
        %1196 = vmatpush1.msra.mxu0 %v1143
        %1197 = vmatprep.subr.mxu0 %v1147
        %1198 = vmatpush1.msra.mxu0 %v1146
        %1199 = vmatprep.subr.mxu0 %v1150
        %1200 = vmatpush1.msra.mxu0 %v1149
        %1201 = vmatprep.subr.mxu0 0.0
        %1202 = vmatpush1.msra.mxu0 0.0
        %1203 = vmatprep.subr.mxu0 0.0
        %1204 = vmatpush1.msra.mxu0 0.0
        %1205 = vmatprep.subr.mxu0 0.0
        %1206 = vmatpush1.msra.mxu0 0.0
        %1207 = vmatprep.subr.mxu0 0.0
        %1208 = vmatpush1.msra.mxu0 0.0
        %1209 = vmatprep.subr.mxu0 0.0
        %1210 = vmatpush1.msra.mxu0 0.0
        %1211 = vmatprep.subr.mxu0 0.0
        %1212 = vmatpush1.msra.mxu0 0.0
        %1213 = vmatprep.subr.mxu0 0.0
        %1214 = vmatpush1.msra.mxu0 0.0
        %1215 = vmatprep.subr.mxu0 0.0
        %1216 = vmatpush1.msra.mxu0 0.0
        %1217 = vmatprep.subr.mxu0 0.0
        %1218 = vmatpush1.msra.mxu0 0.0
        %1219 = vmatprep.subr.mxu0 0.0
        %1220 = vmatpush1.msra.mxu0 0.0
        %1221 = vmatprep.subr.mxu0 0.0
        %1222 = vmatpush1.msra.mxu0 0.0
        %1223 = vmatprep.subr.mxu0 0.0
        %1224 = vmatpush1.msra.mxu0 0.0
        %1225 = vmatprep.subr.mxu0 0.0
        %1226 = vmatpush1.msra.mxu0 0.0
        %1227 = vmatprep.subr.mxu0 0.0
        %1228 = vmatpush1.msra.mxu0 0.0
        %1229 = vmatprep.subr.mxu0 0.0
        %1230 = vmatpush1.msra.mxu0 0.0
        %1231 = vmatprep.subr.mxu0 0.0
        %1232 = vmatpush1.msra.mxu0 0.0
        %1233 = vmatprep.mubr.f32.mxu0 0.0
        %1234 = vmatmul.mubr.f32.gmra.mrb[0].mxu0 %v1102
        %v1235 = vpop.f32.mrb[0].mxu0
        %v1236 = vadd.f32 %v1157, %v1235
        %v1237 = vpop.f32.mrb[0].mxu0
        %v1238 = vadd.f32 %v1161, %v1237
        %1239 = vmatprep.mubr.f32.mxu0 0.0
        %1240 = vmatmul.mubr.f32.gmra.mrb[0].mxu0 %v1103
        %v1241 = vpop.f32.mrb[0].mxu0
        %v1242 = vadd.f32 %v1157, %v1241
        %v1243 = vpop.f32.mrb[0].mxu0
        %v1244 = vadd.f32 %v1161, %v1243
        %1245 = vdwg.mxu0
        %1246 = vmatprep.subr.mxu0 0.0
        %1247 = vmatpush1.msra.mxu0 %v1106
        %1248 = vmatprep.subr.mxu0 0.0
        %1249 = vmatpush1.msra.mxu0 %v1109
        %1250 = vmatprep.subr.mxu0 0.0
        %1251 = vmatpush1.msra.mxu0 %v1112
        %1252 = vmatprep.subr.mxu0 0.0
        %1253 = vmatpush1.msra.mxu0 %v1115
        %1254 = vmatprep.subr.mxu0 0.0
        %1255 = vmatpush1.msra.mxu0 %v1118
        %1256 = vmatprep.subr.mxu0 0.0
        %1257 = vmatpush1.msra.mxu0 %v1121
        %1258 = vmatprep.subr.mxu0 0.0
        %1259 = vmatpush1.msra.mxu0 %v1124
        %1260 = vmatprep.subr.mxu0 0.0
        %1261 = vmatpush1.msra.mxu0 %v1127
        %1262 = vmatprep.subr.mxu0 0.0
        %1263 = vmatpush1.msra.mxu0 %v1130
        %1264 = vmatprep.subr.mxu0 0.0
        %1265 = vmatpush1.msra.mxu0 %v1133
        %1266 = vmatprep.subr.mxu0 0.0
        %1267 = vmatpush1.msra.mxu0 %v1136
        %1268 = vmatprep.subr.mxu0 0.0
        %1269 = vmatpush1.msra.mxu0 %v1139
        %1270 = vmatprep.subr.mxu0 0.0
        %1271 = vmatpush1.msra.mxu0 %v1142
        %1272 = vmatprep.subr.mxu0 0.0
        %1273 = vmatpush1.msra.mxu0 %v1145
        %1274 = vmatprep.subr.mxu0 0.0
        %1275 = vmatpush1.msra.mxu0 %v1148
        %1276 = vmatprep.subr.mxu0 0.0
        %1277 = vmatpush1.msra.mxu0 %v1151
        %1278 = vmatprep.subr.mxu0 0.0
        %1279 = vmatpush1.msra.mxu0 0.0
        %1280 = vmatprep.subr.mxu0 0.0
        %1281 = vmatpush1.msra.mxu0 0.0
        %1282 = vmatprep.subr.mxu0 0.0
        %1283 = vmatpush1.msra.mxu0 0.0
        %1284 = vmatprep.subr.mxu0 0.0
        %1285 = vmatpush1.msra.mxu0 0.0
        %1286 = vmatprep.subr.mxu0 0.0
        %1287 = vmatpush1.msra.mxu0 0.0
        %1288 = vmatprep.subr.mxu0 0.0
        %1289 = vmatpush1.msra.mxu0 0.0
        %1290 = vmatprep.subr.mxu0 0.0
        %1291 = vmatpush1.msra.mxu0 0.0
        %1292 = vmatprep.subr.mxu0 0.0
        %1293 = vmatpush1.msra.mxu0 0.0
        %1294 = vmatprep.subr.mxu0 0.0
        %1295 = vmatpush1.msra.mxu0 0.0
        %1296 = vmatprep.subr.mxu0 0.0
        %1297 = vmatpush1.msra.mxu0 0.0
        %1298 = vmatprep.subr.mxu0 0.0
        %1299 = vmatpush1.msra.mxu0 0.0
        %1300 = vmatprep.subr.mxu0 0.0
        %1301 = vmatpush1.msra.mxu0 0.0
        %1302 = vmatprep.subr.mxu0 0.0
        %1303 = vmatpush1.msra.mxu0 0.0
        %1304 = vmatprep.subr.mxu0 0.0
        %1305 = vmatpush1.msra.mxu0 0.0
        %1306 = vmatprep.subr.mxu0 0.0
        %1307 = vmatpush1.msra.mxu0 0.0
        %1308 = vmatprep.subr.mxu0 0.0
        %1309 = vmatpush1.msra.mxu0 0.0
        %1310 = vmatprep.mubr.f32.mxu0 0.0
        %1311 = vmatmul.mubr.f32.gmra.mrb[0].mxu0 %v1102
        %v1312 = vpop.f32.mrb[0].mxu0
        %v1313 = vadd.f32 %v1165, %v1312
        %v1314 = vpop.f32.mrb[0].mxu0
        %1315 = vmatprep.mubr.f32.mxu0 0.0
        %1316 = vmatmul.mubr.f32.gmra.mrb[0].mxu0 %v1103
        %v1317 = vpop.f32.mrb[0].mxu0
        %v1318 = vadd.f32 %v1165, %v1317
        %v1319 = vpop.f32.mrb[0].mxu0
        %1320 = vdwg.mxu0
        %v1321 = vld [vmem:[%s1] sm:$0x3]
        %v1324 = vunpack.c.l.s4 1966171168
        %v1325 = vunpack.c.0.s8 %v1324
        %v1326 = vlaneseq
        %v1327 = vshrl.u32 %v1326, 7
        %v1328 = vsub.s32 %v1325, %v1327
        %v1329 = vrot.slane %v1321, %v1328
        %v1330 = vcombine.high %v1329, %v1329
        %v1332 = vunpack.c.l.s4 1966171168
        %v1333 = vunpack.c.0.s8 %v1332
        %v1334 = vlaneseq
        %v1335 = vshrl.u32 %v1334, 7
        %v1336 = vsub.s32 %v1333, %v1335
        %v1337 = vrot.slane %v1329, %v1336
        %v1339 = vunpack.c.l.s4 1966171168
        %v1340 = vunpack.c.0.s8 %v1339
        %v1341 = vlaneseq
        %v1342 = vshrl.u32 %v1341, 7
        %v1343 = vsub.s32 %v1340, %v1342
        %v1344 = vrot.slane %v1330, %v1343
        %vm1345 = vcmask 261120
        %v1347 = vsel %vm1345, %v1236, 0
        %v1350 = vsel %vm1345, %v1238, 0
        %1352 = vmatprep.subr.mxu0 0.0
        %1353 = vmatpush1.xpose.msra.mxu0 %v1350
        %1354 = vmatprep.subr.mxu0 0.0
        %1355 = vmatpush1.xpose.msra.mxu0 0.0
        %1356 = vmatprep.subr.mxu0 0.0
        %1357 = vmatpush1.xpose.msra.mxu0 0.0
        %1358 = vmatprep.subr.mxu0 0.0
        %1359 = vmatpush1.xpose.msra.mxu0 0.0
        %1360 = vmatprep.subr.mxu0 0.0
        %1361 = vmatpush1.xpose.msra.mxu0 0.0
        %1362 = vmatprep.subr.mxu0 0.0
        %1363 = vmatpush1.xpose.msra.mxu0 0.0
        %1364 = vmatprep.subr.mxu0 0.0
        %1365 = vmatpush1.xpose.msra.mxu0 0.0
        %1366 = vmatprep.subr.mxu0 0.0
        %1367 = vmatpush1.xpose.msra.mxu0 0.0
        %1368 = vmatprep.subr.mxu0 0.0
        %1369 = vmatpush1.xpose.msra.mxu0 0.0
        %1370 = vmatprep.subr.mxu0 0.0
        %1371 = vmatpush1.xpose.msra.mxu0 0.0
        %1372 = vmatprep.subr.mxu0 0.0
        %1373 = vmatpush1.xpose.msra.mxu0 0.0
        %1374 = vmatprep.subr.mxu0 0.0
        %1375 = vmatpush1.xpose.msra.mxu0 0.0
        %1376 = vmatprep.subr.mxu0 0.0
        %1377 = vmatpush1.xpose.msra.mxu0 0.0
        %1378 = vmatprep.subr.mxu0 0.0
        %1379 = vmatpush1.xpose.msra.mxu0 0.0
        %1380 = vmatprep.subr.mxu0 0.0
        %1381 = vmatpush1.xpose.msra.mxu0 0.0
        %1382 = vmatprep.subr.mxu0 0.0
        %1383 = vmatpush1.xpose.msra.mxu0 0.0
        %1384 = vmatprep.subr.mxu0 0.0
        %1385 = vmatpush1.xpose.msra.mxu0 0.0
        %1386 = vmatprep.subr.mxu0 0.0
        %1387 = vmatpush1.xpose.msra.mxu0 0.0
        %1388 = vmatprep.subr.mxu0 0.0
        %1389 = vmatpush1.xpose.msra.mxu0 0.0
        %1390 = vmatprep.subr.mxu0 0.0
        %1391 = vmatpush1.xpose.msra.mxu0 0.0
        %1392 = vmatprep.subr.mxu0 0.0
        %1393 = vmatpush1.xpose.msra.mxu0 0.0
        %1394 = vmatprep.subr.mxu0 0.0
        %1395 = vmatpush1.xpose.msra.mxu0 0.0
        %1396 = vmatprep.subr.mxu0 0.0
        %1397 = vmatpush1.xpose.msra.mxu0 0.0
        %1398 = vmatprep.subr.mxu0 0.0
        %1399 = vmatpush1.xpose.msra.mxu0 0.0
        %1400 = vmatprep.subr.mxu0 0.0
        %1401 = vmatpush1.xpose.msra.mxu0 0.0
        %1402 = vmatprep.subr.mxu0 0.0
        %1403 = vmatpush1.xpose.msra.mxu0 0.0
        %1404 = vmatprep.subr.mxu0 0.0
        %1405 = vmatpush1.xpose.msra.mxu0 0.0
        %1406 = vmatprep.subr.mxu0 0.0
        %1407 = vmatpush1.xpose.msra.mxu0 0.0
        %1408 = vmatprep.subr.mxu0 0.0
        %1409 = vmatpush1.xpose.msra.mxu0 0.0
        %1410 = vmatprep.subr.mxu0 0.0
        %1411 = vmatpush1.xpose.msra.mxu0 0.0
        %1412 = vmatprep.subr.mxu0 0.0
        %1413 = vmatpush1.xpose.msra.mxu0 0.0
        %1414 = vmatprep.subr.mxu0 0.0
        %1415 = vmatpush1.xpose.msra.mxu0 0.0
        %1416 = vmatprep.mubr.f32.mxu0 0.0
        %1417 = vmatmul.mubr.f32.gmra.mrb[0].mxu0 %v1347
        %v1418 = vpop.f32.mrb[0].mxu0
        %v1419 = vadd.f32 0.0, %v1418
        %v1420 = vpop.f32.mrb[0].mxu0
        %1421 = vdwg.mxu0
        %v1423 = vsel %vm1345, %v1242, 0
        %v1426 = vsel %vm1345, %v1244, 0
        %1428 = vmatprep.subr.mxu0 0.0
        %1429 = vmatpush1.xpose.msra.mxu0 %v1426
        %1430 = vmatprep.subr.mxu0 0.0
        %1431 = vmatpush1.xpose.msra.mxu0 0.0
        %1432 = vmatprep.subr.mxu0 0.0
        %1433 = vmatpush1.xpose.msra.mxu0 0.0
        %1434 = vmatprep.subr.mxu0 0.0
        %1435 = vmatpush1.xpose.msra.mxu0 0.0
        %1436 = vmatprep.subr.mxu0 0.0
        %1437 = vmatpush1.xpose.msra.mxu0 0.0
        %1438 = vmatprep.subr.mxu0 0.0
        %1439 = vmatpush1.xpose.msra.mxu0 0.0
        %1440 = vmatprep.subr.mxu0 0.0
        %1441 = vmatpush1.xpose.msra.mxu0 0.0
        %1442 = vmatprep.subr.mxu0 0.0
        %1443 = vmatpush1.xpose.msra.mxu0 0.0
        %1444 = vmatprep.subr.mxu0 0.0
        %1445 = vmatpush1.xpose.msra.mxu0 0.0
        %1446 = vmatprep.subr.mxu0 0.0
        %1447 = vmatpush1.xpose.msra.mxu0 0.0
        %1448 = vmatprep.subr.mxu0 0.0
        %1449 = vmatpush1.xpose.msra.mxu0 0.0
        %1450 = vmatprep.subr.mxu0 0.0
        %1451 = vmatpush1.xpose.msra.mxu0 0.0
        %1452 = vmatprep.subr.mxu0 0.0
        %1453 = vmatpush1.xpose.msra.mxu0 0.0
        %1454 = vmatprep.subr.mxu0 0.0
        %1455 = vmatpush1.xpose.msra.mxu0 0.0
        %1456 = vmatprep.subr.mxu0 0.0
        %1457 = vmatpush1.xpose.msra.mxu0 0.0
        %1458 = vmatprep.subr.mxu0 0.0
        %1459 = vmatpush1.xpose.msra.mxu0 0.0
        %1460 = vmatprep.subr.mxu0 0.0
        %1461 = vmatpush1.xpose.msra.mxu0 0.0
        %1462 = vmatprep.subr.mxu0 0.0
        %1463 = vmatpush1.xpose.msra.mxu0 0.0
        %1464 = vmatprep.subr.mxu0 0.0
        %1465 = vmatpush1.xpose.msra.mxu0 0.0
        %1466 = vmatprep.subr.mxu0 0.0
        %1467 = vmatpush1.xpose.msra.mxu0 0.0
        %1468 = vmatprep.subr.mxu0 0.0
        %1469 = vmatpush1.xpose.msra.mxu0 0.0
        %1470 = vmatprep.subr.mxu0 0.0
        %1471 = vmatpush1.xpose.msra.mxu0 0.0
        %1472 = vmatprep.subr.mxu0 0.0
        %1473 = vmatpush1.xpose.msra.mxu0 0.0
        %1474 = vmatprep.subr.mxu0 0.0
        %1475 = vmatpush1.xpose.msra.mxu0 0.0
        %1476 = vmatprep.subr.mxu0 0.0
        %1477 = vmatpush1.xpose.msra.mxu0 0.0
        %1478 = vmatprep.subr.mxu0 0.0
        %1479 = vmatpush1.xpose.msra.mxu0 0.0
        %1480 = vmatprep.subr.mxu0 0.0
        %1481 = vmatpush1.xpose.msra.mxu0 0.0
        %1482 = vmatprep.subr.mxu0 0.0
        %1483 = vmatpush1.xpose.msra.mxu0 0.0
        %1484 = vmatprep.subr.mxu0 0.0
        %1485 = vmatpush1.xpose.msra.mxu0 0.0
        %1486 = vmatprep.subr.mxu0 0.0
        %1487 = vmatpush1.xpose.msra.mxu0 0.0
        %1488 = vmatprep.subr.mxu0 0.0
        %1489 = vmatpush1.xpose.msra.mxu0 0.0
        %1490 = vmatprep.subr.mxu0 0.0
        %1491 = vmatpush1.xpose.msra.mxu0 0.0
        %1492 = vmatprep.mubr.f32.mxu0 0.0
        %1493 = vmatmul.mubr.f32.gmra.mrb[0].mxu0 %v1423
        %v1494 = vpop.f32.mrb[0].mxu0
        %v1495 = vadd.f32 0.0, %v1494
        %v1496 = vpop.f32.mrb[0].mxu0
        %1497 = vdwg.mxu0
        %v1498 = vmul.f32 %v1419, 0.17677669
        %v1499 = vmul.f32 %v1495, 0.17677669
        %v1500 = vlaneseq
        %v1501 = vshrl.u32 %v1500, 7
        %v1502 = vsub.s32 0, %v1501
        %v1503 = vrot.slane %v1337, %v1502
        %v1504 = vlaneseq
        %v1505 = vshrl.u32 %v1504, 7
        %v1506 = vsub.s32 0, %v1505
        %v1507 = vrot.slane %v1344, %v1506
        %v1510 = vadd.f32 %v1498, %v1503
        %v1511 = vadd.f32 %v1499, %v1507
        %vm1512 = vcmask 64512
        %v1513 = vsel %vm1512, %v1510, -inf
        %1514 = vmax.xlane.f32.xlu0 %v1513
        %v1515 = vpop.xlane.xlu0 %1514
        %v1516 = vsel %vm1512, %v1511, -inf
        %1517 = vmax.xlane.f32.xlu0 %v1516
        %v1518 = vpop.xlane.xlu0 %1517
        %v1519 = vsub.f32 %v1510, %v1515
        %v1520 = vsub.f32 %v1511, %v1518
        %v1521 = vmul.f32 %v1519, 1.442695
        %v1522 = vpow.pop %v1521
        %v1523 = vmul.f32 %v1520, 1.442695
        %v1524 = vpow.pop %v1523
        %v1525 = vsel %vm1512, %v1522, 0.0
        %1526 = vadd.xlane.f32.xlu0 %v1525
        %v1527 = vpop.xlane.xlu0 %1526
        %v1528 = vsel %vm1512, %v1524, 0.0
        %1529 = vadd.xlane.f32.xlu0 %v1528
        %v1530 = vpop.xlane.xlu0 %1529
        %v1531 = vrcp.pop %v1527
        %v1532 = vrcp.pop %v1530
        %v1533 = vmul.f32 %v1522, %v1531
        %v1534 = vmul.f32 %v1524, %v1532
        %v1536 = vsel %vm1512, %v1533, 0
        %1538 = vmatprep.subr.mxu0 0.0
        %1539 = vmatpush1.msra.mxu0 %v1313
        %1540 = vmatprep.subr.mxu0 0.0
        %1541 = vmatpush1.msra.mxu0 0.0
        %1542 = vmatprep.subr.mxu0 0.0
        %1543 = vmatpush1.msra.mxu0 0.0
        %1544 = vmatprep.subr.mxu0 0.0
        %1545 = vmatpush1.msra.mxu0 0.0
        %1546 = vmatprep.subr.mxu0 0.0
        %1547 = vmatpush1.msra.mxu0 0.0
        %1548 = vmatprep.subr.mxu0 0.0
        %1549 = vmatpush1.msra.mxu0 0.0
        %1550 = vmatprep.subr.mxu0 0.0
        %1551 = vmatpush1.msra.mxu0 0.0
        %1552 = vmatprep.subr.mxu0 0.0
        %1553 = vmatpush1.msra.mxu0 0.0
        %1554 = vmatprep.subr.mxu0 0.0
        %1555 = vmatpush1.msra.mxu0 0.0
        %1556 = vmatprep.subr.mxu0 0.0
        %1557 = vmatpush1.msra.mxu0 0.0
        %1558 = vmatprep.subr.mxu0 0.0
        %1559 = vmatpush1.msra.mxu0 0.0
        %1560 = vmatprep.subr.mxu0 0.0
        %1561 = vmatpush1.msra.mxu0 0.0
        %1562 = vmatprep.subr.mxu0 0.0
        %1563 = vmatpush1.msra.mxu0 0.0
        %1564 = vmatprep.subr.mxu0 0.0
        %1565 = vmatpush1.msra.mxu0 0.0
        %1566 = vmatprep.subr.mxu0 0.0
        %1567 = vmatpush1.msra.mxu0 0.0
        %1568 = vmatprep.subr.mxu0 0.0
        %1569 = vmatpush1.msra.mxu0 0.0
        %1570 = vmatprep.subr.mxu0 0.0
        %1571 = vmatpush1.msra.mxu0 0.0
        %1572 = vmatprep.subr.mxu0 0.0
        %1573 = vmatpush1.msra.mxu0 0.0
        %1574 = vmatprep.subr.mxu0 0.0
        %1575 = vmatpush1.msra.mxu0 0.0
        %1576 = vmatprep.subr.mxu0 0.0
        %1577 = vmatpush1.msra.mxu0 0.0
        %1578 = vmatprep.subr.mxu0 0.0
        %1579 = vmatpush1.msra.mxu0 0.0
        %1580 = vmatprep.subr.mxu0 0.0
        %1581 = vmatpush1.msra.mxu0 0.0
        %1582 = vmatprep.subr.mxu0 0.0
        %1583 = vmatpush1.msra.mxu0 0.0
        %1584 = vmatprep.subr.mxu0 0.0
        %1585 = vmatpush1.msra.mxu0 0.0
        %1586 = vmatprep.subr.mxu0 0.0
        %1587 = vmatpush1.msra.mxu0 0.0
        %1588 = vmatprep.subr.mxu0 0.0
        %1589 = vmatpush1.msra.mxu0 0.0
        %1590 = vmatprep.subr.mxu0 0.0
        %1591 = vmatpush1.msra.mxu0 0.0
        %1592 = vmatprep.subr.mxu0 0.0
        %1593 = vmatpush1.msra.mxu0 0.0
        %1594 = vmatprep.subr.mxu0 0.0
        %1595 = vmatpush1.msra.mxu0 0.0
        %1596 = vmatprep.subr.mxu0 0.0
        %1597 = vmatpush1.msra.mxu0 0.0
        %1598 = vmatprep.subr.mxu0 0.0
        %1599 = vmatpush1.msra.mxu0 0.0
        %1600 = vmatprep.subr.mxu0 0.0
        %1601 = vmatpush1.msra.mxu0 0.0
        %1602 = vmatprep.mubr.f32.mxu0 0.0
        %1603 = vmatmul.mubr.f32.gmra.mrb[0].mxu0 %v1536
        %v1604 = vpop.f32.mrb[0].mxu0
        %v1605 = vadd.f32 0.0, %v1604
        %v1606 = vpop.f32.mrb[0].mxu0
        %1607 = vdwg.mxu0
        %v1609 = vsel %vm1512, %v1534, 0
        %1611 = vmatprep.subr.mxu0 0.0
        %1612 = vmatpush1.msra.mxu0 %v1318
        %1613 = vmatprep.subr.mxu0 0.0
        %1614 = vmatpush1.msra.mxu0 0.0
        %1615 = vmatprep.subr.mxu0 0.0
        %1616 = vmatpush1.msra.mxu0 0.0
        %1617 = vmatprep.subr.mxu0 0.0
        %1618 = vmatpush1.msra.mxu0 0.0
        %1619 = vmatprep.subr.mxu0 0.0
        %1620 = vmatpush1.msra.mxu0 0.0
        %1621 = vmatprep.subr.mxu0 0.0
        %1622 = vmatpush1.msra.mxu0 0.0
        %1623 = vmatprep.subr.mxu0 0.0
        %1624 = vmatpush1.msra.mxu0 0.0
        %1625 = vmatprep.subr.mxu0 0.0
        %1626 = vmatpush1.msra.mxu0 0.0
        %1627 = vmatprep.subr.mxu0 0.0
        %1628 = vmatpush1.msra.mxu0 0.0
        %1629 = vmatprep.subr.mxu0 0.0
        %1630 = vmatpush1.msra.mxu0 0.0
        %1631 = vmatprep.subr.mxu0 0.0
        %1632 = vmatpush1.msra.mxu0 0.0
        %1633 = vmatprep.subr.mxu0 0.0
        %1634 = vmatpush1.msra.mxu0 0.0
        %1635 = vmatprep.subr.mxu0 0.0
        %1636 = vmatpush1.msra.mxu0 0.0
        %1637 = vmatprep.subr.mxu0 0.0
        %1638 = vmatpush1.msra.mxu0 0.0
        %1639 = vmatprep.subr.mxu0 0.0
        %1640 = vmatpush1.msra.mxu0 0.0
        %1641 = vmatprep.subr.mxu0 0.0
        %1642 = vmatpush1.msra.mxu0 0.0
        %1643 = vmatprep.subr.mxu0 0.0
        %1644 = vmatpush1.msra.mxu0 0.0
        %1645 = vmatprep.subr.mxu0 0.0
        %1646 = vmatpush1.msra.mxu0 0.0
        %1647 = vmatprep.subr.mxu0 0.0
        %1648 = vmatpush1.msra.mxu0 0.0
        %1649 = vmatprep.subr.mxu0 0.0
        %1650 = vmatpush1.msra.mxu0 0.0
        %1651 = vmatprep.subr.mxu0 0.0
        %1652 = vmatpush1.msra.mxu0 0.0
        %1653 = vmatprep.subr.mxu0 0.0
        %1654 = vmatpush1.msra.mxu0 0.0
        %1655 = vmatprep.subr.mxu0 0.0
        %1656 = vmatpush1.msra.mxu0 0.0
        %1657 = vmatprep.subr.mxu0 0.0
        %1658 = vmatpush1.msra.mxu0 0.0
        %1659 = vmatprep.subr.mxu0 0.0
        %1660 = vmatpush1.msra.mxu0 0.0
        %1661 = vmatprep.subr.mxu0 0.0
        %1662 = vmatpush1.msra.mxu0 0.0
        %1663 = vmatprep.subr.mxu0 0.0
        %1664 = vmatpush1.msra.mxu0 0.0
        %1665 = vmatprep.subr.mxu0 0.0
        %1666 = vmatpush1.msra.mxu0 0.0
        %1667 = vmatprep.subr.mxu0 0.0
        %1668 = vmatpush1.msra.mxu0 0.0
        %1669 = vmatprep.subr.mxu0 0.0
        %1670 = vmatpush1.msra.mxu0 0.0
        %1671 = vmatprep.subr.mxu0 0.0
        %1672 = vmatpush1.msra.mxu0 0.0
        %1673 = vmatprep.subr.mxu0 0.0
        %1674 = vmatpush1.msra.mxu0 0.0
        %1675 = vmatprep.mubr.f32.mxu0 0.0
        %1676 = vmatmul.mubr.f32.gmra.mrb[0].mxu0 %v1609
        %v1677 = vpop.f32.mrb[0].mxu0
        %v1678 = vadd.f32 0.0, %v1677
        %v1679 = vpop.f32.mrb[0].mxu0
        %1680 = vdwg.mxu0
        %1681 = vrot.lane.b32.xlu0 %v1236, 96
        %v1682 = vpop.permute.xlu0 %1681
        %1683 = vrot.lane.b32.xlu0 %v1238, 96
        %v1684 = vpop.permute.xlu0 %1683
        %v1685 = vsel %vm1345, %v1682, 0
        %v1687 = vsel %vm1345, %v1684, 0
        %1689 = vmatprep.subr.mxu0 0.0
        %1690 = vmatpush1.xpose.msra.mxu0 %v1687
        %1691 = vmatprep.subr.mxu0 0.0
        %1692 = vmatpush1.xpose.msra.mxu0 0.0
        %1693 = vmatprep.subr.mxu0 0.0
        %1694 = vmatpush1.xpose.msra.mxu0 0.0
        %1695 = vmatprep.subr.mxu0 0.0
        %1696 = vmatpush1.xpose.msra.mxu0 0.0
        %1697 = vmatprep.subr.mxu0 0.0
        %1698 = vmatpush1.xpose.msra.mxu0 0.0
        %1699 = vmatprep.subr.mxu0 0.0
        %1700 = vmatpush1.xpose.msra.mxu0 0.0
        %1701 = vmatprep.subr.mxu0 0.0
        %1702 = vmatpush1.xpose.msra.mxu0 0.0
        %1703 = vmatprep.subr.mxu0 0.0
        %1704 = vmatpush1.xpose.msra.mxu0 0.0
        %1705 = vmatprep.subr.mxu0 0.0
        %1706 = vmatpush1.xpose.msra.mxu0 0.0
        %1707 = vmatprep.subr.mxu0 0.0
        %1708 = vmatpush1.xpose.msra.mxu0 0.0
        %1709 = vmatprep.subr.mxu0 0.0
        %1710 = vmatpush1.xpose.msra.mxu0 0.0
        %1711 = vmatprep.subr.mxu0 0.0
        %1712 = vmatpush1.xpose.msra.mxu0 0.0
        %1713 = vmatprep.subr.mxu0 0.0
        %1714 = vmatpush1.xpose.msra.mxu0 0.0
        %1715 = vmatprep.subr.mxu0 0.0
        %1716 = vmatpush1.xpose.msra.mxu0 0.0
        %1717 = vmatprep.subr.mxu0 0.0
        %1718 = vmatpush1.xpose.msra.mxu0 0.0
        %1719 = vmatprep.subr.mxu0 0.0
        %1720 = vmatpush1.xpose.msra.mxu0 0.0
        %1721 = vmatprep.subr.mxu0 0.0
        %1722 = vmatpush1.xpose.msra.mxu0 0.0
        %1723 = vmatprep.subr.mxu0 0.0
        %1724 = vmatpush1.xpose.msra.mxu0 0.0
        %1725 = vmatprep.subr.mxu0 0.0
        %1726 = vmatpush1.xpose.msra.mxu0 0.0
        %1727 = vmatprep.subr.mxu0 0.0
        %1728 = vmatpush1.xpose.msra.mxu0 0.0
        %1729 = vmatprep.subr.mxu0 0.0
        %1730 = vmatpush1.xpose.msra.mxu0 0.0
        %1731 = vmatprep.subr.mxu0 0.0
        %1732 = vmatpush1.xpose.msra.mxu0 0.0
        %1733 = vmatprep.subr.mxu0 0.0
        %1734 = vmatpush1.xpose.msra.mxu0 0.0
        %1735 = vmatprep.subr.mxu0 0.0
        %1736 = vmatpush1.xpose.msra.mxu0 0.0
        %1737 = vmatprep.subr.mxu0 0.0
        %1738 = vmatpush1.xpose.msra.mxu0 0.0
        %1739 = vmatprep.subr.mxu0 0.0
        %1740 = vmatpush1.xpose.msra.mxu0 0.0
        %1741 = vmatprep.subr.mxu0 0.0
        %1742 = vmatpush1.xpose.msra.mxu0 0.0
        %1743 = vmatprep.subr.mxu0 0.0
        %1744 = vmatpush1.xpose.msra.mxu0 0.0
        %1745 = vmatprep.subr.mxu0 0.0
        %1746 = vmatpush1.xpose.msra.mxu0 0.0
        %1747 = vmatprep.subr.mxu0 0.0
        %1748 = vmatpush1.xpose.msra.mxu0 0.0
        %1749 = vmatprep.subr.mxu0 0.0
        %1750 = vmatpush1.xpose.msra.mxu0 0.0
        %1751 = vmatprep.subr.mxu0 0.0
        %1752 = vmatpush1.xpose.msra.mxu0 0.0
        %1753 = vmatprep.mubr.f32.mxu0 0.0
        %1754 = vmatmul.mubr.f32.gmra.mrb[0].mxu0 %v1685
        %v1755 = vpop.f32.mrb[0].mxu0
        %v1756 = vadd.f32 0.0, %v1755
        %v1757 = vpop.f32.mrb[0].mxu0
        %1758 = vdwg.mxu0
        %1759 = vrot.lane.b32.xlu0 %v1242, 96
        %v1760 = vpop.permute.xlu0 %1759
        %1761 = vrot.lane.b32.xlu0 %v1244, 96
        %v1762 = vpop.permute.xlu0 %1761
        %v1763 = vsel %vm1345, %v1760, 0
        %v1765 = vsel %vm1345, %v1762, 0
        %1767 = vmatprep.subr.mxu0 0.0
        %1768 = vmatpush1.xpose.msra.mxu0 %v1765
        %1769 = vmatprep.subr.mxu0 0.0
        %1770 = vmatpush1.xpose.msra.mxu0 0.0
        %1771 = vmatprep.subr.mxu0 0.0
        %1772 = vmatpush1.xpose.msra.mxu0 0.0
        %1773 = vmatprep.subr.mxu0 0.0
        %1774 = vmatpush1.xpose.msra.mxu0 0.0
        %1775 = vmatprep.subr.mxu0 0.0
        %1776 = vmatpush1.xpose.msra.mxu0 0.0
        %1777 = vmatprep.subr.mxu0 0.0
        %1778 = vmatpush1.xpose.msra.mxu0 0.0
        %1779 = vmatprep.subr.mxu0 0.0
        %1780 = vmatpush1.xpose.msra.mxu0 0.0
        %1781 = vmatprep.subr.mxu0 0.0
        %1782 = vmatpush1.xpose.msra.mxu0 0.0
        %1783 = vmatprep.subr.mxu0 0.0
        %1784 = vmatpush1.xpose.msra.mxu0 0.0
        %1785 = vmatprep.subr.mxu0 0.0
        %1786 = vmatpush1.xpose.msra.mxu0 0.0
        %1787 = vmatprep.subr.mxu0 0.0
        %1788 = vmatpush1.xpose.msra.mxu0 0.0
        %1789 = vmatprep.subr.mxu0 0.0
        %1790 = vmatpush1.xpose.msra.mxu0 0.0
        %1791 = vmatprep.subr.mxu0 0.0
        %1792 = vmatpush1.xpose.msra.mxu0 0.0
        %1793 = vmatprep.subr.mxu0 0.0
        %1794 = vmatpush1.xpose.msra.mxu0 0.0
        %1795 = vmatprep.subr.mxu0 0.0
        %1796 = vmatpush1.xpose.msra.mxu0 0.0
        %1797 = vmatprep.subr.mxu0 0.0
        %1798 = vmatpush1.xpose.msra.mxu0 0.0
        %1799 = vmatprep.subr.mxu0 0.0
        %1800 = vmatpush1.xpose.msra.mxu0 0.0
        %1801 = vmatprep.subr.mxu0 0.0
        %1802 = vmatpush1.xpose.msra.mxu0 0.0
        %1803 = vmatprep.subr.mxu0 0.0
        %1804 = vmatpush1.xpose.msra.mxu0 0.0
        %1805 = vmatprep.subr.mxu0 0.0
        %1806 = vmatpush1.xpose.msra.mxu0 0.0
        %1807 = vmatprep.subr.mxu0 0.0
        %1808 = vmatpush1.xpose.msra.mxu0 0.0
        %1809 = vmatprep.subr.mxu0 0.0
        %1810 = vmatpush1.xpose.msra.mxu0 0.0
        %1811 = vmatprep.subr.mxu0 0.0
        %1812 = vmatpush1.xpose.msra.mxu0 0.0
        %1813 = vmatprep.subr.mxu0 0.0
        %1814 = vmatpush1.xpose.msra.mxu0 0.0
        %1815 = vmatprep.subr.mxu0 0.0
        %1816 = vmatpush1.xpose.msra.mxu0 0.0
        %1817 = vmatprep.subr.mxu0 0.0
        %1818 = vmatpush1.xpose.msra.mxu0 0.0
        %1819 = vmatprep.subr.mxu0 0.0
        %1820 = vmatpush1.xpose.msra.mxu0 0.0
        %1821 = vmatprep.subr.mxu0 0.0
        %1822 = vmatpush1.xpose.msra.mxu0 0.0
        %1823 = vmatprep.subr.mxu0 0.0
        %1824 = vmatpush1.xpose.msra.mxu0 0.0
        %1825 = vmatprep.subr.mxu0 0.0
        %1826 = vmatpush1.xpose.msra.mxu0 0.0
        %1827 = vmatprep.subr.mxu0 0.0
        %1828 = vmatpush1.xpose.msra.mxu0 0.0
        %1829 = vmatprep.subr.mxu0 0.0
        %1830 = vmatpush1.xpose.msra.mxu0 0.0
        %1831 = vmatprep.mubr.f32.mxu0 0.0
        %1832 = vmatmul.mubr.f32.gmra.mrb[0].mxu0 %v1763
        %v1833 = vpop.f32.mrb[0].mxu0
        %v1834 = vadd.f32 0.0, %v1833
        %v1835 = vpop.f32.mrb[0].mxu0
        %1836 = vdwg.mxu0
        %v1837 = vmul.f32 %v1756, 0.17677669
        %v1838 = vmul.f32 %v1834, 0.17677669
        %v1839 = vadd.f32 %v1837, %v1503
        %v1840 = vadd.f32 %v1838, %v1507
        %v1841 = vsel %vm1512, %v1839, -inf
        %1842 = vmax.xlane.f32.xlu0 %v1841
        %v1843 = vpop.xlane.xlu0 %1842
        %v1844 = vsel %vm1512, %v1840, -inf
        %1845 = vmax.xlane.f32.xlu0 %v1844
        %v1846 = vpop.xlane.xlu0 %1845
        %v1847 = vsub.f32 %v1839, %v1843
        %v1848 = vsub.f32 %v1840, %v1846
        %v1849 = vmul.f32 %v1847, 1.442695
        %v1850 = vpow.pop %v1849
        %v1851 = vmul.f32 %v1848, 1.442695
        %v1852 = vpow.pop %v1851
        %v1853 = vsel %vm1512, %v1850, 0.0
        %1854 = vadd.xlane.f32.xlu0 %v1853
        %v1855 = vpop.xlane.xlu0 %1854
        %v1856 = vsel %vm1512, %v1852, 0.0
        %1857 = vadd.xlane.f32.xlu0 %v1856
        %v1858 = vpop.xlane.xlu0 %1857
        %v1859 = vrcp.pop %v1855
        %v1860 = vrcp.pop %v1858
        %v1861 = vmul.f32 %v1850, %v1859
        %v1862 = vmul.f32 %v1852, %v1860
        %1864 = vrot.lane.b32.xlu0 %v1313, 96
        %v1865 = vpop.permute.xlu0 %1864
        %v1868 = vsel %vm1512, %v1861, 0
        %1870 = vmatprep.subr.mxu0 0.0
        %1871 = vmatpush1.msra.mxu0 %v1865
        %1872 = vmatprep.subr.mxu0 0.0
        %1873 = vmatpush1.msra.mxu0 0.0
        %1874 = vmatprep.subr.mxu0 0.0
        %1875 = vmatpush1.msra.mxu0 0.0
        %1876 = vmatprep.subr.mxu0 0.0
        %1877 = vmatpush1.msra.mxu0 0.0
        %1878 = vmatprep.subr.mxu0 0.0
        %1879 = vmatpush1.msra.mxu0 0.0
        %1880 = vmatprep.subr.mxu0 0.0
        %1881 = vmatpush1.msra.mxu0 0.0
        %1882 = vmatprep.subr.mxu0 0.0
        %1883 = vmatpush1.msra.mxu0 0.0
        %1884 = vmatprep.subr.mxu0 0.0
        %1885 = vmatpush1.msra.mxu0 0.0
        %1886 = vmatprep.subr.mxu0 0.0
        %1887 = vmatpush1.msra.mxu0 0.0
        %1888 = vmatprep.subr.mxu0 0.0
        %1889 = vmatpush1.msra.mxu0 0.0
        %1890 = vmatprep.subr.mxu0 0.0
        %1891 = vmatpush1.msra.mxu0 0.0
        %1892 = vmatprep.subr.mxu0 0.0
        %1893 = vmatpush1.msra.mxu0 0.0
        %1894 = vmatprep.subr.mxu0 0.0
        %1895 = vmatpush1.msra.mxu0 0.0
        %1896 = vmatprep.subr.mxu0 0.0
        %1897 = vmatpush1.msra.mxu0 0.0
        %1898 = vmatprep.subr.mxu0 0.0
        %1899 = vmatpush1.msra.mxu0 0.0
        %1900 = vmatprep.subr.mxu0 0.0
        %1901 = vmatpush1.msra.mxu0 0.0
        %1902 = vmatprep.subr.mxu0 0.0
        %1903 = vmatpush1.msra.mxu0 0.0
        %1904 = vmatprep.subr.mxu0 0.0
        %1905 = vmatpush1.msra.mxu0 0.0
        %1906 = vmatprep.subr.mxu0 0.0
        %1907 = vmatpush1.msra.mxu0 0.0
        %1908 = vmatprep.subr.mxu0 0.0
        %1909 = vmatpush1.msra.mxu0 0.0
        %1910 = vmatprep.subr.mxu0 0.0
        %1911 = vmatpush1.msra.mxu0 0.0
        %1912 = vmatprep.subr.mxu0 0.0
        %1913 = vmatpush1.msra.mxu0 0.0
        %1914 = vmatprep.subr.mxu0 0.0
        %1915 = vmatpush1.msra.mxu0 0.0
        %1916 = vmatprep.subr.mxu0 0.0
        %1917 = vmatpush1.msra.mxu0 0.0
        %1918 = vmatprep.subr.mxu0 0.0
        %1919 = vmatpush1.msra.mxu0 0.0
        %1920 = vmatprep.subr.mxu0 0.0
        %1921 = vmatpush1.msra.mxu0 0.0
        %1922 = vmatprep.subr.mxu0 0.0
        %1923 = vmatpush1.msra.mxu0 0.0
        %1924 = vmatprep.subr.mxu0 0.0
        %1925 = vmatpush1.msra.mxu0 0.0
        %1926 = vmatprep.subr.mxu0 0.0
        %1927 = vmatpush1.msra.mxu0 0.0
        %1928 = vmatprep.subr.mxu0 0.0
        %1929 = vmatpush1.msra.mxu0 0.0
        %1930 = vmatprep.subr.mxu0 0.0
        %1931 = vmatpush1.msra.mxu0 0.0
        %1932 = vmatprep.subr.mxu0 0.0
        %1933 = vmatpush1.msra.mxu0 0.0
        %1934 = vmatprep.mubr.f32.mxu0 0.0
        %1935 = vmatmul.mubr.f32.gmra.mrb[0].mxu0 %v1868
        %v1936 = vpop.f32.mrb[0].mxu0
        %v1937 = vadd.f32 0.0, %v1936
        %v1938 = vpop.f32.mrb[0].mxu0
        %1939 = vdwg.mxu0
        %1941 = vrot.lane.b32.xlu0 %v1318, 96
        %v1942 = vpop.permute.xlu0 %1941
        %v1945 = vsel %vm1512, %v1862, 0
        %1947 = vmatprep.subr.mxu0 0.0
        %1948 = vmatpush1.msra.mxu0 %v1942
        %1949 = vmatprep.subr.mxu0 0.0
        %1950 = vmatpush1.msra.mxu0 0.0
        %1951 = vmatprep.subr.mxu0 0.0
        %1952 = vmatpush1.msra.mxu0 0.0
        %1953 = vmatprep.subr.mxu0 0.0
        %1954 = vmatpush1.msra.mxu0 0.0
        %1955 = vmatprep.subr.mxu0 0.0
        %1956 = vmatpush1.msra.mxu0 0.0
        %1957 = vmatprep.subr.mxu0 0.0
        %1958 = vmatpush1.msra.mxu0 0.0
        %1959 = vmatprep.subr.mxu0 0.0
        %1960 = vmatpush1.msra.mxu0 0.0
        %1961 = vmatprep.subr.mxu0 0.0
        %1962 = vmatpush1.msra.mxu0 0.0
        %1963 = vmatprep.subr.mxu0 0.0
        %1964 = vmatpush1.msra.mxu0 0.0
        %1965 = vmatprep.subr.mxu0 0.0
        %1966 = vmatpush1.msra.mxu0 0.0
        %1967 = vmatprep.subr.mxu0 0.0
        %1968 = vmatpush1.msra.mxu0 0.0
        %1969 = vmatprep.subr.mxu0 0.0
        %1970 = vmatpush1.msra.mxu0 0.0
        %1971 = vmatprep.subr.mxu0 0.0
        %1972 = vmatpush1.msra.mxu0 0.0
        %1973 = vmatprep.subr.mxu0 0.0
        %1974 = vmatpush1.msra.mxu0 0.0
        %1975 = vmatprep.subr.mxu0 0.0
        %1976 = vmatpush1.msra.mxu0 0.0
        %1977 = vmatprep.subr.mxu0 0.0
        %1978 = vmatpush1.msra.mxu0 0.0
        %1979 = vmatprep.subr.mxu0 0.0
        %1980 = vmatpush1.msra.mxu0 0.0
        %1981 = vmatprep.subr.mxu0 0.0
        %1982 = vmatpush1.msra.mxu0 0.0
        %1983 = vmatprep.subr.mxu0 0.0
        %1984 = vmatpush1.msra.mxu0 0.0
        %1985 = vmatprep.subr.mxu0 0.0
        %1986 = vmatpush1.msra.mxu0 0.0
        %1987 = vmatprep.subr.mxu0 0.0
        %1988 = vmatpush1.msra.mxu0 0.0
        %1989 = vmatprep.subr.mxu0 0.0
        %1990 = vmatpush1.msra.mxu0 0.0
        %1991 = vmatprep.subr.mxu0 0.0
        %1992 = vmatpush1.msra.mxu0 0.0
        %1993 = vmatprep.subr.mxu0 0.0
        %1994 = vmatpush1.msra.mxu0 0.0
        %1995 = vmatprep.subr.mxu0 0.0
        %1996 = vmatpush1.msra.mxu0 0.0
        %1997 = vmatprep.subr.mxu0 0.0
        %1998 = vmatpush1.msra.mxu0 0.0
        %1999 = vmatprep.subr.mxu0 0.0
        %2000 = vmatpush1.msra.mxu0 0.0
        %2001 = vmatprep.subr.mxu0 0.0
        %2002 = vmatpush1.msra.mxu0 0.0
        %2003 = vmatprep.subr.mxu0 0.0
        %2004 = vmatpush1.msra.mxu0 0.0
        %2005 = vmatprep.subr.mxu0 0.0
        %2006 = vmatpush1.msra.mxu0 0.0
        %2007 = vmatprep.subr.mxu0 0.0
        %2008 = vmatpush1.msra.mxu0 0.0
        %2009 = vmatprep.subr.mxu0 0.0
        %2010 = vmatpush1.msra.mxu0 0.0
        %2011 = vmatprep.mubr.f32.mxu0 0.0
        %2012 = vmatmul.mubr.f32.gmra.mrb[0].mxu0 %v1945
        %v2013 = vpop.f32.mrb[0].mxu0
        %v2014 = vadd.f32 0.0, %v2013
        %v2015 = vpop.f32.mrb[0].mxu0
        %2016 = vdwg.mxu0
        %2017 = vrot.lane.b32.xlu0 %v1236, 64
        %v2018 = vpop.permute.xlu0 %2017
        %2019 = vrot.lane.b32.xlu0 %v1238, 64
        %v2020 = vpop.permute.xlu0 %2019
        %v2021 = vsel %vm1345, %v2018, 0
        %v2023 = vsel %vm1345, %v2020, 0
        %2025 = vmatprep.subr.mxu0 0.0
        %2026 = vmatpush1.xpose.msra.mxu0 %v2023
        %2027 = vmatprep.subr.mxu0 0.0
        %2028 = vmatpush1.xpose.msra.mxu0 0.0
        %2029 = vmatprep.subr.mxu0 0.0
        %2030 = vmatpush1.xpose.msra.mxu0 0.0
        %2031 = vmatprep.subr.mxu0 0.0
        %2032 = vmatpush1.xpose.msra.mxu0 0.0
        %2033 = vmatprep.subr.mxu0 0.0
        %2034 = vmatpush1.xpose.msra.mxu0 0.0
        %2035 = vmatprep.subr.mxu0 0.0
        %2036 = vmatpush1.xpose.msra.mxu0 0.0
        %2037 = vmatprep.subr.mxu0 0.0
        %2038 = vmatpush1.xpose.msra.mxu0 0.0
        %2039 = vmatprep.subr.mxu0 0.0
        %2040 = vmatpush1.xpose.msra.mxu0 0.0
        %2041 = vmatprep.subr.mxu0 0.0
        %2042 = vmatpush1.xpose.msra.mxu0 0.0
        %2043 = vmatprep.subr.mxu0 0.0
        %2044 = vmatpush1.xpose.msra.mxu0 0.0
        %2045 = vmatprep.subr.mxu0 0.0
        %2046 = vmatpush1.xpose.msra.mxu0 0.0
        %2047 = vmatprep.subr.mxu0 0.0
        %2048 = vmatpush1.xpose.msra.mxu0 0.0
        %2049 = vmatprep.subr.mxu0 0.0
        %2050 = vmatpush1.xpose.msra.mxu0 0.0
        %2051 = vmatprep.subr.mxu0 0.0
        %2052 = vmatpush1.xpose.msra.mxu0 0.0
        %2053 = vmatprep.subr.mxu0 0.0
        %2054 = vmatpush1.xpose.msra.mxu0 0.0
        %2055 = vmatprep.subr.mxu0 0.0
        %2056 = vmatpush1.xpose.msra.mxu0 0.0
        %2057 = vmatprep.subr.mxu0 0.0
        %2058 = vmatpush1.xpose.msra.mxu0 0.0
        %2059 = vmatprep.subr.mxu0 0.0
        %2060 = vmatpush1.xpose.msra.mxu0 0.0
        %2061 = vmatprep.subr.mxu0 0.0
        %2062 = vmatpush1.xpose.msra.mxu0 0.0
        %2063 = vmatprep.subr.mxu0 0.0
        %2064 = vmatpush1.xpose.msra.mxu0 0.0
        %2065 = vmatprep.subr.mxu0 0.0
        %2066 = vmatpush1.xpose.msra.mxu0 0.0
        %2067 = vmatprep.subr.mxu0 0.0
        %2068 = vmatpush1.xpose.msra.mxu0 0.0
        %2069 = vmatprep.subr.mxu0 0.0
        %2070 = vmatpush1.xpose.msra.mxu0 0.0
        %2071 = vmatprep.subr.mxu0 0.0
        %2072 = vmatpush1.xpose.msra.mxu0 0.0
        %2073 = vmatprep.subr.mxu0 0.0
        %2074 = vmatpush1.xpose.msra.mxu0 0.0
        %2075 = vmatprep.subr.mxu0 0.0
        %2076 = vmatpush1.xpose.msra.mxu0 0.0
        %2077 = vmatprep.subr.mxu0 0.0
        %2078 = vmatpush1.xpose.msra.mxu0 0.0
        %2079 = vmatprep.subr.mxu0 0.0
        %2080 = vmatpush1.xpose.msra.mxu0 0.0
        %2081 = vmatprep.subr.mxu0 0.0
        %2082 = vmatpush1.xpose.msra.mxu0 0.0
        %2083 = vmatprep.subr.mxu0 0.0
        %2084 = vmatpush1.xpose.msra.mxu0 0.0
        %2085 = vmatprep.subr.mxu0 0.0
        %2086 = vmatpush1.xpose.msra.mxu0 0.0
        %2087 = vmatprep.subr.mxu0 0.0
        %2088 = vmatpush1.xpose.msra.mxu0 0.0
        %2089 = vmatprep.mubr.f32.mxu0 0.0
        %2090 = vmatmul.mubr.f32.gmra.mrb[0].mxu0 %v2021
        %v2091 = vpop.f32.mrb[0].mxu0
        %v2092 = vadd.f32 0.0, %v2091
        %v2093 = vpop.f32.mrb[0].mxu0
        %2094 = vdwg.mxu0
        %2095 = vrot.lane.b32.xlu0 %v1242, 64
        %v2096 = vpop.permute.xlu0 %2095
        %2097 = vrot.lane.b32.xlu0 %v1244, 64
        %v2098 = vpop.permute.xlu0 %2097
        %v2099 = vsel %vm1345, %v2096, 0
        %v2101 = vsel %vm1345, %v2098, 0
        %2103 = vmatprep.subr.mxu0 0.0
        %2104 = vmatpush1.xpose.msra.mxu0 %v2101
        %2105 = vmatprep.subr.mxu0 0.0
        %2106 = vmatpush1.xpose.msra.mxu0 0.0
        %2107 = vmatprep.subr.mxu0 0.0
        %2108 = vmatpush1.xpose.msra.mxu0 0.0
        %2109 = vmatprep.subr.mxu0 0.0
        %2110 = vmatpush1.xpose.msra.mxu0 0.0
        %2111 = vmatprep.subr.mxu0 0.0
        %2112 = vmatpush1.xpose.msra.mxu0 0.0
        %2113 = vmatprep.subr.mxu0 0.0
        %2114 = vmatpush1.xpose.msra.mxu0 0.0
        %2115 = vmatprep.subr.mxu0 0.0
        %2116 = vmatpush1.xpose.msra.mxu0 0.0
        %2117 = vmatprep.subr.mxu0 0.0
        %2118 = vmatpush1.xpose.msra.mxu0 0.0
        %2119 = vmatprep.subr.mxu0 0.0
        %2120 = vmatpush1.xpose.msra.mxu0 0.0
        %2121 = vmatprep.subr.mxu0 0.0
        %2122 = vmatpush1.xpose.msra.mxu0 0.0
        %2123 = vmatprep.subr.mxu0 0.0
        %2124 = vmatpush1.xpose.msra.mxu0 0.0
        %2125 = vmatprep.subr.mxu0 0.0
        %2126 = vmatpush1.xpose.msra.mxu0 0.0
        %2127 = vmatprep.subr.mxu0 0.0
        %2128 = vmatpush1.xpose.msra.mxu0 0.0
        %2129 = vmatprep.subr.mxu0 0.0
        %2130 = vmatpush1.xpose.msra.mxu0 0.0
        %2131 = vmatprep.subr.mxu0 0.0
        %2132 = vmatpush1.xpose.msra.mxu0 0.0
        %2133 = vmatprep.subr.mxu0 0.0
        %2134 = vmatpush1.xpose.msra.mxu0 0.0
        %2135 = vmatprep.subr.mxu0 0.0
        %2136 = vmatpush1.xpose.msra.mxu0 0.0
        %2137 = vmatprep.subr.mxu0 0.0
        %2138 = vmatpush1.xpose.msra.mxu0 0.0
        %2139 = vmatprep.subr.mxu0 0.0
        %2140 = vmatpush1.xpose.msra.mxu0 0.0
        %2141 = vmatprep.subr.mxu0 0.0
        %2142 = vmatpush1.xpose.msra.mxu0 0.0
        %2143 = vmatprep.subr.mxu0 0.0
        %2144 = vmatpush1.xpose.msra.mxu0 0.0
        %2145 = vmatprep.subr.mxu0 0.0
        %2146 = vmatpush1.xpose.msra.mxu0 0.0
        %2147 = vmatprep.subr.mxu0 0.0
        %2148 = vmatpush1.xpose.msra.mxu0 0.0
        %2149 = vmatprep.subr.mxu0 0.0
        %2150 = vmatpush1.xpose.msra.mxu0 0.0
        %2151 = vmatprep.subr.mxu0 0.0
        %2152 = vmatpush1.xpose.msra.mxu0 0.0
        %2153 = vmatprep.subr.mxu0 0.0
        %2154 = vmatpush1.xpose.msra.mxu0 0.0
        %2155 = vmatprep.subr.mxu0 0.0
        %2156 = vmatpush1.xpose.msra.mxu0 0.0
        %2157 = vmatprep.subr.mxu0 0.0
        %2158 = vmatpush1.xpose.msra.mxu0 0.0
        %2159 = vmatprep.subr.mxu0 0.0
        %2160 = vmatpush1.xpose.msra.mxu0 0.0
        %2161 = vmatprep.subr.mxu0 0.0
        %2162 = vmatpush1.xpose.msra.mxu0 0.0
        %2163 = vmatprep.subr.mxu0 0.0
        %2164 = vmatpush1.xpose.msra.mxu0 0.0
        %2165 = vmatprep.subr.mxu0 0.0
        %2166 = vmatpush1.xpose.msra.mxu0 0.0
        %2167 = vmatprep.mubr.f32.mxu0 0.0
        %2168 = vmatmul.mubr.f32.gmra.mrb[0].mxu0 %v2099
        %v2169 = vpop.f32.mrb[0].mxu0
        %v2170 = vadd.f32 0.0, %v2169
        %v2171 = vpop.f32.mrb[0].mxu0
        %2172 = vdwg.mxu0
        %v2173 = vmul.f32 %v2092, 0.17677669
        %v2174 = vmul.f32 %v2170, 0.17677669
        %v2175 = vadd.f32 %v2173, %v1503
        %v2176 = vadd.f32 %v2174, %v1507
        %v2177 = vsel %vm1512, %v2175, -inf
        %2178 = vmax.xlane.f32.xlu0 %v2177
        %v2179 = vpop.xlane.xlu0 %2178
        %v2180 = vsel %vm1512, %v2176, -inf
        %2181 = vmax.xlane.f32.xlu0 %v2180
        %v2182 = vpop.xlane.xlu0 %2181
        %v2183 = vsub.f32 %v2175, %v2179
        %v2184 = vsub.f32 %v2176, %v2182
        %v2185 = vmul.f32 %v2183, 1.442695
        %v2186 = vpow.pop %v2185
        %v2187 = vmul.f32 %v2184, 1.442695
        %v2188 = vpow.pop %v2187
        %v2189 = vsel %vm1512, %v2186, 0.0
        %2190 = vadd.xlane.f32.xlu0 %v2189
        %v2191 = vpop.xlane.xlu0 %2190
        %v2192 = vsel %vm1512, %v2188, 0.0
        %2193 = vadd.xlane.f32.xlu0 %v2192
        %v2194 = vpop.xlane.xlu0 %2193
        %v2195 = vrcp.pop %v2191
        %v2196 = vrcp.pop %v2194
        %v2197 = vmul.f32 %v2186, %v2195
        %v2198 = vmul.f32 %v2188, %v2196
        %2199 = vrot.lane.b32.xlu0 %v1313, 64
        %v2200 = vpop.permute.xlu0 %2199
        %v2203 = vsel %vm1512, %v2197, 0
        %2205 = vmatprep.subr.mxu0 0.0
        %2206 = vmatpush1.msra.mxu0 %v2200
        %2207 = vmatprep.subr.mxu0 0.0
        %2208 = vmatpush1.msra.mxu0 0.0
        %2209 = vmatprep.subr.mxu0 0.0
        %2210 = vmatpush1.msra.mxu0 0.0
        %2211 = vmatprep.subr.mxu0 0.0
        %2212 = vmatpush1.msra.mxu0 0.0
        %2213 = vmatprep.subr.mxu0 0.0
        %2214 = vmatpush1.msra.mxu0 0.0
        %2215 = vmatprep.subr.mxu0 0.0
        %2216 = vmatpush1.msra.mxu0 0.0
        %2217 = vmatprep.subr.mxu0 0.0
        %2218 = vmatpush1.msra.mxu0 0.0
        %2219 = vmatprep.subr.mxu0 0.0
        %2220 = vmatpush1.msra.mxu0 0.0
        %2221 = vmatprep.subr.mxu0 0.0
        %2222 = vmatpush1.msra.mxu0 0.0
        %2223 = vmatprep.subr.mxu0 0.0
        %2224 = vmatpush1.msra.mxu0 0.0
        %2225 = vmatprep.subr.mxu0 0.0
        %2226 = vmatpush1.msra.mxu0 0.0
        %2227 = vmatprep.subr.mxu0 0.0
        %2228 = vmatpush1.msra.mxu0 0.0
        %2229 = vmatprep.subr.mxu0 0.0
        %2230 = vmatpush1.msra.mxu0 0.0
        %2231 = vmatprep.subr.mxu0 0.0
        %2232 = vmatpush1.msra.mxu0 0.0
        %2233 = vmatprep.subr.mxu0 0.0
        %2234 = vmatpush1.msra.mxu0 0.0
        %2235 = vmatprep.subr.mxu0 0.0
        %2236 = vmatpush1.msra.mxu0 0.0
        %2237 = vmatprep.subr.mxu0 0.0
        %2238 = vmatpush1.msra.mxu0 0.0
        %2239 = vmatprep.subr.mxu0 0.0
        %2240 = vmatpush1.msra.mxu0 0.0
        %2241 = vmatprep.subr.mxu0 0.0
        %2242 = vmatpush1.msra.mxu0 0.0
        %2243 = vmatprep.subr.mxu0 0.0
        %2244 = vmatpush1.msra.mxu0 0.0
        %2245 = vmatprep.subr.mxu0 0.0
        %2246 = vmatpush1.msra.mxu0 0.0
        %2247 = vmatprep.subr.mxu0 0.0
        %2248 = vmatpush1.msra.mxu0 0.0
        %2249 = vmatprep.subr.mxu0 0.0
        %2250 = vmatpush1.msra.mxu0 0.0
        %2251 = vmatprep.subr.mxu0 0.0
        %2252 = vmatpush1.msra.mxu0 0.0
        %2253 = vmatprep.subr.mxu0 0.0
        %2254 = vmatpush1.msra.mxu0 0.0
        %2255 = vmatprep.subr.mxu0 0.0
        %2256 = vmatpush1.msra.mxu0 0.0
        %2257 = vmatprep.subr.mxu0 0.0
        %2258 = vmatpush1.msra.mxu0 0.0
        %2259 = vmatprep.subr.mxu0 0.0
        %2260 = vmatpush1.msra.mxu0 0.0
        %2261 = vmatprep.subr.mxu0 0.0
        %2262 = vmatpush1.msra.mxu0 0.0
        %2263 = vmatprep.subr.mxu0 0.0
        %2264 = vmatpush1.msra.mxu0 0.0
        %2265 = vmatprep.subr.mxu0 0.0
        %2266 = vmatpush1.msra.mxu0 0.0
        %2267 = vmatprep.subr.mxu0 0.0
        %2268 = vmatpush1.msra.mxu0 0.0
        %2269 = vmatprep.mubr.f32.mxu0 0.0
        %2270 = vmatmul.mubr.f32.gmra.mrb[0].mxu0 %v2203
        %v2271 = vpop.f32.mrb[0].mxu0
        %v2272 = vadd.f32 0.0, %v2271
        %v2273 = vpop.f32.mrb[0].mxu0
        %2274 = vdwg.mxu0
        %2275 = vrot.lane.b32.xlu0 %v1318, 64
        %v2276 = vpop.permute.xlu0 %2275
        %v2279 = vsel %vm1512, %v2198, 0
        %2281 = vmatprep.subr.mxu0 0.0
        %2282 = vmatpush1.msra.mxu0 %v2276
        %2283 = vmatprep.subr.mxu0 0.0
        %2284 = vmatpush1.msra.mxu0 0.0
        %2285 = vmatprep.subr.mxu0 0.0
        %2286 = vmatpush1.msra.mxu0 0.0
        %2287 = vmatprep.subr.mxu0 0.0
        %2288 = vmatpush1.msra.mxu0 0.0
        %2289 = vmatprep.subr.mxu0 0.0
        %2290 = vmatpush1.msra.mxu0 0.0
        %2291 = vmatprep.subr.mxu0 0.0
        %2292 = vmatpush1.msra.mxu0 0.0
        %2293 = vmatprep.subr.mxu0 0.0
        %2294 = vmatpush1.msra.mxu0 0.0
        %2295 = vmatprep.subr.mxu0 0.0
        %2296 = vmatpush1.msra.mxu0 0.0
        %2297 = vmatprep.subr.mxu0 0.0
        %2298 = vmatpush1.msra.mxu0 0.0
        %2299 = vmatprep.subr.mxu0 0.0
        %2300 = vmatpush1.msra.mxu0 0.0
        %2301 = vmatprep.subr.mxu0 0.0
        %2302 = vmatpush1.msra.mxu0 0.0
        %2303 = vmatprep.subr.mxu0 0.0
        %2304 = vmatpush1.msra.mxu0 0.0
        %2305 = vmatprep.subr.mxu0 0.0
        %2306 = vmatpush1.msra.mxu0 0.0
        %2307 = vmatprep.subr.mxu0 0.0
        %2308 = vmatpush1.msra.mxu0 0.0
        %2309 = vmatprep.subr.mxu0 0.0
        %2310 = vmatpush1.msra.mxu0 0.0
        %2311 = vmatprep.subr.mxu0 0.0
        %2312 = vmatpush1.msra.mxu0 0.0
        %2313 = vmatprep.subr.mxu0 0.0
        %2314 = vmatpush1.msra.mxu0 0.0
        %2315 = vmatprep.subr.mxu0 0.0
        %2316 = vmatpush1.msra.mxu0 0.0
        %2317 = vmatprep.subr.mxu0 0.0
        %2318 = vmatpush1.msra.mxu0 0.0
        %2319 = vmatprep.subr.mxu0 0.0
        %2320 = vmatpush1.msra.mxu0 0.0
        %2321 = vmatprep.subr.mxu0 0.0
        %2322 = vmatpush1.msra.mxu0 0.0
        %2323 = vmatprep.subr.mxu0 0.0
        %2324 = vmatpush1.msra.mxu0 0.0
        %2325 = vmatprep.subr.mxu0 0.0
        %2326 = vmatpush1.msra.mxu0 0.0
        %2327 = vmatprep.subr.mxu0 0.0
        %2328 = vmatpush1.msra.mxu0 0.0
        %2329 = vmatprep.subr.mxu0 0.0
        %2330 = vmatpush1.msra.mxu0 0.0
        %2331 = vmatprep.subr.mxu0 0.0
        %2332 = vmatpush1.msra.mxu0 0.0
        %2333 = vmatprep.subr.mxu0 0.0
        %2334 = vmatpush1.msra.mxu0 0.0
        %2335 = vmatprep.subr.mxu0 0.0
        %2336 = vmatpush1.msra.mxu0 0.0
        %2337 = vmatprep.subr.mxu0 0.0
        %2338 = vmatpush1.msra.mxu0 0.0
        %2339 = vmatprep.subr.mxu0 0.0
        %2340 = vmatpush1.msra.mxu0 0.0
        %2341 = vmatprep.subr.mxu0 0.0
        %2342 = vmatpush1.msra.mxu0 0.0
        %2343 = vmatprep.subr.mxu0 0.0
        %2344 = vmatpush1.msra.mxu0 0.0
        %2345 = vmatprep.mubr.f32.mxu0 0.0
        %2346 = vmatmul.mubr.f32.gmra.mrb[0].mxu0 %v2279
        %v2347 = vpop.f32.mrb[0].mxu0
        %v2348 = vadd.f32 0.0, %v2347
        %v2349 = vpop.f32.mrb[0].mxu0
        %2350 = vdwg.mxu0
        %2351 = vrot.lane.b32.xlu0 %v1236, 32
        %v2352 = vpop.permute.xlu0 %2351
        %2353 = vrot.lane.b32.xlu0 %v1238, 32
        %v2354 = vpop.permute.xlu0 %2353
        %v2355 = vsel %vm1345, %v2352, 0
        %v2357 = vsel %vm1345, %v2354, 0
        %2359 = vmatprep.subr.mxu0 0.0
        %2360 = vmatpush1.xpose.msra.mxu0 %v2357
        %2361 = vmatprep.subr.mxu0 0.0
        %2362 = vmatpush1.xpose.msra.mxu0 0.0
        %2363 = vmatprep.subr.mxu0 0.0
        %2364 = vmatpush1.xpose.msra.mxu0 0.0
        %2365 = vmatprep.subr.mxu0 0.0
        %2366 = vmatpush1.xpose.msra.mxu0 0.0
        %2367 = vmatprep.subr.mxu0 0.0
        %2368 = vmatpush1.xpose.msra.mxu0 0.0
        %2369 = vmatprep.subr.mxu0 0.0
        %2370 = vmatpush1.xpose.msra.mxu0 0.0
        %2371 = vmatprep.subr.mxu0 0.0
        %2372 = vmatpush1.xpose.msra.mxu0 0.0
        %2373 = vmatprep.subr.mxu0 0.0
        %2374 = vmatpush1.xpose.msra.mxu0 0.0
        %2375 = vmatprep.subr.mxu0 0.0
        %2376 = vmatpush1.xpose.msra.mxu0 0.0
        %2377 = vmatprep.subr.mxu0 0.0
        %2378 = vmatpush1.xpose.msra.mxu0 0.0
        %2379 = vmatprep.subr.mxu0 0.0
        %2380 = vmatpush1.xpose.msra.mxu0 0.0
        %2381 = vmatprep.subr.mxu0 0.0
        %2382 = vmatpush1.xpose.msra.mxu0 0.0
        %2383 = vmatprep.subr.mxu0 0.0
        %2384 = vmatpush1.xpose.msra.mxu0 0.0
        %2385 = vmatprep.subr.mxu0 0.0
        %2386 = vmatpush1.xpose.msra.mxu0 0.0
        %2387 = vmatprep.subr.mxu0 0.0
        %2388 = vmatpush1.xpose.msra.mxu0 0.0
        %2389 = vmatprep.subr.mxu0 0.0
        %2390 = vmatpush1.xpose.msra.mxu0 0.0
        %2391 = vmatprep.subr.mxu0 0.0
        %2392 = vmatpush1.xpose.msra.mxu0 0.0
        %2393 = vmatprep.subr.mxu0 0.0
        %2394 = vmatpush1.xpose.msra.mxu0 0.0
        %2395 = vmatprep.subr.mxu0 0.0
        %2396 = vmatpush1.xpose.msra.mxu0 0.0
        %2397 = vmatprep.subr.mxu0 0.0
        %2398 = vmatpush1.xpose.msra.mxu0 0.0
        %2399 = vmatprep.subr.mxu0 0.0
        %2400 = vmatpush1.xpose.msra.mxu0 0.0
        %2401 = vmatprep.subr.mxu0 0.0
        %2402 = vmatpush1.xpose.msra.mxu0 0.0
        %2403 = vmatprep.subr.mxu0 0.0
        %2404 = vmatpush1.xpose.msra.mxu0 0.0
        %2405 = vmatprep.subr.mxu0 0.0
        %2406 = vmatpush1.xpose.msra.mxu0 0.0
        %2407 = vmatprep.subr.mxu0 0.0
        %2408 = vmatpush1.xpose.msra.mxu0 0.0
        %2409 = vmatprep.subr.mxu0 0.0
        %2410 = vmatpush1.xpose.msra.mxu0 0.0
        %2411 = vmatprep.subr.mxu0 0.0
        %2412 = vmatpush1.xpose.msra.mxu0 0.0
        %2413 = vmatprep.subr.mxu0 0.0
        %2414 = vmatpush1.xpose.msra.mxu0 0.0
        %2415 = vmatprep.subr.mxu0 0.0
        %2416 = vmatpush1.xpose.msra.mxu0 0.0
        %2417 = vmatprep.subr.mxu0 0.0
        %2418 = vmatpush1.xpose.msra.mxu0 0.0
        %2419 = vmatprep.subr.mxu0 0.0
        %2420 = vmatpush1.xpose.msra.mxu0 0.0
        %2421 = vmatprep.subr.mxu0 0.0
        %2422 = vmatpush1.xpose.msra.mxu0 0.0
        %2423 = vmatprep.mubr.f32.mxu0 0.0
        %2424 = vmatmul.mubr.f32.gmra.mrb[0].mxu0 %v2355
        %v2425 = vpop.f32.mrb[0].mxu0
        %v2426 = vadd.f32 0.0, %v2425
        %v2427 = vpop.f32.mrb[0].mxu0
        %2428 = vdwg.mxu0
        %2429 = vrot.lane.b32.xlu0 %v1242, 32
        %v2430 = vpop.permute.xlu0 %2429
        %2431 = vrot.lane.b32.xlu0 %v1244, 32
        %v2432 = vpop.permute.xlu0 %2431
        %v2433 = vsel %vm1345, %v2430, 0
        %v2435 = vsel %vm1345, %v2432, 0
        %2437 = vmatprep.subr.mxu0 0.0
        %2438 = vmatpush1.xpose.msra.mxu0 %v2435
        %2439 = vmatprep.subr.mxu0 0.0
        %2440 = vmatpush1.xpose.msra.mxu0 0.0
        %2441 = vmatprep.subr.mxu0 0.0
        %2442 = vmatpush1.xpose.msra.mxu0 0.0
        %2443 = vmatprep.subr.mxu0 0.0
        %2444 = vmatpush1.xpose.msra.mxu0 0.0
        %2445 = vmatprep.subr.mxu0 0.0
        %2446 = vmatpush1.xpose.msra.mxu0 0.0
        %2447 = vmatprep.subr.mxu0 0.0
        %2448 = vmatpush1.xpose.msra.mxu0 0.0
        %2449 = vmatprep.subr.mxu0 0.0
        %2450 = vmatpush1.xpose.msra.mxu0 0.0
        %2451 = vmatprep.subr.mxu0 0.0
        %2452 = vmatpush1.xpose.msra.mxu0 0.0
        %2453 = vmatprep.subr.mxu0 0.0
        %2454 = vmatpush1.xpose.msra.mxu0 0.0
        %2455 = vmatprep.subr.mxu0 0.0
        %2456 = vmatpush1.xpose.msra.mxu0 0.0
        %2457 = vmatprep.subr.mxu0 0.0
        %2458 = vmatpush1.xpose.msra.mxu0 0.0
        %2459 = vmatprep.subr.mxu0 0.0
        %2460 = vmatpush1.xpose.msra.mxu0 0.0
        %2461 = vmatprep.subr.mxu0 0.0
        %2462 = vmatpush1.xpose.msra.mxu0 0.0
        %2463 = vmatprep.subr.mxu0 0.0
        %2464 = vmatpush1.xpose.msra.mxu0 0.0
        %2465 = vmatprep.subr.mxu0 0.0
        %2466 = vmatpush1.xpose.msra.mxu0 0.0
        %2467 = vmatprep.subr.mxu0 0.0
        %2468 = vmatpush1.xpose.msra.mxu0 0.0
        %2469 = vmatprep.subr.mxu0 0.0
        %2470 = vmatpush1.xpose.msra.mxu0 0.0
        %2471 = vmatprep.subr.mxu0 0.0
        %2472 = vmatpush1.xpose.msra.mxu0 0.0
        %2473 = vmatprep.subr.mxu0 0.0
        %2474 = vmatpush1.xpose.msra.mxu0 0.0
        %2475 = vmatprep.subr.mxu0 0.0
        %2476 = vmatpush1.xpose.msra.mxu0 0.0
        %2477 = vmatprep.subr.mxu0 0.0
        %2478 = vmatpush1.xpose.msra.mxu0 0.0
        %2479 = vmatprep.subr.mxu0 0.0
        %2480 = vmatpush1.xpose.msra.mxu0 0.0
        %2481 = vmatprep.subr.mxu0 0.0
        %2482 = vmatpush1.xpose.msra.mxu0 0.0
        %2483 = vmatprep.subr.mxu0 0.0
        %2484 = vmatpush1.xpose.msra.mxu0 0.0
        %2485 = vmatprep.subr.mxu0 0.0
        %2486 = vmatpush1.xpose.msra.mxu0 0.0
        %2487 = vmatprep.subr.mxu0 0.0
        %2488 = vmatpush1.xpose.msra.mxu0 0.0
        %2489 = vmatprep.subr.mxu0 0.0
        %2490 = vmatpush1.xpose.msra.mxu0 0.0
        %2491 = vmatprep.subr.mxu0 0.0
        %2492 = vmatpush1.xpose.msra.mxu0 0.0
        %2493 = vmatprep.subr.mxu0 0.0
        %2494 = vmatpush1.xpose.msra.mxu0 0.0
        %2495 = vmatprep.subr.mxu0 0.0
        %2496 = vmatpush1.xpose.msra.mxu0 0.0
        %2497 = vmatprep.subr.mxu0 0.0
        %2498 = vmatpush1.xpose.msra.mxu0 0.0
        %2499 = vmatprep.subr.mxu0 0.0
        %2500 = vmatpush1.xpose.msra.mxu0 0.0
        %2501 = vmatprep.mubr.f32.mxu0 0.0
        %2502 = vmatmul.mubr.f32.gmra.mrb[0].mxu0 %v2433
        %v2503 = vpop.f32.mrb[0].mxu0
        %v2504 = vadd.f32 0.0, %v2503
        %v2505 = vpop.f32.mrb[0].mxu0
        %2506 = vdwg.mxu0
        %v2507 = vmul.f32 %v2426, 0.17677669
        %v2508 = vmul.f32 %v2504, 0.17677669
        %v2509 = vadd.f32 %v2507, %v1503
        %v2510 = vadd.f32 %v2508, %v1507
        %v2511 = vsel %vm1512, %v2509, -inf
        %2512 = vmax.xlane.f32.xlu0 %v2511
        %v2513 = vpop.xlane.xlu0 %2512
        %v2514 = vsel %vm1512, %v2510, -inf
        %2515 = vmax.xlane.f32.xlu0 %v2514
        %v2516 = vpop.xlane.xlu0 %2515
        %v2517 = vsub.f32 %v2509, %v2513
        %v2518 = vsub.f32 %v2510, %v2516
        %v2519 = vmul.f32 %v2517, 1.442695
        %v2520 = vpow.pop %v2519
        %v2521 = vmul.f32 %v2518, 1.442695
        %v2522 = vpow.pop %v2521
        %v2523 = vsel %vm1512, %v2520, 0.0
        %2524 = vadd.xlane.f32.xlu0 %v2523
        %v2525 = vpop.xlane.xlu0 %2524
        %v2526 = vsel %vm1512, %v2522, 0.0
        %2527 = vadd.xlane.f32.xlu0 %v2526
        %v2528 = vpop.xlane.xlu0 %2527
        %v2529 = vrcp.pop %v2525
        %v2530 = vrcp.pop %v2528
        %v2531 = vmul.f32 %v2520, %v2529
        %v2532 = vmul.f32 %v2522, %v2530
        %2533 = vrot.lane.b32.xlu0 %v1313, 32
        %v2534 = vpop.permute.xlu0 %2533
        %v2537 = vsel %vm1512, %v2531, 0
        %2539 = vmatprep.subr.mxu0 0.0
        %2540 = vmatpush1.msra.mxu0 %v2534
        %2541 = vmatprep.subr.mxu0 0.0
        %2542 = vmatpush1.msra.mxu0 0.0
        %2543 = vmatprep.subr.mxu0 0.0
        %2544 = vmatpush1.msra.mxu0 0.0
        %2545 = vmatprep.subr.mxu0 0.0
        %2546 = vmatpush1.msra.mxu0 0.0
        %2547 = vmatprep.subr.mxu0 0.0
        %2548 = vmatpush1.msra.mxu0 0.0
        %2549 = vmatprep.subr.mxu0 0.0
        %2550 = vmatpush1.msra.mxu0 0.0
        %2551 = vmatprep.subr.mxu0 0.0
        %2552 = vmatpush1.msra.mxu0 0.0
        %2553 = vmatprep.subr.mxu0 0.0
        %2554 = vmatpush1.msra.mxu0 0.0
        %2555 = vmatprep.subr.mxu0 0.0
        %2556 = vmatpush1.msra.mxu0 0.0
        %2557 = vmatprep.subr.mxu0 0.0
        %2558 = vmatpush1.msra.mxu0 0.0
        %2559 = vmatprep.subr.mxu0 0.0
        %2560 = vmatpush1.msra.mxu0 0.0
        %2561 = vmatprep.subr.mxu0 0.0
        %2562 = vmatpush1.msra.mxu0 0.0
        %2563 = vmatprep.subr.mxu0 0.0
        %2564 = vmatpush1.msra.mxu0 0.0
        %2565 = vmatprep.subr.mxu0 0.0
        %2566 = vmatpush1.msra.mxu0 0.0
        %2567 = vmatprep.subr.mxu0 0.0
        %2568 = vmatpush1.msra.mxu0 0.0
        %2569 = vmatprep.subr.mxu0 0.0
        %2570 = vmatpush1.msra.mxu0 0.0
        %2571 = vmatprep.subr.mxu0 0.0
        %2572 = vmatpush1.msra.mxu0 0.0
        %2573 = vmatprep.subr.mxu0 0.0
        %2574 = vmatpush1.msra.mxu0 0.0
        %2575 = vmatprep.subr.mxu0 0.0
        %2576 = vmatpush1.msra.mxu0 0.0
        %2577 = vmatprep.subr.mxu0 0.0
        %2578 = vmatpush1.msra.mxu0 0.0
        %2579 = vmatprep.subr.mxu0 0.0
        %2580 = vmatpush1.msra.mxu0 0.0
        %2581 = vmatprep.subr.mxu0 0.0
        %2582 = vmatpush1.msra.mxu0 0.0
        %2583 = vmatprep.subr.mxu0 0.0
        %2584 = vmatpush1.msra.mxu0 0.0
        %2585 = vmatprep.subr.mxu0 0.0
        %2586 = vmatpush1.msra.mxu0 0.0
        %2587 = vmatprep.subr.mxu0 0.0
        %2588 = vmatpush1.msra.mxu0 0.0
        %2589 = vmatprep.subr.mxu0 0.0
        %2590 = vmatpush1.msra.mxu0 0.0
        %2591 = vmatprep.subr.mxu0 0.0
        %2592 = vmatpush1.msra.mxu0 0.0
        %2593 = vmatprep.subr.mxu0 0.0
        %2594 = vmatpush1.msra.mxu0 0.0
        %2595 = vmatprep.subr.mxu0 0.0
        %2596 = vmatpush1.msra.mxu0 0.0
        %2597 = vmatprep.subr.mxu0 0.0
        %2598 = vmatpush1.msra.mxu0 0.0
        %2599 = vmatprep.subr.mxu0 0.0
        %2600 = vmatpush1.msra.mxu0 0.0
        %2601 = vmatprep.subr.mxu0 0.0
        %2602 = vmatpush1.msra.mxu0 0.0
        %2603 = vmatprep.mubr.f32.mxu0 0.0
        %2604 = vmatmul.mubr.f32.gmra.mrb[0].mxu0 %v2537
        %v2605 = vpop.f32.mrb[0].mxu0
        %v2606 = vadd.f32 0.0, %v2605
        %v2607 = vpop.f32.mrb[0].mxu0
        %2608 = vdwg.mxu0
        %2609 = vrot.lane.b32.xlu0 %v1318, 32
        %v2610 = vpop.permute.xlu0 %2609
        %v2613 = vsel %vm1512, %v2532, 0
        %2615 = vmatprep.subr.mxu0 0.0
        %2616 = vmatpush1.msra.mxu0 %v2610
        %2617 = vmatprep.subr.mxu0 0.0
        %2618 = vmatpush1.msra.mxu0 0.0
        %2619 = vmatprep.subr.mxu0 0.0
        %2620 = vmatpush1.msra.mxu0 0.0
        %2621 = vmatprep.subr.mxu0 0.0
        %2622 = vmatpush1.msra.mxu0 0.0
        %2623 = vmatprep.subr.mxu0 0.0
        %2624 = vmatpush1.msra.mxu0 0.0
        %2625 = vmatprep.subr.mxu0 0.0
        %2626 = vmatpush1.msra.mxu0 0.0
        %2627 = vmatprep.subr.mxu0 0.0
        %2628 = vmatpush1.msra.mxu0 0.0
        %2629 = vmatprep.subr.mxu0 0.0
        %2630 = vmatpush1.msra.mxu0 0.0
        %2631 = vmatprep.subr.mxu0 0.0
        %2632 = vmatpush1.msra.mxu0 0.0
        %2633 = vmatprep.subr.mxu0 0.0
        %2634 = vmatpush1.msra.mxu0 0.0
        %2635 = vmatprep.subr.mxu0 0.0
        %2636 = vmatpush1.msra.mxu0 0.0
        %2637 = vmatprep.subr.mxu0 0.0
        %2638 = vmatpush1.msra.mxu0 0.0
        %2639 = vmatprep.subr.mxu0 0.0
        %2640 = vmatpush1.msra.mxu0 0.0
        %2641 = vmatprep.subr.mxu0 0.0
        %2642 = vmatpush1.msra.mxu0 0.0
        %2643 = vmatprep.subr.mxu0 0.0
        %2644 = vmatpush1.msra.mxu0 0.0
        %2645 = vmatprep.subr.mxu0 0.0
        %2646 = vmatpush1.msra.mxu0 0.0
        %2647 = vmatprep.subr.mxu0 0.0
        %2648 = vmatpush1.msra.mxu0 0.0
        %2649 = vmatprep.subr.mxu0 0.0
        %2650 = vmatpush1.msra.mxu0 0.0
        %2651 = vmatprep.subr.mxu0 0.0
        %2652 = vmatpush1.msra.mxu0 0.0
        %2653 = vmatprep.subr.mxu0 0.0
        %2654 = vmatpush1.msra.mxu0 0.0
        %2655 = vmatprep.subr.mxu0 0.0
        %2656 = vmatpush1.msra.mxu0 0.0
        %2657 = vmatprep.subr.mxu0 0.0
        %2658 = vmatpush1.msra.mxu0 0.0
        %2659 = vmatprep.subr.mxu0 0.0
        %2660 = vmatpush1.msra.mxu0 0.0
        %2661 = vmatprep.subr.mxu0 0.0
        %2662 = vmatpush1.msra.mxu0 0.0
        %2663 = vmatprep.subr.mxu0 0.0
        %2664 = vmatpush1.msra.mxu0 0.0
        %2665 = vmatprep.subr.mxu0 0.0
        %2666 = vmatpush1.msra.mxu0 0.0
        %2667 = vmatprep.subr.mxu0 0.0
        %2668 = vmatpush1.msra.mxu0 0.0
        %2669 = vmatprep.subr.mxu0 0.0
        %2670 = vmatpush1.msra.mxu0 0.0
        %2671 = vmatprep.subr.mxu0 0.0
        %2672 = vmatpush1.msra.mxu0 0.0
        %2673 = vmatprep.subr.mxu0 0.0
        %2674 = vmatpush1.msra.mxu0 0.0
        %2675 = vmatprep.subr.mxu0 0.0
        %2676 = vmatpush1.msra.mxu0 0.0
        %2677 = vmatprep.subr.mxu0 0.0
        %2678 = vmatpush1.msra.mxu0 0.0
        %2679 = vmatprep.mubr.f32.mxu0 0.0
        %2680 = vmatmul.mubr.f32.gmra.mrb[0].mxu0 %v2613
        %v2681 = vpop.f32.mrb[0].mxu0
        %v2682 = vadd.f32 0.0, %v2681
        %v2683 = vpop.f32.mrb[0].mxu0
        %2684 = vdwg.mxu0
        %2687 = vrot.lane.b32.xlu0 %v1937, 32
        %v2688 = vpop.permute.xlu0 %2687
        %2689 = vrot.lane.b32.xlu0 %v2014, 32
        %v2690 = vpop.permute.xlu0 %2689
        %2695 = vrot.lane.b32.xlu0 %v2272, 64
        %v2696 = vpop.permute.xlu0 %2695
        %2697 = vrot.lane.b32.xlu0 %v2348, 64
        %v2698 = vpop.permute.xlu0 %2697
        %2703 = vrot.lane.b32.xlu0 %v2606, 96
        %v2704 = vpop.permute.xlu0 %2703
        %2705 = vrot.lane.b32.xlu0 %v2682, 96
        %v2706 = vpop.permute.xlu0 %2705
        %v2709 = vsel %vm1345, %v1605, %v2688
        %v2710 = vsel %vm1345, %v1678, %v2690
        %vm2711 = vcmask 523264
        %v2712 = vsel %vm2711, %v2709, %v2696
        %v2713 = vsel %vm2711, %v2710, %v2698
        %vm2714 = vcmask 785408
        %v2715 = vsel %vm2714, %v2712, %v2704
        %v2716 = vsel %vm2714, %v2713, %v2706
        %v2717 = vld [vmem:[%s869] sm:$0xff]
        %v2718 = vld [vmem:[%s869 + $0x8] sm:$0xff]
        %v2719 = vld [vmem:[%s869 + $0x10] sm:$0xff]
        %v2720 = vld [vmem:[%s869 + $0x18] sm:$0xff]
        %v2721 = vld [vmem:[%s869 + $0x20] sm:$0xff]
        %v2722 = vld [vmem:[%s869 + $0x28] sm:$0xff]
        %v2723 = vld [vmem:[%s869 + $0x30] sm:$0xff]
        %v2724 = vld [vmem:[%s869 + $0x38] sm:$0xff]
        %v2725 = vld [vmem:[%s869 + $0x40] sm:$0xff]
        %v2726 = vld [vmem:[%s869 + $0x48] sm:$0xff]
        %v2727 = vld [vmem:[%s869 + $0x50] sm:$0xff]
        %v2728 = vld [vmem:[%s869 + $0x58] sm:$0xff]
        %v2729 = vld [vmem:[%s869 + $0x60] sm:$0xff]
        %v2730 = vld [vmem:[%s869 + $0x68] sm:$0xff]
        %v2731 = vld [vmem:[%s869 + $0x70] sm:$0xff]
        %v2732 = vld [vmem:[%s869 + $0x78] sm:$0xff]
        %v2733 = vld [vmem:[%s877] sm:$0x1]
        %v2735 = vlaneseq
        %v2736 = vshrl.u32 %v2735, 7
        %v2737 = vsub.s32 0, %v2736
        %v2738 = vrot.slane %v2733, %v2737
        %2740 = vmatprep.subr.mxu0 0.0
        %2741 = vmatpush1.msra.mxu0 %v2717
        %2742 = vmatprep.subr.mxu0 0.0
        %2743 = vmatpush1.msra.mxu0 %v2718
        %2744 = vmatprep.subr.mxu0 0.0
        %2745 = vmatpush1.msra.mxu0 %v2719
        %2746 = vmatprep.subr.mxu0 0.0
        %2747 = vmatpush1.msra.mxu0 %v2720
        %2748 = vmatprep.subr.mxu0 0.0
        %2749 = vmatpush1.msra.mxu0 %v2721
        %2750 = vmatprep.subr.mxu0 0.0
        %2751 = vmatpush1.msra.mxu0 %v2722
        %2752 = vmatprep.subr.mxu0 0.0
        %2753 = vmatpush1.msra.mxu0 %v2723
        %2754 = vmatprep.subr.mxu0 0.0
        %2755 = vmatpush1.msra.mxu0 %v2724
        %2756 = vmatprep.subr.mxu0 0.0
        %2757 = vmatpush1.msra.mxu0 %v2725
        %2758 = vmatprep.subr.mxu0 0.0
        %2759 = vmatpush1.msra.mxu0 %v2726
        %2760 = vmatprep.subr.mxu0 0.0
        %2761 = vmatpush1.msra.mxu0 %v2727
        %2762 = vmatprep.subr.mxu0 0.0
        %2763 = vmatpush1.msra.mxu0 %v2728
        %2764 = vmatprep.subr.mxu0 0.0
        %2765 = vmatpush1.msra.mxu0 %v2729
        %2766 = vmatprep.subr.mxu0 0.0
        %2767 = vmatpush1.msra.mxu0 %v2730
        %2768 = vmatprep.subr.mxu0 0.0
        %2769 = vmatpush1.msra.mxu0 %v2731
        %2770 = vmatprep.subr.mxu0 0.0
        %2771 = vmatpush1.msra.mxu0 %v2732
        %2772 = vmatprep.subr.mxu0 0.0
        %2773 = vmatpush1.msra.mxu0 0.0
        %2774 = vmatprep.subr.mxu0 0.0
        %2775 = vmatpush1.msra.mxu0 0.0
        %2776 = vmatprep.subr.mxu0 0.0
        %2777 = vmatpush1.msra.mxu0 0.0
        %2778 = vmatprep.subr.mxu0 0.0
        %2779 = vmatpush1.msra.mxu0 0.0
        %2780 = vmatprep.subr.mxu0 0.0
        %2781 = vmatpush1.msra.mxu0 0.0
        %2782 = vmatprep.subr.mxu0 0.0
        %2783 = vmatpush1.msra.mxu0 0.0
        %2784 = vmatprep.subr.mxu0 0.0
        %2785 = vmatpush1.msra.mxu0 0.0
        %2786 = vmatprep.subr.mxu0 0.0
        %2787 = vmatpush1.msra.mxu0 0.0
        %2788 = vmatprep.subr.mxu0 0.0
        %2789 = vmatpush1.msra.mxu0 0.0
        %2790 = vmatprep.subr.mxu0 0.0
        %2791 = vmatpush1.msra.mxu0 0.0
        %2792 = vmatprep.subr.mxu0 0.0
        %2793 = vmatpush1.msra.mxu0 0.0
        %2794 = vmatprep.subr.mxu0 0.0
        %2795 = vmatpush1.msra.mxu0 0.0
        %2796 = vmatprep.subr.mxu0 0.0
        %2797 = vmatpush1.msra.mxu0 0.0
        %2798 = vmatprep.subr.mxu0 0.0
        %2799 = vmatpush1.msra.mxu0 0.0
        %2800 = vmatprep.subr.mxu0 0.0
        %2801 = vmatpush1.msra.mxu0 0.0
        %2802 = vmatprep.subr.mxu0 0.0
        %2803 = vmatpush1.msra.mxu0 0.0
        %2804 = vmatprep.mubr.f32.mxu0 0.0
        %2805 = vmatmul.mubr.f32.gmra.mrb[0].mxu0 %v2715
        %v2806 = vpop.f32.mrb[0].mxu0
        %v2807 = vadd.f32 %v2738, %v2806
        %v2808 = vpop.f32.mrb[0].mxu0
        %2809 = vmatprep.mubr.f32.mxu0 0.0
        %2810 = vmatmul.mubr.f32.gmra.mrb[0].mxu0 %v2716
        %v2811 = vpop.f32.mrb[0].mxu0
        %v2812 = vadd.f32 %v2738, %v2811
        %v2813 = vpop.f32.mrb[0].mxu0
        %2814 = vdwg.mxu0
        %v2815 = vadd.f32 %v2807, %v1102
        %v2816 = vadd.f32 %v2812, %v1103
        %v2817 = vld [vmem:[%s885] sm:$0x1]
        %v2818 = vld [vmem:[%s893] sm:$0x1]
        %2819 = vadd.xlane.f32.xlu0 %v2815
        %v2820 = vpop.xlane.xlu0 %2819
        %2821 = vadd.xlane.f32.xlu0 %v2816
        %v2822 = vpop.xlane.xlu0 %2821
        %v2823 = vrcp.pop 128.0
        %v2824 = vmul.f32 %v2820, %v2823
        %v2825 = vmul.f32 %v2822, %v2823
        %v2826 = vsub.f32 %v2815, %v2824
        %v2827 = vsub.f32 %v2816, %v2825
        %v2828 = vmul.f32 %v2826, %v2826
        %v2829 = vmul.f32 %v2827, %v2827
        %2830 = vadd.xlane.f32.xlu0 %v2828
        %v2831 = vpop.xlane.xlu0 %2830
        %2832 = vadd.xlane.f32.xlu0 %v2829
        %v2833 = vpop.xlane.xlu0 %2832
        %v2834 = vmul.f32 %v2831, %v2823
        %v2835 = vmul.f32 %v2833, %v2823
        %v2836 = vadd.f32 %v2834, 1e-12
        %v2837 = vadd.f32 %v2835, 1e-12
        %v2838 = vrsqrt.pop %v2836
        %v2839 = vrsqrt.pop %v2837
        %v2840 = vmul.f32 %v2826, %v2838
        %v2841 = vmul.f32 %v2827, %v2839
        %v2843 = vlaneseq
        %v2844 = vshrl.u32 %v2843, 7
        %v2845 = vsub.s32 0, %v2844
        %v2846 = vrot.slane %v2817, %v2845
        %v2848 = vmul.f32 %v2840, %v2846
        %v2849 = vmul.f32 %v2841, %v2846
        %v2851 = vlaneseq
        %v2852 = vshrl.u32 %v2851, 7
        %v2853 = vsub.s32 0, %v2852
        %v2854 = vrot.slane %v2818, %v2853
        %v2856 = vadd.f32 %v2848, %v2854
        %v2857 = vadd.f32 %v2849, %v2854
        %v2858 = vld [vmem:[%s902] sm:$0xff]
        %v2859 = vld [vmem:[%s902 + $0x8] sm:$0xff]
        %v2860 = vld [vmem:[%s902 + $0x10] sm:$0xff]
        %v2861 = vld [vmem:[%s902 + $0x18] sm:$0xff]
        %v2862 = vld [vmem:[%s902 + $0x20] sm:$0xff]
        %v2863 = vld [vmem:[%s902 + $0x28] sm:$0xff]
        %v2864 = vld [vmem:[%s902 + $0x30] sm:$0xff]
        %v2865 = vld [vmem:[%s902 + $0x38] sm:$0xff]
        %v2866 = vld [vmem:[%s902 + $0x40] sm:$0xff]
        %v2867 = vld [vmem:[%s902 + $0x48] sm:$0xff]
        %v2868 = vld [vmem:[%s902 + $0x50] sm:$0xff]
        %v2869 = vld [vmem:[%s902 + $0x58] sm:$0xff]
        %v2870 = vld [vmem:[%s902 + $0x60] sm:$0xff]
        %v2871 = vld [vmem:[%s902 + $0x68] sm:$0xff]
        %v2872 = vld [vmem:[%s902 + $0x70] sm:$0xff]
        %v2873 = vld [vmem:[%s902 + $0x78] sm:$0xff]
        %v2874 = vld [vmem:[%s902 + $0x80] sm:$0xff]
        %v2875 = vld [vmem:[%s902 + $0x88] sm:$0xff]
        %v2876 = vld [vmem:[%s902 + $0x90] sm:$0xff]
        %v2877 = vld [vmem:[%s902 + $0x98] sm:$0xff]
        %v2878 = vld [vmem:[%s902 + $0xa0] sm:$0xff]
        %v2879 = vld [vmem:[%s902 + $0xa8] sm:$0xff]
        %v2880 = vld [vmem:[%s902 + $0xb0] sm:$0xff]
        %v2881 = vld [vmem:[%s902 + $0xb8] sm:$0xff]
        %v2882 = vld [vmem:[%s902 + $0xc0] sm:$0xff]
        %v2883 = vld [vmem:[%s902 + $0xc8] sm:$0xff]
        %v2884 = vld [vmem:[%s902 + $0xd0] sm:$0xff]
        %v2885 = vld [vmem:[%s902 + $0xd8] sm:$0xff]
        %v2886 = vld [vmem:[%s902 + $0xe0] sm:$0xff]
        %v2887 = vld [vmem:[%s902 + $0xe8] sm:$0xff]
        %v2888 = vld [vmem:[%s902 + $0xf0] sm:$0xff]
        %v2889 = vld [vmem:[%s902 + $0xf8] sm:$0xff]
        %v2890 = vld [vmem:[%s911] sm:$0x3]
        %v2892 = vlaneseq
        %v2893 = vshrl.u32 %v2892, 7
        %v2894 = vsub.s32 0, %v2893
        %v2895 = vrot.slane %v2890, %v2894
        %v2896 = vlaneseq
        %v2897 = vshrl.u32 %v2896, 7
        %v2898 = vsub.s32 1, %v2897
        %v2899 = vrot.slane %v2890, %v2898
        %2902 = vmatprep.subr.mxu0 %v2859
        %2903 = vmatpush1.msra.mxu0 %v2858
        %2904 = vmatprep.subr.mxu0 %v2861
        %2905 = vmatpush1.msra.mxu0 %v2860
        %2906 = vmatprep.subr.mxu0 %v2863
        %2907 = vmatpush1.msra.mxu0 %v2862
        %2908 = vmatprep.subr.mxu0 %v2865
        %2909 = vmatpush1.msra.mxu0 %v2864
        %2910 = vmatprep.subr.mxu0 %v2867
        %2911 = vmatpush1.msra.mxu0 %v2866
        %2912 = vmatprep.subr.mxu0 %v2869
        %2913 = vmatpush1.msra.mxu0 %v2868
        %2914 = vmatprep.subr.mxu0 %v2871
        %2915 = vmatpush1.msra.mxu0 %v2870
        %2916 = vmatprep.subr.mxu0 %v2873
        %2917 = vmatpush1.msra.mxu0 %v2872
        %2918 = vmatprep.subr.mxu0 %v2875
        %2919 = vmatpush1.msra.mxu0 %v2874
        %2920 = vmatprep.subr.mxu0 %v2877
        %2921 = vmatpush1.msra.mxu0 %v2876
        %2922 = vmatprep.subr.mxu0 %v2879
        %2923 = vmatpush1.msra.mxu0 %v2878
        %2924 = vmatprep.subr.mxu0 %v2881
        %2925 = vmatpush1.msra.mxu0 %v2880
        %2926 = vmatprep.subr.mxu0 %v2883
        %2927 = vmatpush1.msra.mxu0 %v2882
        %2928 = vmatprep.subr.mxu0 %v2885
        %2929 = vmatpush1.msra.mxu0 %v2884
        %2930 = vmatprep.subr.mxu0 %v2887
        %2931 = vmatpush1.msra.mxu0 %v2886
        %2932 = vmatprep.subr.mxu0 %v2889
        %2933 = vmatpush1.msra.mxu0 %v2888
        %2934 = vmatprep.subr.mxu0 0.0
        %2935 = vmatpush1.msra.mxu0 0.0
        %2936 = vmatprep.subr.mxu0 0.0
        %2937 = vmatpush1.msra.mxu0 0.0
        %2938 = vmatprep.subr.mxu0 0.0
        %2939 = vmatpush1.msra.mxu0 0.0
        %2940 = vmatprep.subr.mxu0 0.0
        %2941 = vmatpush1.msra.mxu0 0.0
        %2942 = vmatprep.subr.mxu0 0.0
        %2943 = vmatpush1.msra.mxu0 0.0
        %2944 = vmatprep.subr.mxu0 0.0
        %2945 = vmatpush1.msra.mxu0 0.0
        %2946 = vmatprep.subr.mxu0 0.0
        %2947 = vmatpush1.msra.mxu0 0.0
        %2948 = vmatprep.subr.mxu0 0.0
        %2949 = vmatpush1.msra.mxu0 0.0
        %2950 = vmatprep.subr.mxu0 0.0
        %2951 = vmatpush1.msra.mxu0 0.0
        %2952 = vmatprep.subr.mxu0 0.0
        %2953 = vmatpush1.msra.mxu0 0.0
        %2954 = vmatprep.subr.mxu0 0.0
        %2955 = vmatpush1.msra.mxu0 0.0
        %2956 = vmatprep.subr.mxu0 0.0
        %2957 = vmatpush1.msra.mxu0 0.0
        %2958 = vmatprep.subr.mxu0 0.0
        %2959 = vmatpush1.msra.mxu0 0.0
        %2960 = vmatprep.subr.mxu0 0.0
        %2961 = vmatpush1.msra.mxu0 0.0
        %2962 = vmatprep.subr.mxu0 0.0
        %2963 = vmatpush1.msra.mxu0 0.0
        %2964 = vmatprep.subr.mxu0 0.0
        %2965 = vmatpush1.msra.mxu0 0.0
        %2966 = vmatprep.mubr.f32.mxu0 0.0
        %2967 = vmatmul.mubr.f32.gmra.mrb[0].mxu0 %v2856
        %v2968 = vpop.f32.mrb[0].mxu0
        %v2969 = vadd.f32 %v2895, %v2968
        %v2970 = vpop.f32.mrb[0].mxu0
        %v2971 = vadd.f32 %v2899, %v2970
        %2972 = vmatprep.mubr.f32.mxu0 0.0
        %2973 = vmatmul.mubr.f32.gmra.mrb[0].mxu0 %v2857
        %v2974 = vpop.f32.mrb[0].mxu0
        %v2975 = vadd.f32 %v2895, %v2974
        %v2976 = vpop.f32.mrb[0].mxu0
        %v2977 = vadd.f32 %v2899, %v2976
        %2978 = vdwg.mxu0
        %v2979 = vmax.f32 %v2969, 0.0
        %v2980 = vmax.f32 %v2971, 0.0
        %v2981 = vmax.f32 %v2975, 0.0
        %v2982 = vmax.f32 %v2977, 0.0
        %v2983 = vld [vmem:[%s920] sm:$0xff]
        %v2984 = vld [vmem:[%s920 + $0x8] sm:$0xff]
        %v2985 = vld [vmem:[%s920 + $0x10] sm:$0xff]
        %v2986 = vld [vmem:[%s920 + $0x18] sm:$0xff]
        %v2987 = vld [vmem:[%s920 + $0x20] sm:$0xff]
        %v2988 = vld [vmem:[%s920 + $0x28] sm:$0xff]
        %v2989 = vld [vmem:[%s920 + $0x30] sm:$0xff]
        %v2990 = vld [vmem:[%s920 + $0x38] sm:$0xff]
        %v2991 = vld [vmem:[%s920 + $0x40] sm:$0xff]
        %v2992 = vld [vmem:[%s920 + $0x48] sm:$0xff]
        %v2993 = vld [vmem:[%s920 + $0x50] sm:$0xff]
        %v2994 = vld [vmem:[%s920 + $0x58] sm:$0xff]
        %v2995 = vld [vmem:[%s920 + $0x60] sm:$0xff]
        %v2996 = vld [vmem:[%s920 + $0x68] sm:$0xff]
        %v2997 = vld [vmem:[%s920 + $0x70] sm:$0xff]
        %v2998 = vld [vmem:[%s920 + $0x78] sm:$0xff]
        %v2999 = vld [vmem:[%s920 + $0x80] sm:$0xff]
        %v3000 = vld [vmem:[%s920 + $0x88] sm:$0xff]
        %v3001 = vld [vmem:[%s920 + $0x90] sm:$0xff]
        %v3002 = vld [vmem:[%s920 + $0x98] sm:$0xff]
        %v3003 = vld [vmem:[%s920 + $0xa0] sm:$0xff]
        %v3004 = vld [vmem:[%s920 + $0xa8] sm:$0xff]
        %v3005 = vld [vmem:[%s920 + $0xb0] sm:$0xff]
        %v3006 = vld [vmem:[%s920 + $0xb8] sm:$0xff]
        %v3007 = vld [vmem:[%s920 + $0xc0] sm:$0xff]
        %v3008 = vld [vmem:[%s920 + $0xc8] sm:$0xff]
        %v3009 = vld [vmem:[%s920 + $0xd0] sm:$0xff]
        %v3010 = vld [vmem:[%s920 + $0xd8] sm:$0xff]
        %v3011 = vld [vmem:[%s920 + $0xe0] sm:$0xff]
        %v3012 = vld [vmem:[%s920 + $0xe8] sm:$0xff]
        %v3013 = vld [vmem:[%s920 + $0xf0] sm:$0xff]
        %v3014 = vld [vmem:[%s920 + $0xf8] sm:$0xff]
        %v3015 = vld [vmem:[%s928] sm:$0x1]
        %v3017 = vlaneseq
        %v3018 = vshrl.u32 %v3017, 7
        %v3019 = vsub.s32 0, %v3018
        %v3020 = vrot.slane %v3015, %v3019
        %3022 = vmatprep.subr.mxu0 0.0
        %3023 = vmatpush1.msra.mxu0 %v2983
        %3024 = vmatprep.subr.mxu0 0.0
        %3025 = vmatpush1.msra.mxu0 %v2984
        %3026 = vmatprep.subr.mxu0 0.0
        %3027 = vmatpush1.msra.mxu0 %v2985
        %3028 = vmatprep.subr.mxu0 0.0
        %3029 = vmatpush1.msra.mxu0 %v2986
        %3030 = vmatprep.subr.mxu0 0.0
        %3031 = vmatpush1.msra.mxu0 %v2987
        %3032 = vmatprep.subr.mxu0 0.0
        %3033 = vmatpush1.msra.mxu0 %v2988
        %3034 = vmatprep.subr.mxu0 0.0
        %3035 = vmatpush1.msra.mxu0 %v2989
        %3036 = vmatprep.subr.mxu0 0.0
        %3037 = vmatpush1.msra.mxu0 %v2990
        %3038 = vmatprep.subr.mxu0 0.0
        %3039 = vmatpush1.msra.mxu0 %v2991
        %3040 = vmatprep.subr.mxu0 0.0
        %3041 = vmatpush1.msra.mxu0 %v2992
        %3042 = vmatprep.subr.mxu0 0.0
        %3043 = vmatpush1.msra.mxu0 %v2993
        %3044 = vmatprep.subr.mxu0 0.0
        %3045 = vmatpush1.msra.mxu0 %v2994
        %3046 = vmatprep.subr.mxu0 0.0
        %3047 = vmatpush1.msra.mxu0 %v2995
        %3048 = vmatprep.subr.mxu0 0.0
        %3049 = vmatpush1.msra.mxu0 %v2996
        %3050 = vmatprep.subr.mxu0 0.0
        %3051 = vmatpush1.msra.mxu0 %v2997
        %3052 = vmatprep.subr.mxu0 0.0
        %3053 = vmatpush1.msra.mxu0 %v2998
        %3054 = vmatprep.subr.mxu0 0.0
        %3055 = vmatpush1.msra.mxu0 %v2999
        %3056 = vmatprep.subr.mxu0 0.0
        %3057 = vmatpush1.msra.mxu0 %v3000
        %3058 = vmatprep.subr.mxu0 0.0
        %3059 = vmatpush1.msra.mxu0 %v3001
        %3060 = vmatprep.subr.mxu0 0.0
        %3061 = vmatpush1.msra.mxu0 %v3002
        %3062 = vmatprep.subr.mxu0 0.0
        %3063 = vmatpush1.msra.mxu0 %v3003
        %3064 = vmatprep.subr.mxu0 0.0
        %3065 = vmatpush1.msra.mxu0 %v3004
        %3066 = vmatprep.subr.mxu0 0.0
        %3067 = vmatpush1.msra.mxu0 %v3005
        %3068 = vmatprep.subr.mxu0 0.0
        %3069 = vmatpush1.msra.mxu0 %v3006
        %3070 = vmatprep.subr.mxu0 0.0
        %3071 = vmatpush1.msra.mxu0 %v3007
        %3072 = vmatprep.subr.mxu0 0.0
        %3073 = vmatpush1.msra.mxu0 %v3008
        %3074 = vmatprep.subr.mxu0 0.0
        %3075 = vmatpush1.msra.mxu0 %v3009
        %3076 = vmatprep.subr.mxu0 0.0
        %3077 = vmatpush1.msra.mxu0 %v3010
        %3078 = vmatprep.subr.mxu0 0.0
        %3079 = vmatpush1.msra.mxu0 %v3011
        %3080 = vmatprep.subr.mxu0 0.0
        %3081 = vmatpush1.msra.mxu0 %v3012
        %3082 = vmatprep.subr.mxu0 0.0
        %3083 = vmatpush1.msra.mxu0 %v3013
        %3084 = vmatprep.subr.mxu0 0.0
        %3085 = vmatpush1.msra.mxu0 %v3014
        %3086 = vmatprep.mubr.f32.mxu0 %v2980
        %3087 = vmatmul.mubr.f32.gmra.mrb[0].mxu0 %v2979
        %v3088 = vpop.f32.mrb[0].mxu0
        %v3089 = vadd.f32 %v3020, %v3088
        %v3090 = vpop.f32.mrb[0].mxu0
        %3091 = vmatprep.mubr.f32.mxu0 %v2982
        %3092 = vmatmul.mubr.f32.gmra.mrb[0].mxu0 %v2981
        %v3093 = vpop.f32.mrb[0].mxu0
        %v3094 = vadd.f32 %v3020, %v3093
        %v3095 = vpop.f32.mrb[0].mxu0
        %3096 = vdwg.mxu0
        %v3097 = vadd.f32 %v3089, %v2856
        %v3098 = vadd.f32 %v3094, %v2857
        %v3099 = vld [vmem:[%s936] sm:$0x1]
        %v3100 = vld [vmem:[%s944] sm:$0x1]
        %3101 = vadd.xlane.f32.xlu0 %v3097
        %v3102 = vpop.xlane.xlu0 %3101
        %3103 = vadd.xlane.f32.xlu0 %v3098
        %v3104 = vpop.xlane.xlu0 %3103
        %v3105 = vmul.f32 %v3102, %v2823
        %v3106 = vmul.f32 %v3104, %v2823
        %v3107 = vsub.f32 %v3097, %v3105
        %v3108 = vsub.f32 %v3098, %v3106
        %v3109 = vmul.f32 %v3107, %v3107
        %v3110 = vmul.f32 %v3108, %v3108
        %3111 = vadd.xlane.f32.xlu0 %v3109
        %v3112 = vpop.xlane.xlu0 %3111
        %3113 = vadd.xlane.f32.xlu0 %v3110
        %v3114 = vpop.xlane.xlu0 %3113
        %v3115 = vmul.f32 %v3112, %v2823
        %v3116 = vmul.f32 %v3114, %v2823
        %v3117 = vadd.f32 %v3115, 1e-12
        %v3118 = vadd.f32 %v3116, 1e-12
        %v3119 = vrsqrt.pop %v3117
        %v3120 = vrsqrt.pop %v3118
        %v3121 = vmul.f32 %v3107, %v3119
        %v3122 = vmul.f32 %v3108, %v3120
        %v3124 = vlaneseq
        %v3125 = vshrl.u32 %v3124, 7
        %v3126 = vsub.s32 0, %v3125
        %v3127 = vrot.slane %v3099, %v3126
        %v3129 = vmul.f32 %v3121, %v3127
        %v3130 = vmul.f32 %v3122, %v3127
        %v3132 = vlaneseq
        %v3133 = vshrl.u32 %v3132, 7
        %v3134 = vsub.s32 0, %v3133
        %v3135 = vrot.slane %v3100, %v3134
        %v3137 = vadd.f32 %v3129, %v3135
        %v3138 = vadd.f32 %v3130, %v3135
        %3139 = vst [vmem:[#allocation2] sm:$0xff] %v3137
        %3140 = vst [vmem:[#allocation2 + $0x8] sm:$0xff] %v3138
        %p3141 = scmp.eq.s32.totalorder %s35, 5
        // Predicated region
        $region169: #{transformer_sentence_forward.1} parent=99 // pred_check
          %p3142 = pneg %p3141
        $region170: #{transformer_sentence_forward.1} parent=99 // pred_check_branch
          %3144 = sbr.rel (%p3142) target = $region172
        $region171: #{transformer_sentence_forward.1} parent=99 // pred_region
          %v3146 = vrot.slane %v3138, 7
          %vm3148 = vcmask 1040384
          %v3149 = vsel %vm3148, %v3137, %v3146
          %v3150 = vld [vmem:[#allocation20] sm:$0xff]
          %v3151 = vld [vmem:[#allocation20 + $0x8] sm:$0xff]
          %v3152 = vld [vmem:[#allocation20 + $0x10] sm:$0xff]
          %v3153 = vld [vmem:[#allocation20 + $0x18] sm:$0xff]
          %v3154 = vld [vmem:[#allocation20 + $0x20] sm:$0xff]
          %v3155 = vld [vmem:[#allocation20 + $0x28] sm:$0xff]
          %v3156 = vld [vmem:[#allocation20 + $0x30] sm:$0xff]
          %v3157 = vld [vmem:[#allocation20 + $0x38] sm:$0xff]
          %v3158 = vld [vmem:[#allocation20 + $0x40] sm:$0xff]
          %v3159 = vld [vmem:[#allocation20 + $0x48] sm:$0xff]
          %v3160 = vld [vmem:[#allocation20 + $0x50] sm:$0xff]
          %v3161 = vld [vmem:[#allocation20 + $0x58] sm:$0xff]
          %v3162 = vld [vmem:[#allocation20 + $0x60] sm:$0xff]
          %v3163 = vld [vmem:[#allocation20 + $0x68] sm:$0xff]
          %v3164 = vld [vmem:[#allocation20 + $0x70] sm:$0xff]
          %v3165 = vld [vmem:[#allocation20 + $0x78] sm:$0xff]
          %v3166 = vld [vmem:[#allocation21] sm:$0x1]
          %v3168 = vlaneseq
          %v3169 = vshrl.u32 %v3168, 7
          %v3170 = vsub.s32 0, %v3169
          %v3171 = vrot.slane %v3166, %v3170
          %3173 = vmatprep.subr.mxu0 0.0
          %3174 = vmatpush1.msra.mxu0 %v3150
          %3175 = vmatprep.subr.mxu0 0.0
          %3176 = vmatpush1.msra.mxu0 %v3151
          %3177 = vmatprep.subr.mxu0 0.0
          %3178 = vmatpush1.msra.mxu0 %v3152
          %3179 = vmatprep.subr.mxu0 0.0
          %3180 = vmatpush1.msra.mxu0 %v3153
          %3181 = vmatprep.subr.mxu0 0.0
          %3182 = vmatpush1.msra.mxu0 %v3154
          %3183 = vmatprep.subr.mxu0 0.0
          %3184 = vmatpush1.msra.mxu0 %v3155
          %3185 = vmatprep.subr.mxu0 0.0
          %3186 = vmatpush1.msra.mxu0 %v3156
          %3187 = vmatprep.subr.mxu0 0.0
          %3188 = vmatpush1.msra.mxu0 %v3157
          %3189 = vmatprep.subr.mxu0 0.0
          %3190 = vmatpush1.msra.mxu0 %v3158
          %3191 = vmatprep.subr.mxu0 0.0
          %3192 = vmatpush1.msra.mxu0 %v3159
          %3193 = vmatprep.subr.mxu0 0.0
          %3194 = vmatpush1.msra.mxu0 %v3160
          %3195 = vmatprep.subr.mxu0 0.0
          %3196 = vmatpush1.msra.mxu0 %v3161
          %3197 = vmatprep.subr.mxu0 0.0
          %3198 = vmatpush1.msra.mxu0 %v3162
          %3199 = vmatprep.subr.mxu0 0.0
          %3200 = vmatpush1.msra.mxu0 %v3163
          %3201 = vmatprep.subr.mxu0 0.0
          %3202 = vmatpush1.msra.mxu0 %v3164
          %3203 = vmatprep.subr.mxu0 0.0
          %3204 = vmatpush1.msra.mxu0 %v3165
          %3205 = vmatprep.subr.mxu0 0.0
          %3206 = vmatpush1.msra.mxu0 0.0
          %3207 = vmatprep.subr.mxu0 0.0
          %3208 = vmatpush1.msra.mxu0 0.0
          %3209 = vmatprep.subr.mxu0 0.0
          %3210 = vmatpush1.msra.mxu0 0.0
          %3211 = vmatprep.subr.mxu0 0.0
          %3212 = vmatpush1.msra.mxu0 0.0
          %3213 = vmatprep.subr.mxu0 0.0
          %3214 = vmatpush1.msra.mxu0 0.0
          %3215 = vmatprep.subr.mxu0 0.0
          %3216 = vmatpush1.msra.mxu0 0.0
          %3217 = vmatprep.subr.mxu0 0.0
          %3218 = vmatpush1.msra.mxu0 0.0
          %3219 = vmatprep.subr.mxu0 0.0
          %3220 = vmatpush1.msra.mxu0 0.0
          %3221 = vmatprep.subr.mxu0 0.0
          %3222 = vmatpush1.msra.mxu0 0.0
          %3223 = vmatprep.subr.mxu0 0.0
          %3224 = vmatpush1.msra.mxu0 0.0
          %3225 = vmatprep.subr.mxu0 0.0
          %3226 = vmatpush1.msra.mxu0 0.0
          %3227 = vmatprep.subr.mxu0 0.0
          %3228 = vmatpush1.msra.mxu0 0.0
          %3229 = vmatprep.subr.mxu0 0.0
          %3230 = vmatpush1.msra.mxu0 0.0
          %3231 = vmatprep.subr.mxu0 0.0
          %3232 = vmatpush1.msra.mxu0 0.0
          %3233 = vmatprep.subr.mxu0 0.0
          %3234 = vmatpush1.msra.mxu0 0.0
          %3235 = vmatprep.subr.mxu0 0.0
          %3236 = vmatpush1.msra.mxu0 0.0
          %3237 = vmatprep.mubr.f32.mxu0 0.0
          %3238 = vmatmul.mubr.f32.gmra.mrb[0].mxu0 %v3149
          %v3239 = vpop.f32.mrb[0].mxu0
          %v3240 = vadd.f32 %v3171, %v3239
          %v3241 = vpop.f32.mrb[0].mxu0
          %3242 = vdwg.mxu0
          %v3243 = vtanh.pop %v3240
          %v3244 = vld [vmem:[%s18] sm:$0xff]
          %v3245 = vld [vmem:[%s18 + $0x8] sm:$0xff]
          %v3246 = vld [vmem:[%s18 + $0x10] sm:$0xff]
          %v3247 = vld [vmem:[%s18 + $0x18] sm:$0xff]
          %v3248 = vld [vmem:[%s18 + $0x20] sm:$0xff]
          %v3249 = vld [vmem:[%s18 + $0x28] sm:$0xff]
          %v3250 = vld [vmem:[%s18 + $0x30] sm:$0xff]
          %v3251 = vld [vmem:[%s18 + $0x38] sm:$0xff]
          %v3252 = vld [vmem:[%s18 + $0x40] sm:$0xff]
          %v3253 = vld [vmem:[%s18 + $0x48] sm:$0xff]
          %v3254 = vld [vmem:[%s18 + $0x50] sm:$0xff]
          %v3255 = vld [vmem:[%s18 + $0x58] sm:$0xff]
          %v3256 = vld [vmem:[%s18 + $0x60] sm:$0xff]
          %v3257 = vld [vmem:[%s18 + $0x68] sm:$0xff]
          %v3258 = vld [vmem:[%s18 + $0x70] sm:$0xff]
          %v3259 = vld [vmem:[%s18 + $0x78] sm:$0xff]
          %v3260 = vld [vmem:[%s19] sm:$0x1]
          %v3262 = vlaneseq
          %v3263 = vshrl.u32 %v3262, 7
          %v3264 = vsub.s32 0, %v3263
          %v3265 = vrot.slane %v3260, %v3264
          %3267 = vmatprep.subr.mxu0 0.0
          %3268 = vmatpush1.msra.mxu0 %v3244
          %3269 = vmatprep.subr.mxu0 0.0
          %3270 = vmatpush1.msra.mxu0 %v3245
          %3271 = vmatprep.subr.mxu0 0.0
          %3272 = vmatpush1.msra.mxu0 %v3246
          %3273 = vmatprep.subr.mxu0 0.0
          %3274 = vmatpush1.msra.mxu0 %v3247
          %3275 = vmatprep.subr.mxu0 0.0
          %3276 = vmatpush1.msra.mxu0 %v3248
          %3277 = vmatprep.subr.mxu0 0.0
          %3278 = vmatpush1.msra.mxu0 %v3249
          %3279 = vmatprep.subr.mxu0 0.0
          %3280 = vmatpush1.msra.mxu0 %v3250
          %3281 = vmatprep.subr.mxu0 0.0
          %3282 = vmatpush1.msra.mxu0 %v3251
          %3283 = vmatprep.subr.mxu0 0.0
          %3284 = vmatpush1.msra.mxu0 %v3252
          %3285 = vmatprep.subr.mxu0 0.0
          %3286 = vmatpush1.msra.mxu0 %v3253
          %3287 = vmatprep.subr.mxu0 0.0
          %3288 = vmatpush1.msra.mxu0 %v3254
          %3289 = vmatprep.subr.mxu0 0.0
          %3290 = vmatpush1.msra.mxu0 %v3255
          %3291 = vmatprep.subr.mxu0 0.0
          %3292 = vmatpush1.msra.mxu0 %v3256
          %3293 = vmatprep.subr.mxu0 0.0
          %3294 = vmatpush1.msra.mxu0 %v3257
          %3295 = vmatprep.subr.mxu0 0.0
          %3296 = vmatpush1.msra.mxu0 %v3258
          %3297 = vmatprep.subr.mxu0 0.0
          %3298 = vmatpush1.msra.mxu0 %v3259
          %3299 = vmatprep.subr.mxu0 0.0
          %3300 = vmatpush1.msra.mxu0 0.0
          %3301 = vmatprep.subr.mxu0 0.0
          %3302 = vmatpush1.msra.mxu0 0.0
          %3303 = vmatprep.subr.mxu0 0.0
          %3304 = vmatpush1.msra.mxu0 0.0
          %3305 = vmatprep.subr.mxu0 0.0
          %3306 = vmatpush1.msra.mxu0 0.0
          %3307 = vmatprep.subr.mxu0 0.0
          %3308 = vmatpush1.msra.mxu0 0.0
          %3309 = vmatprep.subr.mxu0 0.0
          %3310 = vmatpush1.msra.mxu0 0.0
          %3311 = vmatprep.subr.mxu0 0.0
          %3312 = vmatpush1.msra.mxu0 0.0
          %3313 = vmatprep.subr.mxu0 0.0
          %3314 = vmatpush1.msra.mxu0 0.0
          %3315 = vmatprep.subr.mxu0 0.0
          %3316 = vmatpush1.msra.mxu0 0.0
          %3317 = vmatprep.subr.mxu0 0.0
          %3318 = vmatpush1.msra.mxu0 0.0
          %3319 = vmatprep.subr.mxu0 0.0
          %3320 = vmatpush1.msra.mxu0 0.0
          %3321 = vmatprep.subr.mxu0 0.0
          %3322 = vmatpush1.msra.mxu0 0.0
          %3323 = vmatprep.subr.mxu0 0.0
          %3324 = vmatpush1.msra.mxu0 0.0
          %3325 = vmatprep.subr.mxu0 0.0
          %3326 = vmatpush1.msra.mxu0 0.0
          %3327 = vmatprep.subr.mxu0 0.0
          %3328 = vmatpush1.msra.mxu0 0.0
          %3329 = vmatprep.subr.mxu0 0.0
          %3330 = vmatpush1.msra.mxu0 0.0
          %3331 = vmatprep.mubr.f32.mxu0 0.0
          %3332 = vmatmul.mubr.f32.gmra.mrb[0].mxu0 %v3243
          %v3333 = vpop.f32.mrb[0].mxu0
          %v3334 = vadd.f32 %v3265, %v3333
          %v3335 = vpop.f32.mrb[0].mxu0
          %3336 = vdwg.mxu0
          %3337 = vst [vmem:[#allocation23] sm:$0x3] %v3334
        $region172: #{transformer_sentence_forward.1} parent=99 // pred_fallthru
          _
        // Predicated region
        $region173: #{transformer_sentence_forward.1} parent=99 // pred_check
          %p3338 = pneg %p528
        $region174: #{transformer_sentence_forward.1} parent=99 // pred_check_branch
          %3340 = sbr.rel (%p3338) target = $region176
        $region175: #{transformer_sentence_forward.1} parent=99 // pred_region
          %s3342 = ssub.s32 32, 32
          %3343 = vsyncadd [#allocation5], %s3342
          %s3345 = sshll.u32 [#allocation23], 4
          %s3346 = int_to_ptr.vmem [resolvable:$true] %s3345
          %3348 = dma.vmem_to_hbm [thread:$0]  %s3346, 32, %s20, [#allocation5]
        $region176: #{transformer_sentence_forward.1} parent=99 // pred_fallthru
          _
        // Predicated region
        $region177: #{transformer_sentence_forward.1} parent=99 // pred_check
          %p3349 = pneg %p528
        $region178: #{transformer_sentence_forward.1} parent=99 // pred_check_branch
          %3351 = sbr.rel (%p3349) target = $region180
        $region179: #{transformer_sentence_forward.1} parent=99 // pred_region
          %3352 = dma.done [#allocation5], 32
        $region180: #{transformer_sentence_forward.1} parent=99 // pred_fallthru
          _
      $region100: #{transformer_sentence_forward.1} parent=5 // pred_fallthru
        _
      %p3353 = scmp.le.s32.totalorder 2, %s30
      // Predicated region
      $region181: #{transformer_sentence_forward.1} parent=5 // pred_check
        %p3354 = pneg %p3353
      $region182: #{transformer_sentence_forward.1} parent=5 // pred_check_branch
        %3356 = sbr.rel (%p3354) target = $region184
      $region183: #{transformer_sentence_forward.1} parent=5 // pred_region
        %s3357 = ssub.s32 %s30, 2
      $region184: #{transformer_sentence_forward.1} parent=5 // pred_fallthru
        _
    $region6: #{transformer_sentence_forward.1} parent=1 // loop_footer
      %s34 = sadd.s32 1, %s30
    $region7: #{transformer_sentence_forward.1} parent=1 // loop_footer_branch
      %29 = sbr.rel target = $region3
    $region8: #{transformer_sentence_forward.1} parent=1 // loop_exit
      _
    %3358 = vsyncpa [#allocation4], 1
    %s3359 = scalar_lea.sflag [#allocation4], 1
    %3360 = vsyncpa %s3359, 1
    %3361 = vsyncpa [#allocation7], 1
    %3362 = vsyncpa [#allocation22], 1
    %3363 = vsyncpa [#allocation5], 1
    %s3364 = scalar_lea.sflag [#allocation5], 1
    %3365 = vsyncpa %s3364, 1

</llo_original>
